<compile_context>
chip_gen: v7x
topology: tpu7x:2x2x1
jax: 0.10.0
libtpu: 0.0.40
codegen_flags: <defaults>
</compile_context>

<pallas_src>
import jax
import jax.numpy as jnp
from jax.experimental import pallas as pl
from jax.experimental.pallas import tpu as pltpu

# ----------------------------- hyper-parameters ------------------------------
BATCH = 2
M = 8                     # data.m        (number of series)
W = 6                     # args.window
P_LIST = [16, 16]         # args.p_list   (equal entries -> residual add works)
K_LIST = [4]              # args.k_list
ADD_K_LIST = [M] + K_LIST
COMPRESS_P_LIST = [8]     # args.compress_p_list
PRE_WIN = 2               # args.pre_win
LEN_P = len(P_LIST)
LEN_K = len(K_LIST)
LEN_CP = len(COMPRESS_P_LIST)
P_ALLSUM = sum(P_LIST)
D_LAST = COMPRESS_P_LIST[-1] if LEN_CP > 0 else P_ALLSUM

VMEM_SPEC = pl.BlockSpec(memory_space=pltpu.MemorySpace.VMEM)
_DOT = dict(preferred_element_type=jnp.float32, precision=jax.lax.Precision.HIGHEST)
_P_HI = jax.lax.Precision.HIGHEST


# --------------------------- parameter-slab layout ---------------------------
def _param_block_shapes():
    """Ordered (name, rows, cols) of every pre-folded parameter block."""
    shapes = []
    prev = W
    for i in range(LEN_P):
        shapes.append((f"preM{i}", BATCH * P_LIST[i], BATCH * prev))
        shapes.append((f"preb{i}", BATCH * P_LIST[i], 1))
        prev = P_LIST[i]
    for i in range(LEN_P):
        for k in range(LEN_K):
            shapes.append((f"encw{i}_{k}", ADD_K_LIST[k], ADD_K_LIST[k + 1]))
            shapes.append((f"encs{i}_{k}", BATCH * P_LIST[-1], 1))
            shapes.append((f"enct{i}_{k}", BATCH * P_LIST[-1], 1))
    for i in range(LEN_P):
        for k in range(LEN_K):
            shapes.append((f"decw{i}_{k}",
                           ADD_K_LIST[LEN_K - k], ADD_K_LIST[LEN_K - k - 1]))
            shapes.append((f"decs{i}_{k}", BATCH * P_LIST[-1], 1))
            shapes.append((f"dect{i}_{k}", BATCH * P_LIST[-1], 1))
    for j in range(LEN_CP):
        if j == 0:
            for i in range(LEN_P):
                shapes.append((f"cmpG{j}_{i}",
                               BATCH * COMPRESS_P_LIST[0], BATCH * P_LIST[i]))
        else:
            shapes.append((f"cmpG{j}",
                           BATCH * COMPRESS_P_LIST[j], BATCH * COMPRESS_P_LIST[j - 1]))
        shapes.append((f"cmpb{j}", BATCH * COMPRESS_P_LIST[j], 1))
    shapes.append(("frw", PRE_WIN * D_LAST, M))
    shapes.append(("frb", PRE_WIN, M))
    return shapes


def _make_layout():
    layout, off, width = {}, 0, 1
    for name, r, c in _param_block_shapes():
        layout[name] = (off, r, c)
        off += ((r + 7) // 8) * 8          # keep every block 8-sublane aligned
        width = max(width, c)
    return layout, off, width


_LAYOUT, _SLAB_ROWS, _SLAB_WIDTH = _make_layout()


# --------------------------------- kernel ------------------------------------
def _dcm_fused_kernel(x_ref, slab_ref, out_ref):
    """Entire DCM forward pass in one kernel invocation (no grid).

    x_ref    : (B*W, M)              rows = (batch, time), lanes = series m
    slab_ref : (_SLAB_ROWS, width)   packed, pre-folded parameters
    out_ref  : (B*PRE_WIN, M)        row b*PRE_WIN + q == final_y[b, :, q]
    """
    def view(name):
        off, r, c = _LAYOUT[name]
        return slab_ref[off:off + r, 0:c]

    # Phase A: pre-layers.  Activation layout: rows = (batch, feature), lanes = m.
    # WL gates, residual adds and the zero-padding of the first layer are folded
    # into the block-diagonal (over batch) weights at prep time.
    x = x_ref[...]                                            # (B*W, M)
    xp = []
    for i in range(LEN_P):
        x = jnp.maximum(
            jnp.dot(view(f"preM{i}"), x, **_DOT) + view(f"preb{i}"), 0.0)
        xp.append(x)                                          # (B*P, M)

    # Phase B: encoder/decoder stacks — batch fused along sublanes, so every
    # layer of every branch is exactly ONE small matmul.  BN(eval) affine columns
    # carry the folded 1/5 of tanh(x/5); SV is folded into the first decoder weight.
    r_blocks = []
    for i in range(LEN_P):
        h = xp[i]                                             # (B*P, M)
        for k in range(LEN_K):
            h = jnp.tanh(jnp.dot(h, view(f"encw{i}_{k}"), **_DOT)
                         * view(f"encs{i}_{k}") + view(f"enct{i}_{k}"))
        for k in range(LEN_K):
            h = jnp.maximum(jnp.dot(h, view(f"decw{i}_{k}"), **_DOT)
                            * view(f"decs{i}_{k}") + view(f"dect{i}_{k}"), 0.0)
        r_blocks.append(h)                                    # (B*P, M)

    # Phase C: compress layers (block-diagonal over batch, accumulated over
    # branches — avoids materializing the branch concatenation; 1/5 folded).
    acc = None
    for i in range(LEN_P):
        term = jnp.dot(view(f"cmpG0_{i}"), r_blocks[i], **_DOT)
        acc = term if acc is None else acc + term
    c = jnp.tanh(acc + view("cmpb0"))                         # (B*CP0, M)
    for j in range(1, LEN_CP):
        c = jnp.tanh(jnp.dot(view(f"cmpG{j}"), c, **_DOT) + view(f"cmpb{j}"))

    # Phase D: FinalRowWise head.  out[b*PRE_WIN + q, m] = final_y[b, m, q].
    # Per-row stores kept deliberately: the epilogue is negligible here and this
    # avoids unaligned sublane-concat / in-kernel transpose lowering paths.
    frw = view("frw")                                         # (PRE_WIN*D_LAST, M)
    frb = view("frb")                                         # (PRE_WIN, M)
    for b in range(BATCH):
        cb = c[b * D_LAST:(b + 1) * D_LAST, :]                # (D_LAST, M)
        for q in range(PRE_WIN):
            wq = frw[q * D_LAST:(q + 1) * D_LAST, :]          # (D_LAST, M)
            row = jnp.sum(cb * wq, axis=0, keepdims=True) + frb[q:q + 1, :]
            r = b * PRE_WIN + q
            out_ref[r:r + 1, :] = row


# ------------------------------ parameter init -------------------------------
def init_params(key):
    keys = iter(jax.random.split(key, 128))

    def nrm(shape, scale=0.3):
        return scale * jax.random.normal(next(keys), shape, jnp.float32)

    def bn_st():
        # BatchNorm1d(p_list[-1]) in eval mode, folded to scale/shift.
        p = P_LIST[-1]
        gamma = 1.0 + 0.1 * jax.random.normal(next(keys), (p,), jnp.float32)
        beta = 0.1 * jax.random.normal(next(keys), (p,), jnp.float32)
        mean = 0.1 * jax.random.normal(next(keys), (p,), jnp.float32)
        var = 1.0 + 0.1 * jax.random.uniform(next(keys), (p,), jnp.float32)
        s = gamma / jnp.sqrt(var + 1e-5)
        t = beta - mean * s
        return s, t

    params = {"pre_w": [], "pre_b": [], "wl": [],
              "enc_w": [], "enc_bn": [], "sv": [],
              "dec_w": [], "dec_bn": [],
              "cmp_w": [], "cmp_b": []}

    dims = [W] + P_LIST
    for i in range(LEN_P):
        params["pre_w"].append(nrm((dims[i], P_LIST[i])))
        params["pre_b"].append(nrm((P_LIST[i],), 0.1))
        params["wl"].append(jnp.asarray([0.5 + 0.1 * i], jnp.float32))

    for i in range(LEN_P):
        enc_w, enc_bn, dec_w, dec_bn = [], [], [], []
        for k in range(LEN_K):                       # encoder: m -> ... -> k_last
            enc_w.append(nrm((ADD_K_LIST[k], ADD_K_LIST[k + 1])))
            enc_bn.append(bn_st())
        sv = 1.0 + 0.2 * jax.random.normal(next(keys), (K_LIST[-1],), jnp.float32)
        for j in range(LEN_K):                       # decoder: k_last -> ... -> m
            dec_w.append(nrm((ADD_K_LIST[LEN_K - j], ADD_K_LIST[LEN_K - j - 1])))
            dec_bn.append(bn_st())
        params["enc_w"].append(enc_w)
        params["enc_bn"].append(enc_bn)
        params["sv"].append(sv)
        params["dec_w"].append(dec_w)
        params["dec_bn"].append(dec_bn)

    cdims = [P_ALLSUM] + COMPRESS_P_LIST
    for j in range(LEN_CP):
        params["cmp_w"].append(nrm((cdims[j], cdims[j + 1])))
        params["cmp_b"].append(nrm((cdims[j + 1],), 0.1))

    params["fr_w"] = nrm((M, D_LAST, PRE_WIN))
    params["fr_b"] = nrm((M, PRE_WIN), 0.1)
    return params


# --------------------------- prep: fold + pack slab ---------------------------
def _block_diag_batch(block):
    """Block-diagonal replication of `block` over the batch dimension."""
    r, c = block.shape
    out = jnp.zeros((BATCH * r, BATCH * c), jnp.float32)
    for b in range(BATCH):
        out = out.at[b * r:(b + 1) * r, b * c:(b + 1) * c].set(block)
    return out


def prepare_params(params):
    """Fold WL/SV/BN/residual/(1/5) into weights and pack everything into ONE
    f32 slab.  Called once, outside jit (nothing is re-folded per call)."""
    assert len(set(P_LIST)) == 1, "fused kernel assumes all p_list entries are equal"
    assert P_LIST[0] >= W, "fused kernel assumes p_list[0] >= window"
    # TODO(synk): compress-free (compress_p_list == []) variant not implemented.
    assert LEN_CP >= 1

    P = P_LIST[0]
    blocks = {}

    # Pre-layers: block-diag(WL*W^T) + residual/pad selector, WL folded into bias.
    prev = W
    for i in range(LEN_P):
        wl = params["wl"][i][0]
        blk = wl * params["pre_w"][i].T + jnp.eye(P, prev, dtype=jnp.float32)
        blocks[f"preM{i}"] = _block_diag_batch(blk)                     # (B*P, B*prev)
        blocks[f"preb{i}"] = jnp.tile(wl * params["pre_b"][i], BATCH).reshape(-1, 1)
        prev = P

    # Encoder: weight as-is (right operand); BN affine tiled over batch, /5 folded.
    for i in range(LEN_P):
        for k in range(LEN_K):
            s, t = params["enc_bn"][i][k]
            blocks[f"encw{i}_{k}"] = params["enc_w"][i][k]
            blocks[f"encs{i}_{k}"] = jnp.tile(s / 5.0, BATCH).reshape(-1, 1)
            blocks[f"enct{i}_{k}"] = jnp.tile(t / 5.0, BATCH).reshape(-1, 1)

    # Decoder: SV folded into the first weight; BN affine tiled over batch (no /5).
    for i in range(LEN_P):
        for k in range(LEN_K):
            w = params["dec_w"][i][k]
            if k == 0:
                w = params["sv"][i][:, None] * w
            s, t = params["dec_bn"][i][k]
            blocks[f"decw{i}_{k}"] = w
            blocks[f"decs{i}_{k}"] = jnp.tile(s, BATCH).reshape(-1, 1)
            blocks[f"dect{i}_{k}"] = jnp.tile(t, BATCH).reshape(-1, 1)

    # Compress: per-branch column slice of W^T, /5 folded, block-diag over batch.
    off = 0
    for i in range(LEN_P):
        blk = params["cmp_w"][0][off:off + P_LIST[i], :].T / 5.0        # (CP0, P)
        blocks[f"cmpG0_{i}"] = _block_diag_batch(blk)                   # (B*CP0, B*P)
        off += P_LIST[i]
    blocks["cmpb0"] = jnp.tile(params["cmp_b"][0] / 5.0, BATCH).reshape(-1, 1)
    for j in range(1, LEN_CP):
        blocks[f"cmpG{j}"] = _block_diag_batch(params["cmp_w"][j].T / 5.0)
        blocks[f"cmpb{j}"] = jnp.tile(params["cmp_b"][j] / 5.0, BATCH).reshape(-1, 1)

    # FinalRowWise: weights arranged so that rows q*D + d hold fr_w[:, d, q].
    blocks["frw"] = jnp.transpose(params["fr_w"], (2, 1, 0)).reshape(PRE_WIN * D_LAST, M)
    blocks["frb"] = params["fr_b"].T                                     # (PRE_WIN, M)

    slab = jnp.zeros((_SLAB_ROWS, _SLAB_WIDTH), jnp.float32)
    for name, (row, r, c) in _LAYOUT.items():
        a = jnp.asarray(blocks[name], jnp.float32)
        assert a.shape == (r, c), (name, a.shape, (r, c))
        slab = slab.at[row:row + r, 0:c].set(a)
    return slab


# --------------------------------- forward -----------------------------------
def dcm_forward(slab, x_input):
    """x_input: (BATCH, window, m) == PyTorch inputs[0]. Returns (BATCH, m, pre_win)."""
    # Contiguous reshape only (no transpose / pad on the host): rows = (batch, time).
    x2d = x_input.reshape(BATCH * W, M)

    out2d = pl.pallas_call(
        _dcm_fused_kernel,
        out_shape=jax.ShapeDtypeStruct((BATCH * PRE_WIN, M), jnp.float32),
        in_specs=[VMEM_SPEC, VMEM_SPEC],
        out_specs=VMEM_SPEC,
    )(x2d, slab)

    # (B*pre_win, m) -> (B, m, pre_win)  (tiny, 64-element post-op)
    return jnp.transpose(out2d.reshape(BATCH, PRE_WIN, M), (0, 2, 1))


# ------------------------- pure-JAX reference (check) ------------------------
def dcm_reference(params, x_input):
    x = jnp.transpose(x_input, (0, 2, 1))                     # (B, m, w)
    x_0n = jnp.pad(x, ((0, 0), (0, 0), (0, P_LIST[0] - W)))
    x_0 = x
    x_p = []
    for i in range(LEN_P):
        x_i = jnp.einsum("bmi,ij->bmj", x_0, params["pre_w"][i],
                         precision=_P_HI) + params["pre_b"][i]
        x_i = jnp.maximum(params["wl"][i][0] * x_i + x_0n, 0.0)
        x_0n = x_i
        x_0 = x_i
        x_p.append(x_i)
    x_p_m = []
    for i in range(LEN_P):
        x_sp = jnp.transpose(x_p[i], (0, 2, 1))               # (B, p, m)
        for k in range(LEN_K):
            x_sp = jnp.einsum("bpi,ij->bpj", x_sp, params["enc_w"][i][k],
                              precision=_P_HI)
            s, t = params["enc_bn"][i][k]
            x_sp = jnp.tanh((x_sp * s[None, :, None] + t[None, :, None]) / 5.0)
        x_sp = x_sp * params["sv"][i][None, None, :]
        for k in range(LEN_K):
            x_sp = jnp.einsum("bpi,ij->bpj", x_sp, params["dec_w"][i][k],
                              precision=_P_HI)
            s, t = params["dec_bn"][i][k]
            x_sp = jnp.maximum(x_sp * s[None, :, None] + t[None, :, None], 0.0)
        x_p_m.append(jnp.transpose(x_sp, (0, 2, 1)))
    x_cat = jnp.concatenate(x_p_m, axis=2)                    # (B, m, p_allsum)
    for j in range(LEN_CP):
        x_cat = jnp.tanh((jnp.einsum("bmi,ij->bmj", x_cat, params["cmp_w"][j],
                                     precision=_P_HI) + params["cmp_b"][j]) / 5.0)
    return jnp.einsum("bmd,mdp->bmp", x_cat, params["fr_w"],
                      precision=_P_HI) + params["fr_b"][None]


# ----------------------------------- main -------------------------------------
if __name__ == "__main__":
    key = jax.random.PRNGKey(0)
    k_param, k_data = jax.random.split(key)
    params = init_params(k_param)
    slab = prepare_params(params)                 # one-time fold + pack (1 DMA/call)
    x_input = jax.random.normal(k_data, (BATCH, W, M), jnp.float32)

    fwd = jax.jit(dcm_forward)
    y = jax.block_until_ready(fwd(slab, x_input))

    assert y.shape == (BATCH, M, PRE_WIN), y.shape
    assert bool(jnp.all(jnp.isfinite(y)))

    # Cross-check the fused kernel against the plain-JAX reference (tight tol:
    # both paths pinned to HIGHEST matmul precision -> true f32 everywhere).
    y_ref = jax.block_until_ready(jax.jit(dcm_reference)(params, x_input))
    max_err = float(jnp.max(jnp.abs(y - y_ref)))
    assert max_err < 1e-4, f"mismatch vs reference: max abs err {max_err}"

    print("KERNEL_OK")
</pallas_src>

<mosaic_0001>
module attributes {stable_mosaic.version = 11 : i64} {
  func.func @_dcm_fused_kernel(%arg0: memref<12x8xf32, #tpu.memory_space<vmem>>, %arg1: memref<488x32xf32, #tpu.memory_space<vmem>>, %arg2: memref<4x8xf32, #tpu.memory_space<vmem>>) attributes {dimension_semantics = [], scalar_prefetch = 0 : i64, scratch_operands = 0 : i64, tpu.core_type = #tpu.core_type<tc>} {
    %c0 = arith.constant 0 : index
    %c0_0 = arith.constant 0 : index
    %0 = vector.load %arg0[%c0, %c0_0] : memref<12x8xf32, #tpu.memory_space<vmem>>, vector<12x8xf32>
    %c0_1 = arith.constant 0 : index
    %c0_2 = arith.constant 0 : index
    %1 = vector.load %arg1[%c0_1, %c0_2] : memref<488x32xf32, #tpu.memory_space<vmem>>, vector<32x12xf32>
    %cst = arith.constant dense<0.000000e+00> : vector<32x8xf32>
    %2 = tpu.matmul %1, %0, %cst {dimension_numbers = #tpu.dot_dimension_numbers<[1], [0], [0], [1], [0, 0, 1, 1], [], []>, precision = #tpu.contract_precision<fp32>} : vector<32x12xf32>, vector<12x8xf32>, vector<32x8xf32> -> vector<32x8xf32>
    %c32 = arith.constant 32 : index
    %c0_3 = arith.constant 0 : index
    %3 = vector.load %arg1[%c32, %c0_3] : memref<488x32xf32, #tpu.memory_space<vmem>>, vector<32x1xf32>
    %4 = vector.broadcast %3 : vector<32x1xf32> to vector<32x8xf32>
    %5 = arith.addf %2, %4 : vector<32x8xf32>
    %cst_4 = arith.constant 0.000000e+00 : f32
    %6 = vector.broadcast %cst_4 : f32 to vector<32x8xf32>
    %7 = arith.maximumf %5, %6 : vector<32x8xf32>
    %c64 = arith.constant 64 : index
    %c0_5 = arith.constant 0 : index
    %8 = vector.load %arg1[%c64, %c0_5] : memref<488x32xf32, #tpu.memory_space<vmem>>, vector<32x32xf32>
    %cst_6 = arith.constant dense<0.000000e+00> : vector<32x8xf32>
    %9 = tpu.matmul %8, %7, %cst_6 {dimension_numbers = #tpu.dot_dimension_numbers<[1], [0], [0], [1], [0, 0, 1, 1], [], []>, precision = #tpu.contract_precision<fp32>} : vector<32x32xf32>, vector<32x8xf32>, vector<32x8xf32> -> vector<32x8xf32>
    %c96 = arith.constant 96 : index
    %c0_7 = arith.constant 0 : index
    %10 = vector.load %arg1[%c96, %c0_7] : memref<488x32xf32, #tpu.memory_space<vmem>>, vector<32x1xf32>
    %11 = vector.broadcast %10 : vector<32x1xf32> to vector<32x8xf32>
    %12 = arith.addf %9, %11 : vector<32x8xf32>
    %cst_8 = arith.constant 0.000000e+00 : f32
    %13 = vector.broadcast %cst_8 : f32 to vector<32x8xf32>
    %14 = arith.maximumf %12, %13 : vector<32x8xf32>
    %c128 = arith.constant 128 : index
    %c0_9 = arith.constant 0 : index
    %15 = vector.load %arg1[%c128, %c0_9] : memref<488x32xf32, #tpu.memory_space<vmem>>, vector<8x4xf32>
    %cst_10 = arith.constant dense<0.000000e+00> : vector<32x4xf32>
    %16 = tpu.matmul %7, %15, %cst_10 {dimension_numbers = #tpu.dot_dimension_numbers<[1], [0], [0], [1], [0, 0, 1, 1], [], []>, precision = #tpu.contract_precision<fp32>} : vector<32x8xf32>, vector<8x4xf32>, vector<32x4xf32> -> vector<32x4xf32>
    %c136 = arith.constant 136 : index
    %c0_11 = arith.constant 0 : index
    %17 = vector.load %arg1[%c136, %c0_11] : memref<488x32xf32, #tpu.memory_space<vmem>>, vector<32x1xf32>
    %18 = vector.broadcast %17 : vector<32x1xf32> to vector<32x4xf32>
    %19 = arith.mulf %16, %18 : vector<32x4xf32>
    %c168 = arith.constant 168 : index
    %c0_12 = arith.constant 0 : index
    %20 = vector.load %arg1[%c168, %c0_12] : memref<488x32xf32, #tpu.memory_space<vmem>>, vector<32x1xf32>
    %21 = vector.broadcast %20 : vector<32x1xf32> to vector<32x4xf32>
    %22 = arith.addf %19, %21 : vector<32x4xf32>
    %23 = math.tanh %22 : vector<32x4xf32>
    %c272 = arith.constant 272 : index
    %c0_13 = arith.constant 0 : index
    %24 = vector.load %arg1[%c272, %c0_13] : memref<488x32xf32, #tpu.memory_space<vmem>>, vector<4x8xf32>
    %cst_14 = arith.constant dense<0.000000e+00> : vector<32x8xf32>
    %25 = tpu.matmul %23, %24, %cst_14 {dimension_numbers = #tpu.dot_dimension_numbers<[1], [0], [0], [1], [0, 0, 1, 1], [], []>, precision = #tpu.contract_precision<fp32>} : vector<32x4xf32>, vector<4x8xf32>, vector<32x8xf32> -> vector<32x8xf32>
    %c280 = arith.constant 280 : index
    %c0_15 = arith.constant 0 : index
    %26 = vector.load %arg1[%c280, %c0_15] : memref<488x32xf32, #tpu.memory_space<vmem>>, vector<32x1xf32>
    %27 = vector.broadcast %26 : vector<32x1xf32> to vector<32x8xf32>
    %28 = arith.mulf %25, %27 : vector<32x8xf32>
    %c312 = arith.constant 312 : index
    %c0_16 = arith.constant 0 : index
    %29 = vector.load %arg1[%c312, %c0_16] : memref<488x32xf32, #tpu.memory_space<vmem>>, vector<32x1xf32>
    %30 = vector.broadcast %29 : vector<32x1xf32> to vector<32x8xf32>
    %31 = arith.addf %28, %30 : vector<32x8xf32>
    %cst_17 = arith.constant 0.000000e+00 : f32
    %32 = vector.broadcast %cst_17 : f32 to vector<32x8xf32>
    %33 = arith.maximumf %31, %32 : vector<32x8xf32>
    %c200 = arith.constant 200 : index
    %c0_18 = arith.constant 0 : index
    %34 = vector.load %arg1[%c200, %c0_18] : memref<488x32xf32, #tpu.memory_space<vmem>>, vector<8x4xf32>
    %cst_19 = arith.constant dense<0.000000e+00> : vector<32x4xf32>
    %35 = tpu.matmul %14, %34, %cst_19 {dimension_numbers = #tpu.dot_dimension_numbers<[1], [0], [0], [1], [0, 0, 1, 1], [], []>, precision = #tpu.contract_precision<fp32>} : vector<32x8xf32>, vector<8x4xf32>, vector<32x4xf32> -> vector<32x4xf32>
    %c208 = arith.constant 208 : index
    %c0_20 = arith.constant 0 : index
    %36 = vector.load %arg1[%c208, %c0_20] : memref<488x32xf32, #tpu.memory_space<vmem>>, vector<32x1xf32>
    %37 = vector.broadcast %36 : vector<32x1xf32> to vector<32x4xf32>
    %38 = arith.mulf %35, %37 : vector<32x4xf32>
    %c240 = arith.constant 240 : index
    %c0_21 = arith.constant 0 : index
    %39 = vector.load %arg1[%c240, %c0_21] : memref<488x32xf32, #tpu.memory_space<vmem>>, vector<32x1xf32>
    %40 = vector.broadcast %39 : vector<32x1xf32> to vector<32x4xf32>
    %41 = arith.addf %38, %40 : vector<32x4xf32>
    %42 = math.tanh %41 : vector<32x4xf32>
    %c344 = arith.constant 344 : index
    %c0_22 = arith.constant 0 : index
    %43 = vector.load %arg1[%c344, %c0_22] : memref<488x32xf32, #tpu.memory_space<vmem>>, vector<4x8xf32>
    %cst_23 = arith.constant dense<0.000000e+00> : vector<32x8xf32>
    %44 = tpu.matmul %42, %43, %cst_23 {dimension_numbers = #tpu.dot_dimension_numbers<[1], [0], [0], [1], [0, 0, 1, 1], [], []>, precision = #tpu.contract_precision<fp32>} : vector<32x4xf32>, vector<4x8xf32>, vector<32x8xf32> -> vector<32x8xf32>
    %c352 = arith.constant 352 : index
    %c0_24 = arith.constant 0 : index
    %45 = vector.load %arg1[%c352, %c0_24] : memref<488x32xf32, #tpu.memory_space<vmem>>, vector<32x1xf32>
    %46 = vector.broadcast %45 : vector<32x1xf32> to vector<32x8xf32>
    %47 = arith.mulf %44, %46 : vector<32x8xf32>
    %c384 = arith.constant 384 : index
    %c0_25 = arith.constant 0 : index
    %48 = vector.load %arg1[%c384, %c0_25] : memref<488x32xf32, #tpu.memory_space<vmem>>, vector<32x1xf32>
    %49 = vector.broadcast %48 : vector<32x1xf32> to vector<32x8xf32>
    %50 = arith.addf %47, %49 : vector<32x8xf32>
    %cst_26 = arith.constant 0.000000e+00 : f32
    %51 = vector.broadcast %cst_26 : f32 to vector<32x8xf32>
    %52 = arith.maximumf %50, %51 : vector<32x8xf32>
    %c416 = arith.constant 416 : index
    %c0_27 = arith.constant 0 : index
    %53 = vector.load %arg1[%c416, %c0_27] : memref<488x32xf32, #tpu.memory_space<vmem>>, vector<16x32xf32>
    %cst_28 = arith.constant dense<0.000000e+00> : vector<16x8xf32>
    %54 = tpu.matmul %53, %33, %cst_28 {dimension_numbers = #tpu.dot_dimension_numbers<[1], [0], [0], [1], [0, 0, 1, 1], [], []>, precision = #tpu.contract_precision<fp32>} : vector<16x32xf32>, vector<32x8xf32>, vector<16x8xf32> -> vector<16x8xf32>
    %c432 = arith.constant 432 : index
    %c0_29 = arith.constant 0 : index
    %55 = vector.load %arg1[%c432, %c0_29] : memref<488x32xf32, #tpu.memory_space<vmem>>, vector<16x32xf32>
    %cst_30 = arith.constant dense<0.000000e+00> : vector<16x8xf32>
    %56 = tpu.matmul %55, %52, %cst_30 {dimension_numbers = #tpu.dot_dimension_numbers<[1], [0], [0], [1], [0, 0, 1, 1], [], []>, precision = #tpu.contract_precision<fp32>} : vector<16x32xf32>, vector<32x8xf32>, vector<16x8xf32> -> vector<16x8xf32>
    %57 = arith.addf %54, %56 : vector<16x8xf32>
    %c448 = arith.constant 448 : index
    %c0_31 = arith.constant 0 : index
    %58 = vector.load %arg1[%c448, %c0_31] : memref<488x32xf32, #tpu.memory_space<vmem>>, vector<16x1xf32>
    %59 = vector.broadcast %58 : vector<16x1xf32> to vector<16x8xf32>
    %60 = arith.addf %57, %59 : vector<16x8xf32>
    %61 = math.tanh %60 : vector<16x8xf32>
    %c464 = arith.constant 464 : index
    %c0_32 = arith.constant 0 : index
    %62 = vector.load %arg1[%c464, %c0_32] : memref<488x32xf32, #tpu.memory_space<vmem>>, vector<16x8xf32>
    %c480 = arith.constant 480 : index
    %c0_33 = arith.constant 0 : index
    %63 = vector.load %arg1[%c480, %c0_33] : memref<488x32xf32, #tpu.memory_space<vmem>>, vector<2x8xf32>
    %64 = vector.extract_strided_slice %61 {offsets = [0, 0], sizes = [8, 8], strides = [1, 1]} : vector<16x8xf32> to vector<8x8xf32>
    %65 = vector.extract_strided_slice %62 {offsets = [0, 0], sizes = [8, 8], strides = [1, 1]} : vector<16x8xf32> to vector<8x8xf32>
    %66 = arith.mulf %64, %65 : vector<8x8xf32>
    %cst_34 = arith.constant dense<0.000000e+00> : vector<8xf32>
    %67 = vector.multi_reduction <add>, %66, %cst_34 [0] : vector<8x8xf32> to vector<8xf32>
    %68 = vector.shape_cast %67 : vector<8xf32> to vector<1x8xf32>
    %69 = vector.extract_strided_slice %63 {offsets = [0, 0], sizes = [1, 8], strides = [1, 1]} : vector<2x8xf32> to vector<1x8xf32>
    %70 = arith.addf %68, %69 : vector<1x8xf32>
    %c0_35 = arith.constant 0 : index
    %c0_36 = arith.constant 0 : index
    %71 = vector.load %arg2[%c0_35, %c0_36] : memref<4x8xf32, #tpu.memory_space<vmem>>, vector<1x8xf32>
    tpu.vector_store %arg2[%c0_35, %c0_36], %70 {strides = array<i32>} : memref<4x8xf32, #tpu.memory_space<vmem>>, vector<1x8xf32>,
    %72 = vector.extract_strided_slice %62 {offsets = [8, 0], sizes = [8, 8], strides = [1, 1]} : vector<16x8xf32> to vector<8x8xf32>
    %73 = arith.mulf %64, %72 : vector<8x8xf32>
    %cst_37 = arith.constant dense<0.000000e+00> : vector<8xf32>
    %74 = vector.multi_reduction <add>, %73, %cst_37 [0] : vector<8x8xf32> to vector<8xf32>
    %75 = vector.shape_cast %74 : vector<8xf32> to vector<1x8xf32>
    %76 = vector.extract_strided_slice %63 {offsets = [1, 0], sizes = [1, 8], strides = [1, 1]} : vector<2x8xf32> to vector<1x8xf32>
    %77 = arith.addf %75, %76 : vector<1x8xf32>
    %c1 = arith.constant 1 : index
    %c0_38 = arith.constant 0 : index
    %78 = vector.load %arg2[%c1, %c0_38] : memref<4x8xf32, #tpu.memory_space<vmem>>, vector<1x8xf32>
    tpu.vector_store %arg2[%c1, %c0_38], %77 {strides = array<i32>} : memref<4x8xf32, #tpu.memory_space<vmem>>, vector<1x8xf32>,
    %79 = vector.extract_strided_slice %61 {offsets = [8, 0], sizes = [8, 8], strides = [1, 1]} : vector<16x8xf32> to vector<8x8xf32>
    %80 = vector.extract_strided_slice %62 {offsets = [0, 0], sizes = [8, 8], strides = [1, 1]} : vector<16x8xf32> to vector<8x8xf32>
    %81 = arith.mulf %79, %80 : vector<8x8xf32>
    %cst_39 = arith.constant dense<0.000000e+00> : vector<8xf32>
    %82 = vector.multi_reduction <add>, %81, %cst_39 [0] : vector<8x8xf32> to vector<8xf32>
    %83 = vector.shape_cast %82 : vector<8xf32> to vector<1x8xf32>
    %84 = vector.extract_strided_slice %63 {offsets = [0, 0], sizes = [1, 8], strides = [1, 1]} : vector<2x8xf32> to vector<1x8xf32>
    %85 = arith.addf %83, %84 : vector<1x8xf32>
    %c2 = arith.constant 2 : index
    %c0_40 = arith.constant 0 : index
    %86 = vector.load %arg2[%c2, %c0_40] : memref<4x8xf32, #tpu.memory_space<vmem>>, vector<1x8xf32>
    tpu.vector_store %arg2[%c2, %c0_40], %85 {strides = array<i32>} : memref<4x8xf32, #tpu.memory_space<vmem>>, vector<1x8xf32>,
    %87 = vector.extract_strided_slice %62 {offsets = [8, 0], sizes = [8, 8], strides = [1, 1]} : vector<16x8xf32> to vector<8x8xf32>
    %88 = arith.mulf %79, %87 : vector<8x8xf32>
    %cst_41 = arith.constant dense<0.000000e+00> : vector<8xf32>
    %89 = vector.multi_reduction <add>, %88, %cst_41 [0] : vector<8x8xf32> to vector<8xf32>
    %90 = vector.shape_cast %89 : vector<8xf32> to vector<1x8xf32>
    %91 = vector.extract_strided_slice %63 {offsets = [1, 0], sizes = [1, 8], strides = [1, 1]} : vector<2x8xf32> to vector<1x8xf32>
    %92 = arith.addf %90, %91 : vector<1x8xf32>
    %c3 = arith.constant 3 : index
    %c0_42 = arith.constant 0 : index
    %93 = vector.load %arg2[%c3, %c0_42] : memref<4x8xf32, #tpu.memory_space<vmem>>, vector<1x8xf32>
    tpu.vector_store %arg2[%c3, %c0_42], %92 {strides = array<i32>} : memref<4x8xf32, #tpu.memory_space<vmem>>, vector<1x8xf32>,
    return
  }
}

</mosaic_0001>

<llo_original>
// kernel: dcm_forward.1
$region0: #{dcm_forward.1}
  #allocation0 [shape = 'u32[]', space=smem, size = 0x4, offset = 0x4, fixed_abs, tag = 'smem constant byte address 0x4 - core index']
  #allocation1 [shape = 'u32[144,128]{1,0:T(1,128)}', space=vmem, size = 0x12000, scoped, tag = 'internal scratch']
  %s0 = inlined_call_operand.vmem [shape: f32[12,8], index: 0, kind: input, shape index: {}]
  %s1 = inlined_call_operand.vmem [shape: f32[488,32], index: 1, kind: input, shape index: {}]
  %s2 = inlined_call_operand.hbm [shape: f32[4,8], index: 2, kind: output, shape index: {}]
  %s3 = sld [smem:[#allocation0]]
  $region18: #{dcm_forward.1} parent=0
    _
  %s5 = ssub.s32 1, %s3
  %s6 = scalar_select 0, %s5, %s3
  $region1: #{dcm_forward.1} parent=0
    #allocation2 [shape = 'u8[2048]{0}', space=vmem, size = 0x800, scoped, tag = 'output window, operand 0, single buffered']
    #allocation3 [shape = 's32[1]{0}', space=sflag, size = 0x4, scoped, tag = 'scoped memory for dcm_forward.1']
    %7 = vsyncpa [#allocation3], 0
    // Predicated region
    $region2: #{dcm_forward.1} parent=1 // pred_check
      _
    $region3: #{dcm_forward.1} parent=1 // pred_check_branch
      %9 = sbr.rel (0) target = $region5
    $region4: #{dcm_forward.1} parent=1 // pred_region
      _
    $region5: #{dcm_forward.1} parent=1 // pred_fallthru
      _
    // Predicated region
    $region6: #{dcm_forward.1} parent=1 // pred_check
      _
    $region7: #{dcm_forward.1} parent=1 // pred_check_branch
      %11 = sbr.rel (0) target = $region9
    $region8: #{dcm_forward.1} parent=1 // pred_region
      _
    $region9: #{dcm_forward.1} parent=1 // pred_fallthru
      _
    %v12 = vld [vmem:[%s0] sm:$0xff]
    %v13 = vld [vmem:[%s0 + $0x8] sm:$0xf]
    %v14 = vld [vmem:[%s1] sm:$0xff]
    %v15 = vld [vmem:[%s1 + $0x8] sm:$0xff]
    %v16 = vld [vmem:[%s1 + $0x10] sm:$0xff]
    %v17 = vld [vmem:[%s1 + $0x18] sm:$0xff]
    %v18 = vld [vmem:[%s1 + $0x20] sm:$0xff]
    %v19 = vld [vmem:[%s1 + $0x28] sm:$0xff]
    %v20 = vld [vmem:[%s1 + $0x30] sm:$0xff]
    %v21 = vld [vmem:[%s1 + $0x38] sm:$0xff]
    %23 = vset.pattern.permute.xlu0 0
    %24 = vperm.xlu0 %23, %v18
    %v25 = vpop.permute.xlu0 %24
    %28 = vset.pattern.permute.xlu0 0
    %29 = vperm.xlu0 %28, %v19
    %v30 = vpop.permute.xlu0 %29
    %33 = vset.pattern.permute.xlu0 0
    %34 = vperm.xlu0 %33, %v20
    %v35 = vpop.permute.xlu0 %34
    %38 = vset.pattern.permute.xlu0 0
    %39 = vperm.xlu0 %38, %v21
    %v40 = vpop.permute.xlu0 %39
    %vm42 = vcmask 97280
    %v44 = vsel %vm42, %v14, 0
    %v47 = vsel %vm42, %v15, 0
    %v50 = vsel %vm42, %v16, 0
    %v53 = vsel %vm42, %v17, 0
    %vm55 = vcmask 1043456
    %v57 = vsel %vm55, %v13, 0
    %59 = vmatprep.subr.mxu0 0.0
    %v60 = vand.u32 %v12, 4294901760
    %61 = vmatpush1.msra.mxu0 %v60
    %62 = vmatprep.subr.mxu0 0.0
    %v63 = vand.u32 %v57, 4294901760
    %64 = vmatpush1.msra.mxu0 %v63
    %65 = vmatprep.subr.mxu0 0.0
    %66 = vmatpush1.msra.mxu0 0.0
    %67 = vmatprep.subr.mxu0 0.0
    %68 = vmatpush1.msra.mxu0 0.0
    %69 = vmatprep.subr.mxu0 0.0
    %70 = vmatpush1.msra.mxu0 0.0
    %71 = vmatprep.subr.mxu0 0.0
    %72 = vmatpush1.msra.mxu0 0.0
    %73 = vmatprep.subr.mxu0 0.0
    %74 = vmatpush1.msra.mxu0 0.0
    %75 = vmatprep.subr.mxu0 0.0
    %76 = vmatpush1.msra.mxu0 0.0
    %77 = vmatprep.subr.mxu0 0.0
    %78 = vmatpush1.msra.mxu0 0.0
    %79 = vmatprep.subr.mxu0 0.0
    %80 = vmatpush1.msra.mxu0 0.0
    %81 = vmatprep.subr.mxu0 0.0
    %82 = vmatpush1.msra.mxu0 0.0
    %83 = vmatprep.subr.mxu0 0.0
    %84 = vmatpush1.msra.mxu0 0.0
    %85 = vmatprep.subr.mxu0 0.0
    %86 = vmatpush1.msra.mxu0 0.0
    %87 = vmatprep.subr.mxu0 0.0
    %88 = vmatpush1.msra.mxu0 0.0
    %89 = vmatprep.subr.mxu0 0.0
    %90 = vmatpush1.msra.mxu0 0.0
    %91 = vmatprep.subr.mxu0 0.0
    %92 = vmatpush1.msra.mxu0 0.0
    %93 = vmatprep.subr.mxu0 0.0
    %94 = vmatpush1.msra.mxu0 0.0
    %95 = vmatprep.subr.mxu0 0.0
    %96 = vmatpush1.msra.mxu0 0.0
    %97 = vmatprep.subr.mxu0 0.0
    %98 = vmatpush1.msra.mxu0 0.0
    %99 = vmatprep.subr.mxu0 0.0
    %100 = vmatpush1.msra.mxu0 0.0
    %101 = vmatprep.subr.mxu0 0.0
    %102 = vmatpush1.msra.mxu0 0.0
    %103 = vmatprep.subr.mxu0 0.0
    %104 = vmatpush1.msra.mxu0 0.0
    %105 = vmatprep.subr.mxu0 0.0
    %106 = vmatpush1.msra.mxu0 0.0
    %107 = vmatprep.subr.mxu0 0.0
    %108 = vmatpush1.msra.mxu0 0.0
    %109 = vmatprep.subr.mxu0 0.0
    %110 = vmatpush1.msra.mxu0 0.0
    %111 = vmatprep.subr.mxu0 0.0
    %112 = vmatpush1.msra.mxu0 0.0
    %113 = vmatprep.subr.mxu0 0.0
    %114 = vmatpush1.msra.mxu0 0.0
    %115 = vmatprep.subr.mxu0 0.0
    %116 = vmatpush1.msra.mxu0 0.0
    %117 = vmatprep.subr.mxu0 0.0
    %118 = vmatpush1.msra.mxu0 0.0
    %119 = vmatprep.subr.mxu0 0.0
    %120 = vmatpush1.msra.mxu0 0.0
    %121 = vmatprep.subr.mxu0 0.0
    %122 = vmatpush1.msra.mxu0 0.0
    %123 = vmatprep.subr.mxu0 0.0
    %124 = vmatpush1.msra.mxu0 0.0
    %125 = vmatprep.mubr.f32.mxu0 0.0
    %v126 = vand.u32 %v44, 4294901760
    %v127 = vsub.f32 %v44, %v126
    %v128 = vand.u32 %v127, 4294901760
    %v129 = vsub.f32 %v127, %v128
    %v130 = vand.u32 %v129, 4294901760
    %131 = vmatmul.mubr.f32.gmra.mrb[0].mxu0 %v130
    %v132 = vpop.f32.mrb[0].mxu0
    %v133 = vadd.f32 %v25, %v132
    %v134 = vpop.f32.mrb[0].mxu0
    %135 = vmatprep.mubr.f32.mxu0 0.0
    %v136 = vand.u32 %v47, 4294901760
    %v137 = vsub.f32 %v47, %v136
    %v138 = vand.u32 %v137, 4294901760
    %v139 = vsub.f32 %v137, %v138
    %v140 = vand.u32 %v139, 4294901760
    %141 = vmatmul.mubr.f32.gmra.mrb[0].mxu0 %v140
    %v142 = vpop.f32.mrb[0].mxu0
    %v143 = vadd.f32 %v30, %v142
    %v144 = vpop.f32.mrb[0].mxu0
    %145 = vmatprep.mubr.f32.mxu0 0.0
    %v146 = vand.u32 %v50, 4294901760
    %v147 = vsub.f32 %v50, %v146
    %v148 = vand.u32 %v147, 4294901760
    %v149 = vsub.f32 %v147, %v148
    %v150 = vand.u32 %v149, 4294901760
    %151 = vmatmul.mubr.f32.gmra.mrb[0].mxu0 %v150
    %v152 = vpop.f32.mrb[0].mxu0
    %v153 = vadd.f32 %v35, %v152
    %v154 = vpop.f32.mrb[0].mxu0
    %155 = vmatprep.mubr.f32.mxu0 0.0
    %v156 = vand.u32 %v53, 4294901760
    %v157 = vsub.f32 %v53, %v156
    %v158 = vand.u32 %v157, 4294901760
    %v159 = vsub.f32 %v157, %v158
    %v160 = vand.u32 %v159, 4294901760
    %161 = vmatmul.mubr.f32.gmra.mrb[0].mxu0 %v160
    %v162 = vpop.f32.mrb[0].mxu0
    %v163 = vadd.f32 %v40, %v162
    %v164 = vpop.f32.mrb[0].mxu0
    %165 = vdwg.mxu0
    %166 = vmatprep.subr.mxu0 0.0
    %v167 = vand.u32 %v12, 4294901760
    %v168 = vsub.f32 %v12, %v167
    %v169 = vand.u32 %v168, 4294901760
    %v170 = vsub.f32 %v168, %v169
    %v171 = vand.u32 %v170, 4294901760
    %172 = vmatpush1.msra.mxu0 %v171
    %173 = vmatprep.subr.mxu0 0.0
    %v174 = vand.u32 %v57, 4294901760
    %v175 = vsub.f32 %v57, %v174
    %v176 = vand.u32 %v175, 4294901760
    %v177 = vsub.f32 %v175, %v176
    %v178 = vand.u32 %v177, 4294901760
    %179 = vmatpush1.msra.mxu0 %v178
    %180 = vmatprep.subr.mxu0 0.0
    %181 = vmatpush1.msra.mxu0 0.0
    %182 = vmatprep.subr.mxu0 0.0
    %183 = vmatpush1.msra.mxu0 0.0
    %184 = vmatprep.subr.mxu0 0.0
    %185 = vmatpush1.msra.mxu0 0.0
    %186 = vmatprep.subr.mxu0 0.0
    %187 = vmatpush1.msra.mxu0 0.0
    %188 = vmatprep.subr.mxu0 0.0
    %189 = vmatpush1.msra.mxu0 0.0
    %190 = vmatprep.subr.mxu0 0.0
    %191 = vmatpush1.msra.mxu0 0.0
    %192 = vmatprep.subr.mxu0 0.0
    %193 = vmatpush1.msra.mxu0 0.0
    %194 = vmatprep.subr.mxu0 0.0
    %195 = vmatpush1.msra.mxu0 0.0
    %196 = vmatprep.subr.mxu0 0.0
    %197 = vmatpush1.msra.mxu0 0.0
    %198 = vmatprep.subr.mxu0 0.0
    %199 = vmatpush1.msra.mxu0 0.0
    %200 = vmatprep.subr.mxu0 0.0
    %201 = vmatpush1.msra.mxu0 0.0
    %202 = vmatprep.subr.mxu0 0.0
    %203 = vmatpush1.msra.mxu0 0.0
    %204 = vmatprep.subr.mxu0 0.0
    %205 = vmatpush1.msra.mxu0 0.0
    %206 = vmatprep.subr.mxu0 0.0
    %207 = vmatpush1.msra.mxu0 0.0
    %208 = vmatprep.subr.mxu0 0.0
    %209 = vmatpush1.msra.mxu0 0.0
    %210 = vmatprep.subr.mxu0 0.0
    %211 = vmatpush1.msra.mxu0 0.0
    %212 = vmatprep.subr.mxu0 0.0
    %213 = vmatpush1.msra.mxu0 0.0
    %214 = vmatprep.subr.mxu0 0.0
    %215 = vmatpush1.msra.mxu0 0.0
    %216 = vmatprep.subr.mxu0 0.0
    %217 = vmatpush1.msra.mxu0 0.0
    %218 = vmatprep.subr.mxu0 0.0
    %219 = vmatpush1.msra.mxu0 0.0
    %220 = vmatprep.subr.mxu0 0.0
    %221 = vmatpush1.msra.mxu0 0.0
    %222 = vmatprep.subr.mxu0 0.0
    %223 = vmatpush1.msra.mxu0 0.0
    %224 = vmatprep.subr.mxu0 0.0
    %225 = vmatpush1.msra.mxu0 0.0
    %226 = vmatprep.subr.mxu0 0.0
    %227 = vmatpush1.msra.mxu0 0.0
    %228 = vmatprep.subr.mxu0 0.0
    %229 = vmatpush1.msra.mxu0 0.0
    %230 = vmatprep.subr.mxu0 0.0
    %231 = vmatpush1.msra.mxu0 0.0
    %232 = vmatprep.subr.mxu0 0.0
    %233 = vmatpush1.msra.mxu0 0.0
    %234 = vmatprep.subr.mxu0 0.0
    %235 = vmatpush1.msra.mxu0 0.0
    %236 = vmatprep.subr.mxu0 0.0
    %237 = vmatpush1.msra.mxu0 0.0
    %238 = vmatprep.subr.mxu0 0.0
    %239 = vmatpush1.msra.mxu0 0.0
    %240 = vmatprep.mubr.f32.mxu0 0.0
    %v241 = vand.u32 %v44, 4294901760
    %242 = vmatmul.mubr.f32.gmra.mrb[0].mxu0 %v241
    %v243 = vpop.f32.mrb[0].mxu0
    %v244 = vadd.f32 %v133, %v243
    %v245 = vpop.f32.mrb[0].mxu0
    %246 = vmatprep.mubr.f32.mxu0 0.0
    %v247 = vand.u32 %v47, 4294901760
    %248 = vmatmul.mubr.f32.gmra.mrb[0].mxu0 %v247
    %v249 = vpop.f32.mrb[0].mxu0
    %v250 = vadd.f32 %v143, %v249
    %v251 = vpop.f32.mrb[0].mxu0
    %252 = vmatprep.mubr.f32.mxu0 0.0
    %v253 = vand.u32 %v50, 4294901760
    %254 = vmatmul.mubr.f32.gmra.mrb[0].mxu0 %v253
    %v255 = vpop.f32.mrb[0].mxu0
    %v256 = vadd.f32 %v153, %v255
    %v257 = vpop.f32.mrb[0].mxu0
    %258 = vmatprep.mubr.f32.mxu0 0.0
    %v259 = vand.u32 %v53, 4294901760
    %260 = vmatmul.mubr.f32.gmra.mrb[0].mxu0 %v259
    %v261 = vpop.f32.mrb[0].mxu0
    %v262 = vadd.f32 %v163, %v261
    %v263 = vpop.f32.mrb[0].mxu0
    %264 = vdwg.mxu0
    %265 = vmatprep.subr.mxu0 0.0
    %v266 = vand.u32 %v12, 4294901760
    %v267 = vsub.f32 %v12, %v266
    %268 = vmatpush1.msra.mxu0 %v267
    %269 = vmatprep.subr.mxu0 0.0
    %v270 = vand.u32 %v57, 4294901760
    %v271 = vsub.f32 %v57, %v270
    %272 = vmatpush1.msra.mxu0 %v271
    %273 = vmatprep.subr.mxu0 0.0
    %274 = vmatpush1.msra.mxu0 0.0
    %275 = vmatprep.subr.mxu0 0.0
    %276 = vmatpush1.msra.mxu0 0.0
    %277 = vmatprep.subr.mxu0 0.0
    %278 = vmatpush1.msra.mxu0 0.0
    %279 = vmatprep.subr.mxu0 0.0
    %280 = vmatpush1.msra.mxu0 0.0
    %281 = vmatprep.subr.mxu0 0.0
    %282 = vmatpush1.msra.mxu0 0.0
    %283 = vmatprep.subr.mxu0 0.0
    %284 = vmatpush1.msra.mxu0 0.0
    %285 = vmatprep.subr.mxu0 0.0
    %286 = vmatpush1.msra.mxu0 0.0
    %287 = vmatprep.subr.mxu0 0.0
    %288 = vmatpush1.msra.mxu0 0.0
    %289 = vmatprep.subr.mxu0 0.0
    %290 = vmatpush1.msra.mxu0 0.0
    %291 = vmatprep.subr.mxu0 0.0
    %292 = vmatpush1.msra.mxu0 0.0
    %293 = vmatprep.subr.mxu0 0.0
    %294 = vmatpush1.msra.mxu0 0.0
    %295 = vmatprep.subr.mxu0 0.0
    %296 = vmatpush1.msra.mxu0 0.0
    %297 = vmatprep.subr.mxu0 0.0
    %298 = vmatpush1.msra.mxu0 0.0
    %299 = vmatprep.subr.mxu0 0.0
    %300 = vmatpush1.msra.mxu0 0.0
    %301 = vmatprep.subr.mxu0 0.0
    %302 = vmatpush1.msra.mxu0 0.0
    %303 = vmatprep.subr.mxu0 0.0
    %304 = vmatpush1.msra.mxu0 0.0
    %305 = vmatprep.subr.mxu0 0.0
    %306 = vmatpush1.msra.mxu0 0.0
    %307 = vmatprep.subr.mxu0 0.0
    %308 = vmatpush1.msra.mxu0 0.0
    %309 = vmatprep.subr.mxu0 0.0
    %310 = vmatpush1.msra.mxu0 0.0
    %311 = vmatprep.subr.mxu0 0.0
    %312 = vmatpush1.msra.mxu0 0.0
    %313 = vmatprep.subr.mxu0 0.0
    %314 = vmatpush1.msra.mxu0 0.0
    %315 = vmatprep.subr.mxu0 0.0
    %316 = vmatpush1.msra.mxu0 0.0
    %317 = vmatprep.subr.mxu0 0.0
    %318 = vmatpush1.msra.mxu0 0.0
    %319 = vmatprep.subr.mxu0 0.0
    %320 = vmatpush1.msra.mxu0 0.0
    %321 = vmatprep.subr.mxu0 0.0
    %322 = vmatpush1.msra.mxu0 0.0
    %323 = vmatprep.subr.mxu0 0.0
    %324 = vmatpush1.msra.mxu0 0.0
    %325 = vmatprep.subr.mxu0 0.0
    %326 = vmatpush1.msra.mxu0 0.0
    %327 = vmatprep.subr.mxu0 0.0
    %328 = vmatpush1.msra.mxu0 0.0
    %329 = vmatprep.subr.mxu0 0.0
    %330 = vmatpush1.msra.mxu0 0.0
    %331 = vmatprep.subr.mxu0 0.0
    %332 = vmatpush1.msra.mxu0 0.0
    %333 = vmatprep.mubr.f32.mxu0 0.0
    %v334 = vand.u32 %v44, 4294901760
    %v335 = vsub.f32 %v44, %v334
    %336 = vmatmul.mubr.f32.gmra.mrb[0].mxu0 %v335
    %v337 = vpop.f32.mrb[0].mxu0
    %v338 = vadd.f32 %v244, %v337
    %v339 = vpop.f32.mrb[0].mxu0
    %340 = vmatprep.mubr.f32.mxu0 0.0
    %v341 = vand.u32 %v47, 4294901760
    %v342 = vsub.f32 %v47, %v341
    %343 = vmatmul.mubr.f32.gmra.mrb[0].mxu0 %v342
    %v344 = vpop.f32.mrb[0].mxu0
    %v345 = vadd.f32 %v250, %v344
    %v346 = vpop.f32.mrb[0].mxu0
    %347 = vmatprep.mubr.f32.mxu0 0.0
    %v348 = vand.u32 %v50, 4294901760
    %v349 = vsub.f32 %v50, %v348
    %350 = vmatmul.mubr.f32.gmra.mrb[0].mxu0 %v349
    %v351 = vpop.f32.mrb[0].mxu0
    %v352 = vadd.f32 %v256, %v351
    %v353 = vpop.f32.mrb[0].mxu0
    %354 = vmatprep.mubr.f32.mxu0 0.0
    %v355 = vand.u32 %v53, 4294901760
    %v356 = vsub.f32 %v53, %v355
    %357 = vmatmul.mubr.f32.gmra.mrb[0].mxu0 %v356
    %v358 = vpop.f32.mrb[0].mxu0
    %v359 = vadd.f32 %v262, %v358
    %v360 = vpop.f32.mrb[0].mxu0
    %361 = vdwg.mxu0
    %362 = vmatprep.subr.mxu0 0.0
    %v363 = vand.u32 %v12, 4294901760
    %364 = vmatpush1.msra.mxu0 %v363
    %365 = vmatprep.subr.mxu0 0.0
    %v366 = vand.u32 %v57, 4294901760
    %367 = vmatpush1.msra.mxu0 %v366
    %368 = vmatprep.subr.mxu0 0.0
    %369 = vmatpush1.msra.mxu0 0.0
    %370 = vmatprep.subr.mxu0 0.0
    %371 = vmatpush1.msra.mxu0 0.0
    %372 = vmatprep.subr.mxu0 0.0
    %373 = vmatpush1.msra.mxu0 0.0
    %374 = vmatprep.subr.mxu0 0.0
    %375 = vmatpush1.msra.mxu0 0.0
    %376 = vmatprep.subr.mxu0 0.0
    %377 = vmatpush1.msra.mxu0 0.0
    %378 = vmatprep.subr.mxu0 0.0
    %379 = vmatpush1.msra.mxu0 0.0
    %380 = vmatprep.subr.mxu0 0.0
    %381 = vmatpush1.msra.mxu0 0.0
    %382 = vmatprep.subr.mxu0 0.0
    %383 = vmatpush1.msra.mxu0 0.0
    %384 = vmatprep.subr.mxu0 0.0
    %385 = vmatpush1.msra.mxu0 0.0
    %386 = vmatprep.subr.mxu0 0.0
    %387 = vmatpush1.msra.mxu0 0.0
    %388 = vmatprep.subr.mxu0 0.0
    %389 = vmatpush1.msra.mxu0 0.0
    %390 = vmatprep.subr.mxu0 0.0
    %391 = vmatpush1.msra.mxu0 0.0
    %392 = vmatprep.subr.mxu0 0.0
    %393 = vmatpush1.msra.mxu0 0.0
    %394 = vmatprep.subr.mxu0 0.0
    %395 = vmatpush1.msra.mxu0 0.0
    %396 = vmatprep.subr.mxu0 0.0
    %397 = vmatpush1.msra.mxu0 0.0
    %398 = vmatprep.subr.mxu0 0.0
    %399 = vmatpush1.msra.mxu0 0.0
    %400 = vmatprep.subr.mxu0 0.0
    %401 = vmatpush1.msra.mxu0 0.0
    %402 = vmatprep.subr.mxu0 0.0
    %403 = vmatpush1.msra.mxu0 0.0
    %404 = vmatprep.subr.mxu0 0.0
    %405 = vmatpush1.msra.mxu0 0.0
    %406 = vmatprep.subr.mxu0 0.0
    %407 = vmatpush1.msra.mxu0 0.0
    %408 = vmatprep.subr.mxu0 0.0
    %409 = vmatpush1.msra.mxu0 0.0
    %410 = vmatprep.subr.mxu0 0.0
    %411 = vmatpush1.msra.mxu0 0.0
    %412 = vmatprep.subr.mxu0 0.0
    %413 = vmatpush1.msra.mxu0 0.0
    %414 = vmatprep.subr.mxu0 0.0
    %415 = vmatpush1.msra.mxu0 0.0
    %416 = vmatprep.subr.mxu0 0.0
    %417 = vmatpush1.msra.mxu0 0.0
    %418 = vmatprep.subr.mxu0 0.0
    %419 = vmatpush1.msra.mxu0 0.0
    %420 = vmatprep.subr.mxu0 0.0
    %421 = vmatpush1.msra.mxu0 0.0
    %422 = vmatprep.subr.mxu0 0.0
    %423 = vmatpush1.msra.mxu0 0.0
    %424 = vmatprep.subr.mxu0 0.0
    %425 = vmatpush1.msra.mxu0 0.0
    %426 = vmatprep.subr.mxu0 0.0
    %427 = vmatpush1.msra.mxu0 0.0
    %428 = vmatprep.mubr.f32.mxu0 0.0
    %v429 = vand.u32 %v44, 4294901760
    %v430 = vsub.f32 %v44, %v429
    %v431 = vand.u32 %v430, 4294901760
    %432 = vmatmul.mubr.f32.gmra.mrb[0].mxu0 %v431
    %v433 = vpop.f32.mrb[0].mxu0
    %v434 = vadd.f32 %v338, %v433
    %v435 = vpop.f32.mrb[0].mxu0
    %436 = vmatprep.mubr.f32.mxu0 0.0
    %v437 = vand.u32 %v47, 4294901760
    %v438 = vsub.f32 %v47, %v437
    %v439 = vand.u32 %v438, 4294901760
    %440 = vmatmul.mubr.f32.gmra.mrb[0].mxu0 %v439
    %v441 = vpop.f32.mrb[0].mxu0
    %v442 = vadd.f32 %v345, %v441
    %v443 = vpop.f32.mrb[0].mxu0
    %444 = vmatprep.mubr.f32.mxu0 0.0
    %v445 = vand.u32 %v50, 4294901760
    %v446 = vsub.f32 %v50, %v445
    %v447 = vand.u32 %v446, 4294901760
    %448 = vmatmul.mubr.f32.gmra.mrb[0].mxu0 %v447
    %v449 = vpop.f32.mrb[0].mxu0
    %v450 = vadd.f32 %v352, %v449
    %v451 = vpop.f32.mrb[0].mxu0
    %452 = vmatprep.mubr.f32.mxu0 0.0
    %v453 = vand.u32 %v53, 4294901760
    %v454 = vsub.f32 %v53, %v453
    %v455 = vand.u32 %v454, 4294901760
    %456 = vmatmul.mubr.f32.gmra.mrb[0].mxu0 %v455
    %v457 = vpop.f32.mrb[0].mxu0
    %v458 = vadd.f32 %v359, %v457
    %v459 = vpop.f32.mrb[0].mxu0
    %460 = vdwg.mxu0
    %461 = vmatprep.subr.mxu0 0.0
    %v462 = vand.u32 %v12, 4294901760
    %v463 = vsub.f32 %v12, %v462
    %v464 = vand.u32 %v463, 4294901760
    %465 = vmatpush1.msra.mxu0 %v464
    %466 = vmatprep.subr.mxu0 0.0
    %v467 = vand.u32 %v57, 4294901760
    %v468 = vsub.f32 %v57, %v467
    %v469 = vand.u32 %v468, 4294901760
    %470 = vmatpush1.msra.mxu0 %v469
    %471 = vmatprep.subr.mxu0 0.0
    %472 = vmatpush1.msra.mxu0 0.0
    %473 = vmatprep.subr.mxu0 0.0
    %474 = vmatpush1.msra.mxu0 0.0
    %475 = vmatprep.subr.mxu0 0.0
    %476 = vmatpush1.msra.mxu0 0.0
    %477 = vmatprep.subr.mxu0 0.0
    %478 = vmatpush1.msra.mxu0 0.0
    %479 = vmatprep.subr.mxu0 0.0
    %480 = vmatpush1.msra.mxu0 0.0
    %481 = vmatprep.subr.mxu0 0.0
    %482 = vmatpush1.msra.mxu0 0.0
    %483 = vmatprep.subr.mxu0 0.0
    %484 = vmatpush1.msra.mxu0 0.0
    %485 = vmatprep.subr.mxu0 0.0
    %486 = vmatpush1.msra.mxu0 0.0
    %487 = vmatprep.subr.mxu0 0.0
    %488 = vmatpush1.msra.mxu0 0.0
    %489 = vmatprep.subr.mxu0 0.0
    %490 = vmatpush1.msra.mxu0 0.0
    %491 = vmatprep.subr.mxu0 0.0
    %492 = vmatpush1.msra.mxu0 0.0
    %493 = vmatprep.subr.mxu0 0.0
    %494 = vmatpush1.msra.mxu0 0.0
    %495 = vmatprep.subr.mxu0 0.0
    %496 = vmatpush1.msra.mxu0 0.0
    %497 = vmatprep.subr.mxu0 0.0
    %498 = vmatpush1.msra.mxu0 0.0
    %499 = vmatprep.subr.mxu0 0.0
    %500 = vmatpush1.msra.mxu0 0.0
    %501 = vmatprep.subr.mxu0 0.0
    %502 = vmatpush1.msra.mxu0 0.0
    %503 = vmatprep.subr.mxu0 0.0
    %504 = vmatpush1.msra.mxu0 0.0
    %505 = vmatprep.subr.mxu0 0.0
    %506 = vmatpush1.msra.mxu0 0.0
    %507 = vmatprep.subr.mxu0 0.0
    %508 = vmatpush1.msra.mxu0 0.0
    %509 = vmatprep.subr.mxu0 0.0
    %510 = vmatpush1.msra.mxu0 0.0
    %511 = vmatprep.subr.mxu0 0.0
    %512 = vmatpush1.msra.mxu0 0.0
    %513 = vmatprep.subr.mxu0 0.0
    %514 = vmatpush1.msra.mxu0 0.0
    %515 = vmatprep.subr.mxu0 0.0
    %516 = vmatpush1.msra.mxu0 0.0
    %517 = vmatprep.subr.mxu0 0.0
    %518 = vmatpush1.msra.mxu0 0.0
    %519 = vmatprep.subr.mxu0 0.0
    %520 = vmatpush1.msra.mxu0 0.0
    %521 = vmatprep.subr.mxu0 0.0
    %522 = vmatpush1.msra.mxu0 0.0
    %523 = vmatprep.subr.mxu0 0.0
    %524 = vmatpush1.msra.mxu0 0.0
    %525 = vmatprep.subr.mxu0 0.0
    %526 = vmatpush1.msra.mxu0 0.0
    %527 = vmatprep.subr.mxu0 0.0
    %528 = vmatpush1.msra.mxu0 0.0
    %529 = vmatprep.subr.mxu0 0.0
    %530 = vmatpush1.msra.mxu0 0.0
    %531 = vmatprep.mubr.f32.mxu0 0.0
    %v532 = vand.u32 %v44, 4294901760
    %533 = vmatmul.mubr.f32.gmra.mrb[0].mxu0 %v532
    %v534 = vpop.f32.mrb[0].mxu0
    %v535 = vadd.f32 %v434, %v534
    %v536 = vpop.f32.mrb[0].mxu0
    %537 = vmatprep.mubr.f32.mxu0 0.0
    %v538 = vand.u32 %v47, 4294901760
    %539 = vmatmul.mubr.f32.gmra.mrb[0].mxu0 %v538
    %v540 = vpop.f32.mrb[0].mxu0
    %v541 = vadd.f32 %v442, %v540
    %v542 = vpop.f32.mrb[0].mxu0
    %543 = vmatprep.mubr.f32.mxu0 0.0
    %v544 = vand.u32 %v50, 4294901760
    %545 = vmatmul.mubr.f32.gmra.mrb[0].mxu0 %v544
    %v546 = vpop.f32.mrb[0].mxu0
    %v547 = vadd.f32 %v450, %v546
    %v548 = vpop.f32.mrb[0].mxu0
    %549 = vmatprep.mubr.f32.mxu0 0.0
    %v550 = vand.u32 %v53, 4294901760
    %551 = vmatmul.mubr.f32.gmra.mrb[0].mxu0 %v550
    %v552 = vpop.f32.mrb[0].mxu0
    %v553 = vadd.f32 %v458, %v552
    %v554 = vpop.f32.mrb[0].mxu0
    %555 = vdwg.mxu0
    %556 = vmatprep.subr.mxu0 0.0
    %v557 = vand.u32 %v12, 4294901760
    %558 = vmatpush1.msra.mxu0 %v557
    %559 = vmatprep.subr.mxu0 0.0
    %v560 = vand.u32 %v57, 4294901760
    %561 = vmatpush1.msra.mxu0 %v560
    %562 = vmatprep.subr.mxu0 0.0
    %563 = vmatpush1.msra.mxu0 0.0
    %564 = vmatprep.subr.mxu0 0.0
    %565 = vmatpush1.msra.mxu0 0.0
    %566 = vmatprep.subr.mxu0 0.0
    %567 = vmatpush1.msra.mxu0 0.0
    %568 = vmatprep.subr.mxu0 0.0
    %569 = vmatpush1.msra.mxu0 0.0
    %570 = vmatprep.subr.mxu0 0.0
    %571 = vmatpush1.msra.mxu0 0.0
    %572 = vmatprep.subr.mxu0 0.0
    %573 = vmatpush1.msra.mxu0 0.0
    %574 = vmatprep.subr.mxu0 0.0
    %575 = vmatpush1.msra.mxu0 0.0
    %576 = vmatprep.subr.mxu0 0.0
    %577 = vmatpush1.msra.mxu0 0.0
    %578 = vmatprep.subr.mxu0 0.0
    %579 = vmatpush1.msra.mxu0 0.0
    %580 = vmatprep.subr.mxu0 0.0
    %581 = vmatpush1.msra.mxu0 0.0
    %582 = vmatprep.subr.mxu0 0.0
    %583 = vmatpush1.msra.mxu0 0.0
    %584 = vmatprep.subr.mxu0 0.0
    %585 = vmatpush1.msra.mxu0 0.0
    %586 = vmatprep.subr.mxu0 0.0
    %587 = vmatpush1.msra.mxu0 0.0
    %588 = vmatprep.subr.mxu0 0.0
    %589 = vmatpush1.msra.mxu0 0.0
    %590 = vmatprep.subr.mxu0 0.0
    %591 = vmatpush1.msra.mxu0 0.0
    %592 = vmatprep.subr.mxu0 0.0
    %593 = vmatpush1.msra.mxu0 0.0
    %594 = vmatprep.subr.mxu0 0.0
    %595 = vmatpush1.msra.mxu0 0.0
    %596 = vmatprep.subr.mxu0 0.0
    %597 = vmatpush1.msra.mxu0 0.0
    %598 = vmatprep.subr.mxu0 0.0
    %599 = vmatpush1.msra.mxu0 0.0
    %600 = vmatprep.subr.mxu0 0.0
    %601 = vmatpush1.msra.mxu0 0.0
    %602 = vmatprep.subr.mxu0 0.0
    %603 = vmatpush1.msra.mxu0 0.0
    %604 = vmatprep.subr.mxu0 0.0
    %605 = vmatpush1.msra.mxu0 0.0
    %606 = vmatprep.subr.mxu0 0.0
    %607 = vmatpush1.msra.mxu0 0.0
    %608 = vmatprep.subr.mxu0 0.0
    %609 = vmatpush1.msra.mxu0 0.0
    %610 = vmatprep.subr.mxu0 0.0
    %611 = vmatpush1.msra.mxu0 0.0
    %612 = vmatprep.subr.mxu0 0.0
    %613 = vmatpush1.msra.mxu0 0.0
    %614 = vmatprep.subr.mxu0 0.0
    %615 = vmatpush1.msra.mxu0 0.0
    %616 = vmatprep.subr.mxu0 0.0
    %617 = vmatpush1.msra.mxu0 0.0
    %618 = vmatprep.subr.mxu0 0.0
    %619 = vmatpush1.msra.mxu0 0.0
    %620 = vmatprep.subr.mxu0 0.0
    %621 = vmatpush1.msra.mxu0 0.0
    %622 = vmatprep.mubr.f32.mxu0 0.0
    %v623 = vand.u32 %v44, 4294901760
    %624 = vmatmul.mubr.f32.gmra.mrb[0].mxu0 %v623
    %v625 = vpop.f32.mrb[0].mxu0
    %v626 = vadd.f32 %v535, %v625
    %v627 = vpop.f32.mrb[0].mxu0
    %628 = vmatprep.mubr.f32.mxu0 0.0
    %v629 = vand.u32 %v47, 4294901760
    %630 = vmatmul.mubr.f32.gmra.mrb[0].mxu0 %v629
    %v631 = vpop.f32.mrb[0].mxu0
    %v632 = vadd.f32 %v541, %v631
    %v633 = vpop.f32.mrb[0].mxu0
    %634 = vmatprep.mubr.f32.mxu0 0.0
    %v635 = vand.u32 %v50, 4294901760
    %636 = vmatmul.mubr.f32.gmra.mrb[0].mxu0 %v635
    %v637 = vpop.f32.mrb[0].mxu0
    %v638 = vadd.f32 %v547, %v637
    %v639 = vpop.f32.mrb[0].mxu0
    %640 = vmatprep.mubr.f32.mxu0 0.0
    %v641 = vand.u32 %v53, 4294901760
    %642 = vmatmul.mubr.f32.gmra.mrb[0].mxu0 %v641
    %v643 = vpop.f32.mrb[0].mxu0
    %v644 = vadd.f32 %v553, %v643
    %v645 = vpop.f32.mrb[0].mxu0
    %646 = vdwg.mxu0
    %v647 = vmax.f32 %v626, 0.0
    %v648 = vmax.f32 %v632, 0.0
    %v649 = vmax.f32 %v638, 0.0
    %v650 = vmax.f32 %v644, 0.0
    %v651 = vld [vmem:[%s1 + $0x40] sm:$0xff]
    %v652 = vld [vmem:[%s1 + $0x48] sm:$0xff]
    %v653 = vld [vmem:[%s1 + $0x50] sm:$0xff]
    %v654 = vld [vmem:[%s1 + $0x58] sm:$0xff]
    %v655 = vld [vmem:[%s1 + $0x60] sm:$0xff]
    %v656 = vld [vmem:[%s1 + $0x68] sm:$0xff]
    %v657 = vld [vmem:[%s1 + $0x70] sm:$0xff]
    %v658 = vld [vmem:[%s1 + $0x78] sm:$0xff]
    %660 = vset.pattern.permute.xlu0 0
    %661 = vperm.xlu0 %660, %v655
    %v662 = vpop.permute.xlu0 %661
    %665 = vset.pattern.permute.xlu0 0
    %666 = vperm.xlu0 %665, %v656
    %v667 = vpop.permute.xlu0 %666
    %670 = vset.pattern.permute.xlu0 0
    %671 = vperm.xlu0 %670, %v657
    %v672 = vpop.permute.xlu0 %671
    %675 = vset.pattern.permute.xlu0 0
    %676 = vperm.xlu0 %675, %v658
    %v677 = vpop.permute.xlu0 %676
    %vm679 = vcmask 261120
    %v681 = vsel %vm679, %v651, 0
    %v684 = vsel %vm679, %v652, 0
    %v687 = vsel %vm679, %v653, 0
    %v690 = vsel %vm679, %v654, 0
    %692 = vmatprep.subr.mxu0 0.0
    %v693 = vand.u32 %v647, 4294901760
    %694 = vmatpush1.msra.mxu0 %v693
    %695 = vmatprep.subr.mxu0 0.0
    %v696 = vand.u32 %v648, 4294901760
    %697 = vmatpush1.msra.mxu0 %v696
    %698 = vmatprep.subr.mxu0 0.0
    %v699 = vand.u32 %v649, 4294901760
    %700 = vmatpush1.msra.mxu0 %v699
    %701 = vmatprep.subr.mxu0 0.0
    %v702 = vand.u32 %v650, 4294901760
    %703 = vmatpush1.msra.mxu0 %v702
    %704 = vmatprep.subr.mxu0 0.0
    %705 = vmatpush1.msra.mxu0 0.0
    %706 = vmatprep.subr.mxu0 0.0
    %707 = vmatpush1.msra.mxu0 0.0
    %708 = vmatprep.subr.mxu0 0.0
    %709 = vmatpush1.msra.mxu0 0.0
    %710 = vmatprep.subr.mxu0 0.0
    %711 = vmatpush1.msra.mxu0 0.0
    %712 = vmatprep.subr.mxu0 0.0
    %713 = vmatpush1.msra.mxu0 0.0
    %714 = vmatprep.subr.mxu0 0.0
    %715 = vmatpush1.msra.mxu0 0.0
    %716 = vmatprep.subr.mxu0 0.0
    %717 = vmatpush1.msra.mxu0 0.0
    %718 = vmatprep.subr.mxu0 0.0
    %719 = vmatpush1.msra.mxu0 0.0
    %720 = vmatprep.subr.mxu0 0.0
    %721 = vmatpush1.msra.mxu0 0.0
    %722 = vmatprep.subr.mxu0 0.0
    %723 = vmatpush1.msra.mxu0 0.0
    %724 = vmatprep.subr.mxu0 0.0
    %725 = vmatpush1.msra.mxu0 0.0
    %726 = vmatprep.subr.mxu0 0.0
    %727 = vmatpush1.msra.mxu0 0.0
    %728 = vmatprep.subr.mxu0 0.0
    %729 = vmatpush1.msra.mxu0 0.0
    %730 = vmatprep.subr.mxu0 0.0
    %731 = vmatpush1.msra.mxu0 0.0
    %732 = vmatprep.subr.mxu0 0.0
    %733 = vmatpush1.msra.mxu0 0.0
    %734 = vmatprep.subr.mxu0 0.0
    %735 = vmatpush1.msra.mxu0 0.0
    %736 = vmatprep.subr.mxu0 0.0
    %737 = vmatpush1.msra.mxu0 0.0
    %738 = vmatprep.subr.mxu0 0.0
    %739 = vmatpush1.msra.mxu0 0.0
    %740 = vmatprep.subr.mxu0 0.0
    %741 = vmatpush1.msra.mxu0 0.0
    %742 = vmatprep.subr.mxu0 0.0
    %743 = vmatpush1.msra.mxu0 0.0
    %744 = vmatprep.subr.mxu0 0.0
    %745 = vmatpush1.msra.mxu0 0.0
    %746 = vmatprep.subr.mxu0 0.0
    %747 = vmatpush1.msra.mxu0 0.0
    %748 = vmatprep.subr.mxu0 0.0
    %749 = vmatpush1.msra.mxu0 0.0
    %750 = vmatprep.subr.mxu0 0.0
    %751 = vmatpush1.msra.mxu0 0.0
    %752 = vmatprep.subr.mxu0 0.0
    %753 = vmatpush1.msra.mxu0 0.0
    %754 = vmatprep.subr.mxu0 0.0
    %755 = vmatpush1.msra.mxu0 0.0
    %756 = vmatprep.subr.mxu0 0.0
    %757 = vmatpush1.msra.mxu0 0.0
    %758 = vmatprep.subr.mxu0 0.0
    %759 = vmatpush1.msra.mxu0 0.0
    %760 = vmatprep.mubr.f32.mxu0 0.0
    %v761 = vand.u32 %v681, 4294901760
    %v762 = vsub.f32 %v681, %v761
    %v763 = vand.u32 %v762, 4294901760
    %v764 = vsub.f32 %v762, %v763
    %v765 = vand.u32 %v764, 4294901760
    %766 = vmatmul.mubr.f32.gmra.mrb[0].mxu0 %v765
    %v767 = vpop.f32.mrb[0].mxu0
    %v768 = vadd.f32 %v662, %v767
    %v769 = vpop.f32.mrb[0].mxu0
    %770 = vmatprep.mubr.f32.mxu0 0.0
    %v771 = vand.u32 %v684, 4294901760
    %v772 = vsub.f32 %v684, %v771
    %v773 = vand.u32 %v772, 4294901760
    %v774 = vsub.f32 %v772, %v773
    %v775 = vand.u32 %v774, 4294901760
    %776 = vmatmul.mubr.f32.gmra.mrb[0].mxu0 %v775
    %v777 = vpop.f32.mrb[0].mxu0
    %v778 = vadd.f32 %v667, %v777
    %v779 = vpop.f32.mrb[0].mxu0
    %780 = vmatprep.mubr.f32.mxu0 0.0
    %v781 = vand.u32 %v687, 4294901760
    %v782 = vsub.f32 %v687, %v781
    %v783 = vand.u32 %v782, 4294901760
    %v784 = vsub.f32 %v782, %v783
    %v785 = vand.u32 %v784, 4294901760
    %786 = vmatmul.mubr.f32.gmra.mrb[0].mxu0 %v785
    %v787 = vpop.f32.mrb[0].mxu0
    %v788 = vadd.f32 %v672, %v787
    %v789 = vpop.f32.mrb[0].mxu0
    %790 = vmatprep.mubr.f32.mxu0 0.0
    %v791 = vand.u32 %v690, 4294901760
    %v792 = vsub.f32 %v690, %v791
    %v793 = vand.u32 %v792, 4294901760
    %v794 = vsub.f32 %v792, %v793
    %v795 = vand.u32 %v794, 4294901760
    %796 = vmatmul.mubr.f32.gmra.mrb[0].mxu0 %v795
    %v797 = vpop.f32.mrb[0].mxu0
    %v798 = vadd.f32 %v677, %v797
    %v799 = vpop.f32.mrb[0].mxu0
    %800 = vdwg.mxu0
    %801 = vmatprep.subr.mxu0 0.0
    %v802 = vand.u32 %v647, 4294901760
    %v803 = vsub.f32 %v647, %v802
    %v804 = vand.u32 %v803, 4294901760
    %v805 = vsub.f32 %v803, %v804
    %v806 = vand.u32 %v805, 4294901760
    %807 = vmatpush1.msra.mxu0 %v806
    %808 = vmatprep.subr.mxu0 0.0
    %v809 = vand.u32 %v648, 4294901760
    %v810 = vsub.f32 %v648, %v809
    %v811 = vand.u32 %v810, 4294901760
    %v812 = vsub.f32 %v810, %v811
    %v813 = vand.u32 %v812, 4294901760
    %814 = vmatpush1.msra.mxu0 %v813
    %815 = vmatprep.subr.mxu0 0.0
    %v816 = vand.u32 %v649, 4294901760
    %v817 = vsub.f32 %v649, %v816
    %v818 = vand.u32 %v817, 4294901760
    %v819 = vsub.f32 %v817, %v818
    %v820 = vand.u32 %v819, 4294901760
    %821 = vmatpush1.msra.mxu0 %v820
    %822 = vmatprep.subr.mxu0 0.0
    %v823 = vand.u32 %v650, 4294901760
    %v824 = vsub.f32 %v650, %v823
    %v825 = vand.u32 %v824, 4294901760
    %v826 = vsub.f32 %v824, %v825
    %v827 = vand.u32 %v826, 4294901760
    %828 = vmatpush1.msra.mxu0 %v827
    %829 = vmatprep.subr.mxu0 0.0
    %830 = vmatpush1.msra.mxu0 0.0
    %831 = vmatprep.subr.mxu0 0.0
    %832 = vmatpush1.msra.mxu0 0.0
    %833 = vmatprep.subr.mxu0 0.0
    %834 = vmatpush1.msra.mxu0 0.0
    %835 = vmatprep.subr.mxu0 0.0
    %836 = vmatpush1.msra.mxu0 0.0
    %837 = vmatprep.subr.mxu0 0.0
    %838 = vmatpush1.msra.mxu0 0.0
    %839 = vmatprep.subr.mxu0 0.0
    %840 = vmatpush1.msra.mxu0 0.0
    %841 = vmatprep.subr.mxu0 0.0
    %842 = vmatpush1.msra.mxu0 0.0
    %843 = vmatprep.subr.mxu0 0.0
    %844 = vmatpush1.msra.mxu0 0.0
    %845 = vmatprep.subr.mxu0 0.0
    %846 = vmatpush1.msra.mxu0 0.0
    %847 = vmatprep.subr.mxu0 0.0
    %848 = vmatpush1.msra.mxu0 0.0
    %849 = vmatprep.subr.mxu0 0.0
    %850 = vmatpush1.msra.mxu0 0.0
    %851 = vmatprep.subr.mxu0 0.0
    %852 = vmatpush1.msra.mxu0 0.0
    %853 = vmatprep.subr.mxu0 0.0
    %854 = vmatpush1.msra.mxu0 0.0
    %855 = vmatprep.subr.mxu0 0.0
    %856 = vmatpush1.msra.mxu0 0.0
    %857 = vmatprep.subr.mxu0 0.0
    %858 = vmatpush1.msra.mxu0 0.0
    %859 = vmatprep.subr.mxu0 0.0
    %860 = vmatpush1.msra.mxu0 0.0
    %861 = vmatprep.subr.mxu0 0.0
    %862 = vmatpush1.msra.mxu0 0.0
    %863 = vmatprep.subr.mxu0 0.0
    %864 = vmatpush1.msra.mxu0 0.0
    %865 = vmatprep.subr.mxu0 0.0
    %866 = vmatpush1.msra.mxu0 0.0
    %867 = vmatprep.subr.mxu0 0.0
    %868 = vmatpush1.msra.mxu0 0.0
    %869 = vmatprep.subr.mxu0 0.0
    %870 = vmatpush1.msra.mxu0 0.0
    %871 = vmatprep.subr.mxu0 0.0
    %872 = vmatpush1.msra.mxu0 0.0
    %873 = vmatprep.subr.mxu0 0.0
    %874 = vmatpush1.msra.mxu0 0.0
    %875 = vmatprep.subr.mxu0 0.0
    %876 = vmatpush1.msra.mxu0 0.0
    %877 = vmatprep.subr.mxu0 0.0
    %878 = vmatpush1.msra.mxu0 0.0
    %879 = vmatprep.subr.mxu0 0.0
    %880 = vmatpush1.msra.mxu0 0.0
    %881 = vmatprep.subr.mxu0 0.0
    %882 = vmatpush1.msra.mxu0 0.0
    %883 = vmatprep.subr.mxu0 0.0
    %884 = vmatpush1.msra.mxu0 0.0
    %885 = vmatprep.mubr.f32.mxu0 0.0
    %v886 = vand.u32 %v681, 4294901760
    %887 = vmatmul.mubr.f32.gmra.mrb[0].mxu0 %v886
    %v888 = vpop.f32.mrb[0].mxu0
    %v889 = vadd.f32 %v768, %v888
    %v890 = vpop.f32.mrb[0].mxu0
    %891 = vmatprep.mubr.f32.mxu0 0.0
    %v892 = vand.u32 %v684, 4294901760
    %893 = vmatmul.mubr.f32.gmra.mrb[0].mxu0 %v892
    %v894 = vpop.f32.mrb[0].mxu0
    %v895 = vadd.f32 %v778, %v894
    %v896 = vpop.f32.mrb[0].mxu0
    %897 = vmatprep.mubr.f32.mxu0 0.0
    %v898 = vand.u32 %v687, 4294901760
    %899 = vmatmul.mubr.f32.gmra.mrb[0].mxu0 %v898
    %v900 = vpop.f32.mrb[0].mxu0
    %v901 = vadd.f32 %v788, %v900
    %v902 = vpop.f32.mrb[0].mxu0
    %903 = vmatprep.mubr.f32.mxu0 0.0
    %v904 = vand.u32 %v690, 4294901760
    %905 = vmatmul.mubr.f32.gmra.mrb[0].mxu0 %v904
    %v906 = vpop.f32.mrb[0].mxu0
    %v907 = vadd.f32 %v798, %v906
    %v908 = vpop.f32.mrb[0].mxu0
    %909 = vdwg.mxu0
    %910 = vmatprep.subr.mxu0 0.0
    %v911 = vand.u32 %v647, 4294901760
    %v912 = vsub.f32 %v647, %v911
    %913 = vmatpush1.msra.mxu0 %v912
    %914 = vmatprep.subr.mxu0 0.0
    %v915 = vand.u32 %v648, 4294901760
    %v916 = vsub.f32 %v648, %v915
    %917 = vmatpush1.msra.mxu0 %v916
    %918 = vmatprep.subr.mxu0 0.0
    %v919 = vand.u32 %v649, 4294901760
    %v920 = vsub.f32 %v649, %v919
    %921 = vmatpush1.msra.mxu0 %v920
    %922 = vmatprep.subr.mxu0 0.0
    %v923 = vand.u32 %v650, 4294901760
    %v924 = vsub.f32 %v650, %v923
    %925 = vmatpush1.msra.mxu0 %v924
    %926 = vmatprep.subr.mxu0 0.0
    %927 = vmatpush1.msra.mxu0 0.0
    %928 = vmatprep.subr.mxu0 0.0
    %929 = vmatpush1.msra.mxu0 0.0
    %930 = vmatprep.subr.mxu0 0.0
    %931 = vmatpush1.msra.mxu0 0.0
    %932 = vmatprep.subr.mxu0 0.0
    %933 = vmatpush1.msra.mxu0 0.0
    %934 = vmatprep.subr.mxu0 0.0
    %935 = vmatpush1.msra.mxu0 0.0
    %936 = vmatprep.subr.mxu0 0.0
    %937 = vmatpush1.msra.mxu0 0.0
    %938 = vmatprep.subr.mxu0 0.0
    %939 = vmatpush1.msra.mxu0 0.0
    %940 = vmatprep.subr.mxu0 0.0
    %941 = vmatpush1.msra.mxu0 0.0
    %942 = vmatprep.subr.mxu0 0.0
    %943 = vmatpush1.msra.mxu0 0.0
    %944 = vmatprep.subr.mxu0 0.0
    %945 = vmatpush1.msra.mxu0 0.0
    %946 = vmatprep.subr.mxu0 0.0
    %947 = vmatpush1.msra.mxu0 0.0
    %948 = vmatprep.subr.mxu0 0.0
    %949 = vmatpush1.msra.mxu0 0.0
    %950 = vmatprep.subr.mxu0 0.0
    %951 = vmatpush1.msra.mxu0 0.0
    %952 = vmatprep.subr.mxu0 0.0
    %953 = vmatpush1.msra.mxu0 0.0
    %954 = vmatprep.subr.mxu0 0.0
    %955 = vmatpush1.msra.mxu0 0.0
    %956 = vmatprep.subr.mxu0 0.0
    %957 = vmatpush1.msra.mxu0 0.0
    %958 = vmatprep.subr.mxu0 0.0
    %959 = vmatpush1.msra.mxu0 0.0
    %960 = vmatprep.subr.mxu0 0.0
    %961 = vmatpush1.msra.mxu0 0.0
    %962 = vmatprep.subr.mxu0 0.0
    %963 = vmatpush1.msra.mxu0 0.0
    %964 = vmatprep.subr.mxu0 0.0
    %965 = vmatpush1.msra.mxu0 0.0
    %966 = vmatprep.subr.mxu0 0.0
    %967 = vmatpush1.msra.mxu0 0.0
    %968 = vmatprep.subr.mxu0 0.0
    %969 = vmatpush1.msra.mxu0 0.0
    %970 = vmatprep.subr.mxu0 0.0
    %971 = vmatpush1.msra.mxu0 0.0
    %972 = vmatprep.subr.mxu0 0.0
    %973 = vmatpush1.msra.mxu0 0.0
    %974 = vmatprep.subr.mxu0 0.0
    %975 = vmatpush1.msra.mxu0 0.0
    %976 = vmatprep.subr.mxu0 0.0
    %977 = vmatpush1.msra.mxu0 0.0
    %978 = vmatprep.subr.mxu0 0.0
    %979 = vmatpush1.msra.mxu0 0.0
    %980 = vmatprep.subr.mxu0 0.0
    %981 = vmatpush1.msra.mxu0 0.0
    %982 = vmatprep.mubr.f32.mxu0 0.0
    %v983 = vand.u32 %v681, 4294901760
    %v984 = vsub.f32 %v681, %v983
    %985 = vmatmul.mubr.f32.gmra.mrb[0].mxu0 %v984
    %v986 = vpop.f32.mrb[0].mxu0
    %v987 = vadd.f32 %v889, %v986
    %v988 = vpop.f32.mrb[0].mxu0
    %989 = vmatprep.mubr.f32.mxu0 0.0
    %v990 = vand.u32 %v684, 4294901760
    %v991 = vsub.f32 %v684, %v990
    %992 = vmatmul.mubr.f32.gmra.mrb[0].mxu0 %v991
    %v993 = vpop.f32.mrb[0].mxu0
    %v994 = vadd.f32 %v895, %v993
    %v995 = vpop.f32.mrb[0].mxu0
    %996 = vmatprep.mubr.f32.mxu0 0.0
    %v997 = vand.u32 %v687, 4294901760
    %v998 = vsub.f32 %v687, %v997
    %999 = vmatmul.mubr.f32.gmra.mrb[0].mxu0 %v998
    %v1000 = vpop.f32.mrb[0].mxu0
    %v1001 = vadd.f32 %v901, %v1000
    %v1002 = vpop.f32.mrb[0].mxu0
    %1003 = vmatprep.mubr.f32.mxu0 0.0
    %v1004 = vand.u32 %v690, 4294901760
    %v1005 = vsub.f32 %v690, %v1004
    %1006 = vmatmul.mubr.f32.gmra.mrb[0].mxu0 %v1005
    %v1007 = vpop.f32.mrb[0].mxu0
    %v1008 = vadd.f32 %v907, %v1007
    %v1009 = vpop.f32.mrb[0].mxu0
    %1010 = vdwg.mxu0
    %1011 = vmatprep.subr.mxu0 0.0
    %v1012 = vand.u32 %v647, 4294901760
    %1013 = vmatpush1.msra.mxu0 %v1012
    %1014 = vmatprep.subr.mxu0 0.0
    %v1015 = vand.u32 %v648, 4294901760
    %1016 = vmatpush1.msra.mxu0 %v1015
    %1017 = vmatprep.subr.mxu0 0.0
    %v1018 = vand.u32 %v649, 4294901760
    %1019 = vmatpush1.msra.mxu0 %v1018
    %1020 = vmatprep.subr.mxu0 0.0
    %v1021 = vand.u32 %v650, 4294901760
    %1022 = vmatpush1.msra.mxu0 %v1021
    %1023 = vmatprep.subr.mxu0 0.0
    %1024 = vmatpush1.msra.mxu0 0.0
    %1025 = vmatprep.subr.mxu0 0.0
    %1026 = vmatpush1.msra.mxu0 0.0
    %1027 = vmatprep.subr.mxu0 0.0
    %1028 = vmatpush1.msra.mxu0 0.0
    %1029 = vmatprep.subr.mxu0 0.0
    %1030 = vmatpush1.msra.mxu0 0.0
    %1031 = vmatprep.subr.mxu0 0.0
    %1032 = vmatpush1.msra.mxu0 0.0
    %1033 = vmatprep.subr.mxu0 0.0
    %1034 = vmatpush1.msra.mxu0 0.0
    %1035 = vmatprep.subr.mxu0 0.0
    %1036 = vmatpush1.msra.mxu0 0.0
    %1037 = vmatprep.subr.mxu0 0.0
    %1038 = vmatpush1.msra.mxu0 0.0
    %1039 = vmatprep.subr.mxu0 0.0
    %1040 = vmatpush1.msra.mxu0 0.0
    %1041 = vmatprep.subr.mxu0 0.0
    %1042 = vmatpush1.msra.mxu0 0.0
    %1043 = vmatprep.subr.mxu0 0.0
    %1044 = vmatpush1.msra.mxu0 0.0
    %1045 = vmatprep.subr.mxu0 0.0
    %1046 = vmatpush1.msra.mxu0 0.0
    %1047 = vmatprep.subr.mxu0 0.0
    %1048 = vmatpush1.msra.mxu0 0.0
    %1049 = vmatprep.subr.mxu0 0.0
    %1050 = vmatpush1.msra.mxu0 0.0
    %1051 = vmatprep.subr.mxu0 0.0
    %1052 = vmatpush1.msra.mxu0 0.0
    %1053 = vmatprep.subr.mxu0 0.0
    %1054 = vmatpush1.msra.mxu0 0.0
    %1055 = vmatprep.subr.mxu0 0.0
    %1056 = vmatpush1.msra.mxu0 0.0
    %1057 = vmatprep.subr.mxu0 0.0
    %1058 = vmatpush1.msra.mxu0 0.0
    %1059 = vmatprep.subr.mxu0 0.0
    %1060 = vmatpush1.msra.mxu0 0.0
    %1061 = vmatprep.subr.mxu0 0.0
    %1062 = vmatpush1.msra.mxu0 0.0
    %1063 = vmatprep.subr.mxu0 0.0
    %1064 = vmatpush1.msra.mxu0 0.0
    %1065 = vmatprep.subr.mxu0 0.0
    %1066 = vmatpush1.msra.mxu0 0.0
    %1067 = vmatprep.subr.mxu0 0.0
    %1068 = vmatpush1.msra.mxu0 0.0
    %1069 = vmatprep.subr.mxu0 0.0
    %1070 = vmatpush1.msra.mxu0 0.0
    %1071 = vmatprep.subr.mxu0 0.0
    %1072 = vmatpush1.msra.mxu0 0.0
    %1073 = vmatprep.subr.mxu0 0.0
    %1074 = vmatpush1.msra.mxu0 0.0
    %1075 = vmatprep.subr.mxu0 0.0
    %1076 = vmatpush1.msra.mxu0 0.0
    %1077 = vmatprep.subr.mxu0 0.0
    %1078 = vmatpush1.msra.mxu0 0.0
    %1079 = vmatprep.mubr.f32.mxu0 0.0
    %v1080 = vand.u32 %v681, 4294901760
    %v1081 = vsub.f32 %v681, %v1080
    %v1082 = vand.u32 %v1081, 4294901760
    %1083 = vmatmul.mubr.f32.gmra.mrb[0].mxu0 %v1082
    %v1084 = vpop.f32.mrb[0].mxu0
    %v1085 = vadd.f32 %v987, %v1084
    %v1086 = vpop.f32.mrb[0].mxu0
    %1087 = vmatprep.mubr.f32.mxu0 0.0
    %v1088 = vand.u32 %v684, 4294901760
    %v1089 = vsub.f32 %v684, %v1088
    %v1090 = vand.u32 %v1089, 4294901760
    %1091 = vmatmul.mubr.f32.gmra.mrb[0].mxu0 %v1090
    %v1092 = vpop.f32.mrb[0].mxu0
    %v1093 = vadd.f32 %v994, %v1092
    %v1094 = vpop.f32.mrb[0].mxu0
    %1095 = vmatprep.mubr.f32.mxu0 0.0
    %v1096 = vand.u32 %v687, 4294901760
    %v1097 = vsub.f32 %v687, %v1096
    %v1098 = vand.u32 %v1097, 4294901760
    %1099 = vmatmul.mubr.f32.gmra.mrb[0].mxu0 %v1098
    %v1100 = vpop.f32.mrb[0].mxu0
    %v1101 = vadd.f32 %v1001, %v1100
    %v1102 = vpop.f32.mrb[0].mxu0
    %1103 = vmatprep.mubr.f32.mxu0 0.0
    %v1104 = vand.u32 %v690, 4294901760
    %v1105 = vsub.f32 %v690, %v1104
    %v1106 = vand.u32 %v1105, 4294901760
    %1107 = vmatmul.mubr.f32.gmra.mrb[0].mxu0 %v1106
    %v1108 = vpop.f32.mrb[0].mxu0
    %v1109 = vadd.f32 %v1008, %v1108
    %v1110 = vpop.f32.mrb[0].mxu0
    %1111 = vdwg.mxu0
    %1112 = vmatprep.subr.mxu0 0.0
    %v1113 = vand.u32 %v647, 4294901760
    %v1114 = vsub.f32 %v647, %v1113
    %v1115 = vand.u32 %v1114, 4294901760
    %1116 = vmatpush1.msra.mxu0 %v1115
    %1117 = vmatprep.subr.mxu0 0.0
    %v1118 = vand.u32 %v648, 4294901760
    %v1119 = vsub.f32 %v648, %v1118
    %v1120 = vand.u32 %v1119, 4294901760
    %1121 = vmatpush1.msra.mxu0 %v1120
    %1122 = vmatprep.subr.mxu0 0.0
    %v1123 = vand.u32 %v649, 4294901760
    %v1124 = vsub.f32 %v649, %v1123
    %v1125 = vand.u32 %v1124, 4294901760
    %1126 = vmatpush1.msra.mxu0 %v1125
    %1127 = vmatprep.subr.mxu0 0.0
    %v1128 = vand.u32 %v650, 4294901760
    %v1129 = vsub.f32 %v650, %v1128
    %v1130 = vand.u32 %v1129, 4294901760
    %1131 = vmatpush1.msra.mxu0 %v1130
    %1132 = vmatprep.subr.mxu0 0.0
    %1133 = vmatpush1.msra.mxu0 0.0
    %1134 = vmatprep.subr.mxu0 0.0
    %1135 = vmatpush1.msra.mxu0 0.0
    %1136 = vmatprep.subr.mxu0 0.0
    %1137 = vmatpush1.msra.mxu0 0.0
    %1138 = vmatprep.subr.mxu0 0.0
    %1139 = vmatpush1.msra.mxu0 0.0
    %1140 = vmatprep.subr.mxu0 0.0
    %1141 = vmatpush1.msra.mxu0 0.0
    %1142 = vmatprep.subr.mxu0 0.0
    %1143 = vmatpush1.msra.mxu0 0.0
    %1144 = vmatprep.subr.mxu0 0.0
    %1145 = vmatpush1.msra.mxu0 0.0
    %1146 = vmatprep.subr.mxu0 0.0
    %1147 = vmatpush1.msra.mxu0 0.0
    %1148 = vmatprep.subr.mxu0 0.0
    %1149 = vmatpush1.msra.mxu0 0.0
    %1150 = vmatprep.subr.mxu0 0.0
    %1151 = vmatpush1.msra.mxu0 0.0
    %1152 = vmatprep.subr.mxu0 0.0
    %1153 = vmatpush1.msra.mxu0 0.0
    %1154 = vmatprep.subr.mxu0 0.0
    %1155 = vmatpush1.msra.mxu0 0.0
    %1156 = vmatprep.subr.mxu0 0.0
    %1157 = vmatpush1.msra.mxu0 0.0
    %1158 = vmatprep.subr.mxu0 0.0
    %1159 = vmatpush1.msra.mxu0 0.0
    %1160 = vmatprep.subr.mxu0 0.0
    %1161 = vmatpush1.msra.mxu0 0.0
    %1162 = vmatprep.subr.mxu0 0.0
    %1163 = vmatpush1.msra.mxu0 0.0
    %1164 = vmatprep.subr.mxu0 0.0
    %1165 = vmatpush1.msra.mxu0 0.0
    %1166 = vmatprep.subr.mxu0 0.0
    %1167 = vmatpush1.msra.mxu0 0.0
    %1168 = vmatprep.subr.mxu0 0.0
    %1169 = vmatpush1.msra.mxu0 0.0
    %1170 = vmatprep.subr.mxu0 0.0
    %1171 = vmatpush1.msra.mxu0 0.0
    %1172 = vmatprep.subr.mxu0 0.0
    %1173 = vmatpush1.msra.mxu0 0.0
    %1174 = vmatprep.subr.mxu0 0.0
    %1175 = vmatpush1.msra.mxu0 0.0
    %1176 = vmatprep.subr.mxu0 0.0
    %1177 = vmatpush1.msra.mxu0 0.0
    %1178 = vmatprep.subr.mxu0 0.0
    %1179 = vmatpush1.msra.mxu0 0.0
    %1180 = vmatprep.subr.mxu0 0.0
    %1181 = vmatpush1.msra.mxu0 0.0
    %1182 = vmatprep.subr.mxu0 0.0
    %1183 = vmatpush1.msra.mxu0 0.0
    %1184 = vmatprep.subr.mxu0 0.0
    %1185 = vmatpush1.msra.mxu0 0.0
    %1186 = vmatprep.subr.mxu0 0.0
    %1187 = vmatpush1.msra.mxu0 0.0
    %1188 = vmatprep.mubr.f32.mxu0 0.0
    %v1189 = vand.u32 %v681, 4294901760
    %1190 = vmatmul.mubr.f32.gmra.mrb[0].mxu0 %v1189
    %v1191 = vpop.f32.mrb[0].mxu0
    %v1192 = vadd.f32 %v1085, %v1191
    %v1193 = vpop.f32.mrb[0].mxu0
    %1194 = vmatprep.mubr.f32.mxu0 0.0
    %v1195 = vand.u32 %v684, 4294901760
    %1196 = vmatmul.mubr.f32.gmra.mrb[0].mxu0 %v1195
    %v1197 = vpop.f32.mrb[0].mxu0
    %v1198 = vadd.f32 %v1093, %v1197
    %v1199 = vpop.f32.mrb[0].mxu0
    %1200 = vmatprep.mubr.f32.mxu0 0.0
    %v1201 = vand.u32 %v687, 4294901760
    %1202 = vmatmul.mubr.f32.gmra.mrb[0].mxu0 %v1201
    %v1203 = vpop.f32.mrb[0].mxu0
    %v1204 = vadd.f32 %v1101, %v1203
    %v1205 = vpop.f32.mrb[0].mxu0
    %1206 = vmatprep.mubr.f32.mxu0 0.0
    %v1207 = vand.u32 %v690, 4294901760
    %1208 = vmatmul.mubr.f32.gmra.mrb[0].mxu0 %v1207
    %v1209 = vpop.f32.mrb[0].mxu0
    %v1210 = vadd.f32 %v1109, %v1209
    %v1211 = vpop.f32.mrb[0].mxu0
    %1212 = vdwg.mxu0
    %1213 = vmatprep.subr.mxu0 0.0
    %v1214 = vand.u32 %v647, 4294901760
    %1215 = vmatpush1.msra.mxu0 %v1214
    %1216 = vmatprep.subr.mxu0 0.0
    %v1217 = vand.u32 %v648, 4294901760
    %1218 = vmatpush1.msra.mxu0 %v1217
    %1219 = vmatprep.subr.mxu0 0.0
    %v1220 = vand.u32 %v649, 4294901760
    %1221 = vmatpush1.msra.mxu0 %v1220
    %1222 = vmatprep.subr.mxu0 0.0
    %v1223 = vand.u32 %v650, 4294901760
    %1224 = vmatpush1.msra.mxu0 %v1223
    %1225 = vmatprep.subr.mxu0 0.0
    %1226 = vmatpush1.msra.mxu0 0.0
    %1227 = vmatprep.subr.mxu0 0.0
    %1228 = vmatpush1.msra.mxu0 0.0
    %1229 = vmatprep.subr.mxu0 0.0
    %1230 = vmatpush1.msra.mxu0 0.0
    %1231 = vmatprep.subr.mxu0 0.0
    %1232 = vmatpush1.msra.mxu0 0.0
    %1233 = vmatprep.subr.mxu0 0.0
    %1234 = vmatpush1.msra.mxu0 0.0
    %1235 = vmatprep.subr.mxu0 0.0
    %1236 = vmatpush1.msra.mxu0 0.0
    %1237 = vmatprep.subr.mxu0 0.0
    %1238 = vmatpush1.msra.mxu0 0.0
    %1239 = vmatprep.subr.mxu0 0.0
    %1240 = vmatpush1.msra.mxu0 0.0
    %1241 = vmatprep.subr.mxu0 0.0
    %1242 = vmatpush1.msra.mxu0 0.0
    %1243 = vmatprep.subr.mxu0 0.0
    %1244 = vmatpush1.msra.mxu0 0.0
    %1245 = vmatprep.subr.mxu0 0.0
    %1246 = vmatpush1.msra.mxu0 0.0
    %1247 = vmatprep.subr.mxu0 0.0
    %1248 = vmatpush1.msra.mxu0 0.0
    %1249 = vmatprep.subr.mxu0 0.0
    %1250 = vmatpush1.msra.mxu0 0.0
    %1251 = vmatprep.subr.mxu0 0.0
    %1252 = vmatpush1.msra.mxu0 0.0
    %1253 = vmatprep.subr.mxu0 0.0
    %1254 = vmatpush1.msra.mxu0 0.0
    %1255 = vmatprep.subr.mxu0 0.0
    %1256 = vmatpush1.msra.mxu0 0.0
    %1257 = vmatprep.subr.mxu0 0.0
    %1258 = vmatpush1.msra.mxu0 0.0
    %1259 = vmatprep.subr.mxu0 0.0
    %1260 = vmatpush1.msra.mxu0 0.0
    %1261 = vmatprep.subr.mxu0 0.0
    %1262 = vmatpush1.msra.mxu0 0.0
    %1263 = vmatprep.subr.mxu0 0.0
    %1264 = vmatpush1.msra.mxu0 0.0
    %1265 = vmatprep.subr.mxu0 0.0
    %1266 = vmatpush1.msra.mxu0 0.0
    %1267 = vmatprep.subr.mxu0 0.0
    %1268 = vmatpush1.msra.mxu0 0.0
    %1269 = vmatprep.subr.mxu0 0.0
    %1270 = vmatpush1.msra.mxu0 0.0
    %1271 = vmatprep.subr.mxu0 0.0
    %1272 = vmatpush1.msra.mxu0 0.0
    %1273 = vmatprep.subr.mxu0 0.0
    %1274 = vmatpush1.msra.mxu0 0.0
    %1275 = vmatprep.subr.mxu0 0.0
    %1276 = vmatpush1.msra.mxu0 0.0
    %1277 = vmatprep.subr.mxu0 0.0
    %1278 = vmatpush1.msra.mxu0 0.0
    %1279 = vmatprep.subr.mxu0 0.0
    %1280 = vmatpush1.msra.mxu0 0.0
    %1281 = vmatprep.mubr.f32.mxu0 0.0
    %v1282 = vand.u32 %v681, 4294901760
    %1283 = vmatmul.mubr.f32.gmra.mrb[0].mxu0 %v1282
    %v1284 = vpop.f32.mrb[0].mxu0
    %v1285 = vadd.f32 %v1192, %v1284
    %v1286 = vpop.f32.mrb[0].mxu0
    %1287 = vmatprep.mubr.f32.mxu0 0.0
    %v1288 = vand.u32 %v684, 4294901760
    %1289 = vmatmul.mubr.f32.gmra.mrb[0].mxu0 %v1288
    %v1290 = vpop.f32.mrb[0].mxu0
    %v1291 = vadd.f32 %v1198, %v1290
    %v1292 = vpop.f32.mrb[0].mxu0
    %1293 = vmatprep.mubr.f32.mxu0 0.0
    %v1294 = vand.u32 %v687, 4294901760
    %1295 = vmatmul.mubr.f32.gmra.mrb[0].mxu0 %v1294
    %v1296 = vpop.f32.mrb[0].mxu0
    %v1297 = vadd.f32 %v1204, %v1296
    %v1298 = vpop.f32.mrb[0].mxu0
    %1299 = vmatprep.mubr.f32.mxu0 0.0
    %v1300 = vand.u32 %v690, 4294901760
    %1301 = vmatmul.mubr.f32.gmra.mrb[0].mxu0 %v1300
    %v1302 = vpop.f32.mrb[0].mxu0
    %v1303 = vadd.f32 %v1210, %v1302
    %v1304 = vpop.f32.mrb[0].mxu0
    %1305 = vdwg.mxu0
    %v1306 = vmax.f32 %v1285, 0.0
    %v1307 = vmax.f32 %v1291, 0.0
    %v1308 = vmax.f32 %v1297, 0.0
    %v1309 = vmax.f32 %v1303, 0.0
    %v1310 = vld [vmem:[%s1 + $0x80] sm:$0xff]
    %vm1311 = vcmask 64512
    %v1313 = vsel %vm1311, %v647, 0
    %v1316 = vsel %vm1311, %v648, 0
    %v1319 = vsel %vm1311, %v649, 0
    %v1322 = vsel %vm1311, %v650, 0
    %1324 = vmatprep.subr.mxu0 0.0
    %v1325 = vand.u32 %v1310, 4294901760
    %1326 = vmatpush1.msra.mxu0 %v1325
    %1327 = vmatprep.subr.mxu0 0.0
    %1328 = vmatpush1.msra.mxu0 0.0
    %1329 = vmatprep.subr.mxu0 0.0
    %1330 = vmatpush1.msra.mxu0 0.0
    %1331 = vmatprep.subr.mxu0 0.0
    %1332 = vmatpush1.msra.mxu0 0.0
    %1333 = vmatprep.subr.mxu0 0.0
    %1334 = vmatpush1.msra.mxu0 0.0
    %1335 = vmatprep.subr.mxu0 0.0
    %1336 = vmatpush1.msra.mxu0 0.0
    %1337 = vmatprep.subr.mxu0 0.0
    %1338 = vmatpush1.msra.mxu0 0.0
    %1339 = vmatprep.subr.mxu0 0.0
    %1340 = vmatpush1.msra.mxu0 0.0
    %1341 = vmatprep.subr.mxu0 0.0
    %1342 = vmatpush1.msra.mxu0 0.0
    %1343 = vmatprep.subr.mxu0 0.0
    %1344 = vmatpush1.msra.mxu0 0.0
    %1345 = vmatprep.subr.mxu0 0.0
    %1346 = vmatpush1.msra.mxu0 0.0
    %1347 = vmatprep.subr.mxu0 0.0
    %1348 = vmatpush1.msra.mxu0 0.0
    %1349 = vmatprep.subr.mxu0 0.0
    %1350 = vmatpush1.msra.mxu0 0.0
    %1351 = vmatprep.subr.mxu0 0.0
    %1352 = vmatpush1.msra.mxu0 0.0
    %1353 = vmatprep.subr.mxu0 0.0
    %1354 = vmatpush1.msra.mxu0 0.0
    %1355 = vmatprep.subr.mxu0 0.0
    %1356 = vmatpush1.msra.mxu0 0.0
    %1357 = vmatprep.subr.mxu0 0.0
    %1358 = vmatpush1.msra.mxu0 0.0
    %1359 = vmatprep.subr.mxu0 0.0
    %1360 = vmatpush1.msra.mxu0 0.0
    %1361 = vmatprep.subr.mxu0 0.0
    %1362 = vmatpush1.msra.mxu0 0.0
    %1363 = vmatprep.subr.mxu0 0.0
    %1364 = vmatpush1.msra.mxu0 0.0
    %1365 = vmatprep.subr.mxu0 0.0
    %1366 = vmatpush1.msra.mxu0 0.0
    %1367 = vmatprep.subr.mxu0 0.0
    %1368 = vmatpush1.msra.mxu0 0.0
    %1369 = vmatprep.subr.mxu0 0.0
    %1370 = vmatpush1.msra.mxu0 0.0
    %1371 = vmatprep.subr.mxu0 0.0
    %1372 = vmatpush1.msra.mxu0 0.0
    %1373 = vmatprep.subr.mxu0 0.0
    %1374 = vmatpush1.msra.mxu0 0.0
    %1375 = vmatprep.subr.mxu0 0.0
    %1376 = vmatpush1.msra.mxu0 0.0
    %1377 = vmatprep.subr.mxu0 0.0
    %1378 = vmatpush1.msra.mxu0 0.0
    %1379 = vmatprep.subr.mxu0 0.0
    %1380 = vmatpush1.msra.mxu0 0.0
    %1381 = vmatprep.subr.mxu0 0.0
    %1382 = vmatpush1.msra.mxu0 0.0
    %1383 = vmatprep.subr.mxu0 0.0
    %1384 = vmatpush1.msra.mxu0 0.0
    %1385 = vmatprep.subr.mxu0 0.0
    %1386 = vmatpush1.msra.mxu0 0.0
    %1387 = vmatprep.subr.mxu0 0.0
    %1388 = vmatpush1.msra.mxu0 0.0
    %1389 = vmatprep.mubr.f32.mxu0 0.0
    %v1390 = vand.u32 %v1313, 4294901760
    %v1391 = vsub.f32 %v1313, %v1390
    %v1392 = vand.u32 %v1391, 4294901760
    %v1393 = vsub.f32 %v1391, %v1392
    %v1394 = vand.u32 %v1393, 4294901760
    %1395 = vmatmul.mubr.f32.gmra.mrb[0].mxu0 %v1394
    %v1396 = vpop.f32.mrb[0].mxu0
    %v1397 = vadd.f32 0.0, %v1396
    %v1398 = vpop.f32.mrb[0].mxu0
    %1399 = vmatprep.mubr.f32.mxu0 0.0
    %v1400 = vand.u32 %v1316, 4294901760
    %v1401 = vsub.f32 %v1316, %v1400
    %v1402 = vand.u32 %v1401, 4294901760
    %v1403 = vsub.f32 %v1401, %v1402
    %v1404 = vand.u32 %v1403, 4294901760
    %1405 = vmatmul.mubr.f32.gmra.mrb[0].mxu0 %v1404
    %v1406 = vpop.f32.mrb[0].mxu0
    %v1407 = vadd.f32 0.0, %v1406
    %v1408 = vpop.f32.mrb[0].mxu0
    %1409 = vmatprep.mubr.f32.mxu0 0.0
    %v1410 = vand.u32 %v1319, 4294901760
    %v1411 = vsub.f32 %v1319, %v1410
    %v1412 = vand.u32 %v1411, 4294901760
    %v1413 = vsub.f32 %v1411, %v1412
    %v1414 = vand.u32 %v1413, 4294901760
    %1415 = vmatmul.mubr.f32.gmra.mrb[0].mxu0 %v1414
    %v1416 = vpop.f32.mrb[0].mxu0
    %v1417 = vadd.f32 0.0, %v1416
    %v1418 = vpop.f32.mrb[0].mxu0
    %1419 = vmatprep.mubr.f32.mxu0 0.0
    %v1420 = vand.u32 %v1322, 4294901760
    %v1421 = vsub.f32 %v1322, %v1420
    %v1422 = vand.u32 %v1421, 4294901760
    %v1423 = vsub.f32 %v1421, %v1422
    %v1424 = vand.u32 %v1423, 4294901760
    %1425 = vmatmul.mubr.f32.gmra.mrb[0].mxu0 %v1424
    %v1426 = vpop.f32.mrb[0].mxu0
    %v1427 = vadd.f32 0.0, %v1426
    %v1428 = vpop.f32.mrb[0].mxu0
    %1429 = vdwg.mxu0
    %1430 = vmatprep.subr.mxu0 0.0
    %v1431 = vand.u32 %v1310, 4294901760
    %v1432 = vsub.f32 %v1310, %v1431
    %v1433 = vand.u32 %v1432, 4294901760
    %v1434 = vsub.f32 %v1432, %v1433
    %v1435 = vand.u32 %v1434, 4294901760
    %1436 = vmatpush1.msra.mxu0 %v1435
    %1437 = vmatprep.subr.mxu0 0.0
    %1438 = vmatpush1.msra.mxu0 0.0
    %1439 = vmatprep.subr.mxu0 0.0
    %1440 = vmatpush1.msra.mxu0 0.0
    %1441 = vmatprep.subr.mxu0 0.0
    %1442 = vmatpush1.msra.mxu0 0.0
    %1443 = vmatprep.subr.mxu0 0.0
    %1444 = vmatpush1.msra.mxu0 0.0
    %1445 = vmatprep.subr.mxu0 0.0
    %1446 = vmatpush1.msra.mxu0 0.0
    %1447 = vmatprep.subr.mxu0 0.0
    %1448 = vmatpush1.msra.mxu0 0.0
    %1449 = vmatprep.subr.mxu0 0.0
    %1450 = vmatpush1.msra.mxu0 0.0
    %1451 = vmatprep.subr.mxu0 0.0
    %1452 = vmatpush1.msra.mxu0 0.0
    %1453 = vmatprep.subr.mxu0 0.0
    %1454 = vmatpush1.msra.mxu0 0.0
    %1455 = vmatprep.subr.mxu0 0.0
    %1456 = vmatpush1.msra.mxu0 0.0
    %1457 = vmatprep.subr.mxu0 0.0
    %1458 = vmatpush1.msra.mxu0 0.0
    %1459 = vmatprep.subr.mxu0 0.0
    %1460 = vmatpush1.msra.mxu0 0.0
    %1461 = vmatprep.subr.mxu0 0.0
    %1462 = vmatpush1.msra.mxu0 0.0
    %1463 = vmatprep.subr.mxu0 0.0
    %1464 = vmatpush1.msra.mxu0 0.0
    %1465 = vmatprep.subr.mxu0 0.0
    %1466 = vmatpush1.msra.mxu0 0.0
    %1467 = vmatprep.subr.mxu0 0.0
    %1468 = vmatpush1.msra.mxu0 0.0
    %1469 = vmatprep.subr.mxu0 0.0
    %1470 = vmatpush1.msra.mxu0 0.0
    %1471 = vmatprep.subr.mxu0 0.0
    %1472 = vmatpush1.msra.mxu0 0.0
    %1473 = vmatprep.subr.mxu0 0.0
    %1474 = vmatpush1.msra.mxu0 0.0
    %1475 = vmatprep.subr.mxu0 0.0
    %1476 = vmatpush1.msra.mxu0 0.0
    %1477 = vmatprep.subr.mxu0 0.0
    %1478 = vmatpush1.msra.mxu0 0.0
    %1479 = vmatprep.subr.mxu0 0.0
    %1480 = vmatpush1.msra.mxu0 0.0
    %1481 = vmatprep.subr.mxu0 0.0
    %1482 = vmatpush1.msra.mxu0 0.0
    %1483 = vmatprep.subr.mxu0 0.0
    %1484 = vmatpush1.msra.mxu0 0.0
    %1485 = vmatprep.subr.mxu0 0.0
    %1486 = vmatpush1.msra.mxu0 0.0
    %1487 = vmatprep.subr.mxu0 0.0
    %1488 = vmatpush1.msra.mxu0 0.0
    %1489 = vmatprep.subr.mxu0 0.0
    %1490 = vmatpush1.msra.mxu0 0.0
    %1491 = vmatprep.subr.mxu0 0.0
    %1492 = vmatpush1.msra.mxu0 0.0
    %1493 = vmatprep.subr.mxu0 0.0
    %1494 = vmatpush1.msra.mxu0 0.0
    %1495 = vmatprep.subr.mxu0 0.0
    %1496 = vmatpush1.msra.mxu0 0.0
    %1497 = vmatprep.subr.mxu0 0.0
    %1498 = vmatpush1.msra.mxu0 0.0
    %1499 = vmatprep.mubr.f32.mxu0 0.0
    %v1500 = vand.u32 %v1313, 4294901760
    %1501 = vmatmul.mubr.f32.gmra.mrb[0].mxu0 %v1500
    %v1502 = vpop.f32.mrb[0].mxu0
    %v1503 = vadd.f32 %v1397, %v1502
    %v1504 = vpop.f32.mrb[0].mxu0
    %1505 = vmatprep.mubr.f32.mxu0 0.0
    %v1506 = vand.u32 %v1316, 4294901760
    %1507 = vmatmul.mubr.f32.gmra.mrb[0].mxu0 %v1506
    %v1508 = vpop.f32.mrb[0].mxu0
    %v1509 = vadd.f32 %v1407, %v1508
    %v1510 = vpop.f32.mrb[0].mxu0
    %1511 = vmatprep.mubr.f32.mxu0 0.0
    %v1512 = vand.u32 %v1319, 4294901760
    %1513 = vmatmul.mubr.f32.gmra.mrb[0].mxu0 %v1512
    %v1514 = vpop.f32.mrb[0].mxu0
    %v1515 = vadd.f32 %v1417, %v1514
    %v1516 = vpop.f32.mrb[0].mxu0
    %1517 = vmatprep.mubr.f32.mxu0 0.0
    %v1518 = vand.u32 %v1322, 4294901760
    %1519 = vmatmul.mubr.f32.gmra.mrb[0].mxu0 %v1518
    %v1520 = vpop.f32.mrb[0].mxu0
    %v1521 = vadd.f32 %v1427, %v1520
    %v1522 = vpop.f32.mrb[0].mxu0
    %1523 = vdwg.mxu0
    %1524 = vmatprep.subr.mxu0 0.0
    %v1525 = vand.u32 %v1310, 4294901760
    %v1526 = vsub.f32 %v1310, %v1525
    %1527 = vmatpush1.msra.mxu0 %v1526
    %1528 = vmatprep.subr.mxu0 0.0
    %1529 = vmatpush1.msra.mxu0 0.0
    %1530 = vmatprep.subr.mxu0 0.0
    %1531 = vmatpush1.msra.mxu0 0.0
    %1532 = vmatprep.subr.mxu0 0.0
    %1533 = vmatpush1.msra.mxu0 0.0
    %1534 = vmatprep.subr.mxu0 0.0
    %1535 = vmatpush1.msra.mxu0 0.0
    %1536 = vmatprep.subr.mxu0 0.0
    %1537 = vmatpush1.msra.mxu0 0.0
    %1538 = vmatprep.subr.mxu0 0.0
    %1539 = vmatpush1.msra.mxu0 0.0
    %1540 = vmatprep.subr.mxu0 0.0
    %1541 = vmatpush1.msra.mxu0 0.0
    %1542 = vmatprep.subr.mxu0 0.0
    %1543 = vmatpush1.msra.mxu0 0.0
    %1544 = vmatprep.subr.mxu0 0.0
    %1545 = vmatpush1.msra.mxu0 0.0
    %1546 = vmatprep.subr.mxu0 0.0
    %1547 = vmatpush1.msra.mxu0 0.0
    %1548 = vmatprep.subr.mxu0 0.0
    %1549 = vmatpush1.msra.mxu0 0.0
    %1550 = vmatprep.subr.mxu0 0.0
    %1551 = vmatpush1.msra.mxu0 0.0
    %1552 = vmatprep.subr.mxu0 0.0
    %1553 = vmatpush1.msra.mxu0 0.0
    %1554 = vmatprep.subr.mxu0 0.0
    %1555 = vmatpush1.msra.mxu0 0.0
    %1556 = vmatprep.subr.mxu0 0.0
    %1557 = vmatpush1.msra.mxu0 0.0
    %1558 = vmatprep.subr.mxu0 0.0
    %1559 = vmatpush1.msra.mxu0 0.0
    %1560 = vmatprep.subr.mxu0 0.0
    %1561 = vmatpush1.msra.mxu0 0.0
    %1562 = vmatprep.subr.mxu0 0.0
    %1563 = vmatpush1.msra.mxu0 0.0
    %1564 = vmatprep.subr.mxu0 0.0
    %1565 = vmatpush1.msra.mxu0 0.0
    %1566 = vmatprep.subr.mxu0 0.0
    %1567 = vmatpush1.msra.mxu0 0.0
    %1568 = vmatprep.subr.mxu0 0.0
    %1569 = vmatpush1.msra.mxu0 0.0
    %1570 = vmatprep.subr.mxu0 0.0
    %1571 = vmatpush1.msra.mxu0 0.0
    %1572 = vmatprep.subr.mxu0 0.0
    %1573 = vmatpush1.msra.mxu0 0.0
    %1574 = vmatprep.subr.mxu0 0.0
    %1575 = vmatpush1.msra.mxu0 0.0
    %1576 = vmatprep.subr.mxu0 0.0
    %1577 = vmatpush1.msra.mxu0 0.0
    %1578 = vmatprep.subr.mxu0 0.0
    %1579 = vmatpush1.msra.mxu0 0.0
    %1580 = vmatprep.subr.mxu0 0.0
    %1581 = vmatpush1.msra.mxu0 0.0
    %1582 = vmatprep.subr.mxu0 0.0
    %1583 = vmatpush1.msra.mxu0 0.0
    %1584 = vmatprep.subr.mxu0 0.0
    %1585 = vmatpush1.msra.mxu0 0.0
    %1586 = vmatprep.subr.mxu0 0.0
    %1587 = vmatpush1.msra.mxu0 0.0
    %1588 = vmatprep.subr.mxu0 0.0
    %1589 = vmatpush1.msra.mxu0 0.0
    %1590 = vmatprep.mubr.f32.mxu0 0.0
    %v1591 = vand.u32 %v1313, 4294901760
    %v1592 = vsub.f32 %v1313, %v1591
    %1593 = vmatmul.mubr.f32.gmra.mrb[0].mxu0 %v1592
    %v1594 = vpop.f32.mrb[0].mxu0
    %v1595 = vadd.f32 %v1503, %v1594
    %v1596 = vpop.f32.mrb[0].mxu0
    %1597 = vmatprep.mubr.f32.mxu0 0.0
    %v1598 = vand.u32 %v1316, 4294901760
    %v1599 = vsub.f32 %v1316, %v1598
    %1600 = vmatmul.mubr.f32.gmra.mrb[0].mxu0 %v1599
    %v1601 = vpop.f32.mrb[0].mxu0
    %v1602 = vadd.f32 %v1509, %v1601
    %v1603 = vpop.f32.mrb[0].mxu0
    %1604 = vmatprep.mubr.f32.mxu0 0.0
    %v1605 = vand.u32 %v1319, 4294901760
    %v1606 = vsub.f32 %v1319, %v1605
    %1607 = vmatmul.mubr.f32.gmra.mrb[0].mxu0 %v1606
    %v1608 = vpop.f32.mrb[0].mxu0
    %v1609 = vadd.f32 %v1515, %v1608
    %v1610 = vpop.f32.mrb[0].mxu0
    %1611 = vmatprep.mubr.f32.mxu0 0.0
    %v1612 = vand.u32 %v1322, 4294901760
    %v1613 = vsub.f32 %v1322, %v1612
    %1614 = vmatmul.mubr.f32.gmra.mrb[0].mxu0 %v1613
    %v1615 = vpop.f32.mrb[0].mxu0
    %v1616 = vadd.f32 %v1521, %v1615
    %v1617 = vpop.f32.mrb[0].mxu0
    %1618 = vdwg.mxu0
    %1619 = vmatprep.subr.mxu0 0.0
    %v1620 = vand.u32 %v1310, 4294901760
    %1621 = vmatpush1.msra.mxu0 %v1620
    %1622 = vmatprep.subr.mxu0 0.0
    %1623 = vmatpush1.msra.mxu0 0.0
    %1624 = vmatprep.subr.mxu0 0.0
    %1625 = vmatpush1.msra.mxu0 0.0
    %1626 = vmatprep.subr.mxu0 0.0
    %1627 = vmatpush1.msra.mxu0 0.0
    %1628 = vmatprep.subr.mxu0 0.0
    %1629 = vmatpush1.msra.mxu0 0.0
    %1630 = vmatprep.subr.mxu0 0.0
    %1631 = vmatpush1.msra.mxu0 0.0
    %1632 = vmatprep.subr.mxu0 0.0
    %1633 = vmatpush1.msra.mxu0 0.0
    %1634 = vmatprep.subr.mxu0 0.0
    %1635 = vmatpush1.msra.mxu0 0.0
    %1636 = vmatprep.subr.mxu0 0.0
    %1637 = vmatpush1.msra.mxu0 0.0
    %1638 = vmatprep.subr.mxu0 0.0
    %1639 = vmatpush1.msra.mxu0 0.0
    %1640 = vmatprep.subr.mxu0 0.0
    %1641 = vmatpush1.msra.mxu0 0.0
    %1642 = vmatprep.subr.mxu0 0.0
    %1643 = vmatpush1.msra.mxu0 0.0
    %1644 = vmatprep.subr.mxu0 0.0
    %1645 = vmatpush1.msra.mxu0 0.0
    %1646 = vmatprep.subr.mxu0 0.0
    %1647 = vmatpush1.msra.mxu0 0.0
    %1648 = vmatprep.subr.mxu0 0.0
    %1649 = vmatpush1.msra.mxu0 0.0
    %1650 = vmatprep.subr.mxu0 0.0
    %1651 = vmatpush1.msra.mxu0 0.0
    %1652 = vmatprep.subr.mxu0 0.0
    %1653 = vmatpush1.msra.mxu0 0.0
    %1654 = vmatprep.subr.mxu0 0.0
    %1655 = vmatpush1.msra.mxu0 0.0
    %1656 = vmatprep.subr.mxu0 0.0
    %1657 = vmatpush1.msra.mxu0 0.0
    %1658 = vmatprep.subr.mxu0 0.0
    %1659 = vmatpush1.msra.mxu0 0.0
    %1660 = vmatprep.subr.mxu0 0.0
    %1661 = vmatpush1.msra.mxu0 0.0
    %1662 = vmatprep.subr.mxu0 0.0
    %1663 = vmatpush1.msra.mxu0 0.0
    %1664 = vmatprep.subr.mxu0 0.0
    %1665 = vmatpush1.msra.mxu0 0.0
    %1666 = vmatprep.subr.mxu0 0.0
    %1667 = vmatpush1.msra.mxu0 0.0
    %1668 = vmatprep.subr.mxu0 0.0
    %1669 = vmatpush1.msra.mxu0 0.0
    %1670 = vmatprep.subr.mxu0 0.0
    %1671 = vmatpush1.msra.mxu0 0.0
    %1672 = vmatprep.subr.mxu0 0.0
    %1673 = vmatpush1.msra.mxu0 0.0
    %1674 = vmatprep.subr.mxu0 0.0
    %1675 = vmatpush1.msra.mxu0 0.0
    %1676 = vmatprep.subr.mxu0 0.0
    %1677 = vmatpush1.msra.mxu0 0.0
    %1678 = vmatprep.subr.mxu0 0.0
    %1679 = vmatpush1.msra.mxu0 0.0
    %1680 = vmatprep.subr.mxu0 0.0
    %1681 = vmatpush1.msra.mxu0 0.0
    %1682 = vmatprep.subr.mxu0 0.0
    %1683 = vmatpush1.msra.mxu0 0.0
    %1684 = vmatprep.mubr.f32.mxu0 0.0
    %v1685 = vand.u32 %v1313, 4294901760
    %v1686 = vsub.f32 %v1313, %v1685
    %v1687 = vand.u32 %v1686, 4294901760
    %1688 = vmatmul.mubr.f32.gmra.mrb[0].mxu0 %v1687
    %v1689 = vpop.f32.mrb[0].mxu0
    %v1690 = vadd.f32 %v1595, %v1689
    %v1691 = vpop.f32.mrb[0].mxu0
    %1692 = vmatprep.mubr.f32.mxu0 0.0
    %v1693 = vand.u32 %v1316, 4294901760
    %v1694 = vsub.f32 %v1316, %v1693
    %v1695 = vand.u32 %v1694, 4294901760
    %1696 = vmatmul.mubr.f32.gmra.mrb[0].mxu0 %v1695
    %v1697 = vpop.f32.mrb[0].mxu0
    %v1698 = vadd.f32 %v1602, %v1697
    %v1699 = vpop.f32.mrb[0].mxu0
    %1700 = vmatprep.mubr.f32.mxu0 0.0
    %v1701 = vand.u32 %v1319, 4294901760
    %v1702 = vsub.f32 %v1319, %v1701
    %v1703 = vand.u32 %v1702, 4294901760
    %1704 = vmatmul.mubr.f32.gmra.mrb[0].mxu0 %v1703
    %v1705 = vpop.f32.mrb[0].mxu0
    %v1706 = vadd.f32 %v1609, %v1705
    %v1707 = vpop.f32.mrb[0].mxu0
    %1708 = vmatprep.mubr.f32.mxu0 0.0
    %v1709 = vand.u32 %v1322, 4294901760
    %v1710 = vsub.f32 %v1322, %v1709
    %v1711 = vand.u32 %v1710, 4294901760
    %1712 = vmatmul.mubr.f32.gmra.mrb[0].mxu0 %v1711
    %v1713 = vpop.f32.mrb[0].mxu0
    %v1714 = vadd.f32 %v1616, %v1713
    %v1715 = vpop.f32.mrb[0].mxu0
    %1716 = vdwg.mxu0
    %1717 = vmatprep.subr.mxu0 0.0
    %v1718 = vand.u32 %v1310, 4294901760
    %v1719 = vsub.f32 %v1310, %v1718
    %v1720 = vand.u32 %v1719, 4294901760
    %1721 = vmatpush1.msra.mxu0 %v1720
    %1722 = vmatprep.subr.mxu0 0.0
    %1723 = vmatpush1.msra.mxu0 0.0
    %1724 = vmatprep.subr.mxu0 0.0
    %1725 = vmatpush1.msra.mxu0 0.0
    %1726 = vmatprep.subr.mxu0 0.0
    %1727 = vmatpush1.msra.mxu0 0.0
    %1728 = vmatprep.subr.mxu0 0.0
    %1729 = vmatpush1.msra.mxu0 0.0
    %1730 = vmatprep.subr.mxu0 0.0
    %1731 = vmatpush1.msra.mxu0 0.0
    %1732 = vmatprep.subr.mxu0 0.0
    %1733 = vmatpush1.msra.mxu0 0.0
    %1734 = vmatprep.subr.mxu0 0.0
    %1735 = vmatpush1.msra.mxu0 0.0
    %1736 = vmatprep.subr.mxu0 0.0
    %1737 = vmatpush1.msra.mxu0 0.0
    %1738 = vmatprep.subr.mxu0 0.0
    %1739 = vmatpush1.msra.mxu0 0.0
    %1740 = vmatprep.subr.mxu0 0.0
    %1741 = vmatpush1.msra.mxu0 0.0
    %1742 = vmatprep.subr.mxu0 0.0
    %1743 = vmatpush1.msra.mxu0 0.0
    %1744 = vmatprep.subr.mxu0 0.0
    %1745 = vmatpush1.msra.mxu0 0.0
    %1746 = vmatprep.subr.mxu0 0.0
    %1747 = vmatpush1.msra.mxu0 0.0
    %1748 = vmatprep.subr.mxu0 0.0
    %1749 = vmatpush1.msra.mxu0 0.0
    %1750 = vmatprep.subr.mxu0 0.0
    %1751 = vmatpush1.msra.mxu0 0.0
    %1752 = vmatprep.subr.mxu0 0.0
    %1753 = vmatpush1.msra.mxu0 0.0
    %1754 = vmatprep.subr.mxu0 0.0
    %1755 = vmatpush1.msra.mxu0 0.0
    %1756 = vmatprep.subr.mxu0 0.0
    %1757 = vmatpush1.msra.mxu0 0.0
    %1758 = vmatprep.subr.mxu0 0.0
    %1759 = vmatpush1.msra.mxu0 0.0
    %1760 = vmatprep.subr.mxu0 0.0
    %1761 = vmatpush1.msra.mxu0 0.0
    %1762 = vmatprep.subr.mxu0 0.0
    %1763 = vmatpush1.msra.mxu0 0.0
    %1764 = vmatprep.subr.mxu0 0.0
    %1765 = vmatpush1.msra.mxu0 0.0
    %1766 = vmatprep.subr.mxu0 0.0
    %1767 = vmatpush1.msra.mxu0 0.0
    %1768 = vmatprep.subr.mxu0 0.0
    %1769 = vmatpush1.msra.mxu0 0.0
    %1770 = vmatprep.subr.mxu0 0.0
    %1771 = vmatpush1.msra.mxu0 0.0
    %1772 = vmatprep.subr.mxu0 0.0
    %1773 = vmatpush1.msra.mxu0 0.0
    %1774 = vmatprep.subr.mxu0 0.0
    %1775 = vmatpush1.msra.mxu0 0.0
    %1776 = vmatprep.subr.mxu0 0.0
    %1777 = vmatpush1.msra.mxu0 0.0
    %1778 = vmatprep.subr.mxu0 0.0
    %1779 = vmatpush1.msra.mxu0 0.0
    %1780 = vmatprep.subr.mxu0 0.0
    %1781 = vmatpush1.msra.mxu0 0.0
    %1782 = vmatprep.subr.mxu0 0.0
    %1783 = vmatpush1.msra.mxu0 0.0
    %1784 = vmatprep.mubr.f32.mxu0 0.0
    %v1785 = vand.u32 %v1313, 4294901760
    %1786 = vmatmul.mubr.f32.gmra.mrb[0].mxu0 %v1785
    %v1787 = vpop.f32.mrb[0].mxu0
    %v1788 = vadd.f32 %v1690, %v1787
    %v1789 = vpop.f32.mrb[0].mxu0
    %1790 = vmatprep.mubr.f32.mxu0 0.0
    %v1791 = vand.u32 %v1316, 4294901760
    %1792 = vmatmul.mubr.f32.gmra.mrb[0].mxu0 %v1791
    %v1793 = vpop.f32.mrb[0].mxu0
    %v1794 = vadd.f32 %v1698, %v1793
    %v1795 = vpop.f32.mrb[0].mxu0
    %1796 = vmatprep.mubr.f32.mxu0 0.0
    %v1797 = vand.u32 %v1319, 4294901760
    %1798 = vmatmul.mubr.f32.gmra.mrb[0].mxu0 %v1797
    %v1799 = vpop.f32.mrb[0].mxu0
    %v1800 = vadd.f32 %v1706, %v1799
    %v1801 = vpop.f32.mrb[0].mxu0
    %1802 = vmatprep.mubr.f32.mxu0 0.0
    %v1803 = vand.u32 %v1322, 4294901760
    %1804 = vmatmul.mubr.f32.gmra.mrb[0].mxu0 %v1803
    %v1805 = vpop.f32.mrb[0].mxu0
    %v1806 = vadd.f32 %v1714, %v1805
    %v1807 = vpop.f32.mrb[0].mxu0
    %1808 = vdwg.mxu0
    %1809 = vmatprep.subr.mxu0 0.0
    %v1810 = vand.u32 %v1310, 4294901760
    %1811 = vmatpush1.msra.mxu0 %v1810
    %1812 = vmatprep.subr.mxu0 0.0
    %1813 = vmatpush1.msra.mxu0 0.0
    %1814 = vmatprep.subr.mxu0 0.0
    %1815 = vmatpush1.msra.mxu0 0.0
    %1816 = vmatprep.subr.mxu0 0.0
    %1817 = vmatpush1.msra.mxu0 0.0
    %1818 = vmatprep.subr.mxu0 0.0
    %1819 = vmatpush1.msra.mxu0 0.0
    %1820 = vmatprep.subr.mxu0 0.0
    %1821 = vmatpush1.msra.mxu0 0.0
    %1822 = vmatprep.subr.mxu0 0.0
    %1823 = vmatpush1.msra.mxu0 0.0
    %1824 = vmatprep.subr.mxu0 0.0
    %1825 = vmatpush1.msra.mxu0 0.0
    %1826 = vmatprep.subr.mxu0 0.0
    %1827 = vmatpush1.msra.mxu0 0.0
    %1828 = vmatprep.subr.mxu0 0.0
    %1829 = vmatpush1.msra.mxu0 0.0
    %1830 = vmatprep.subr.mxu0 0.0
    %1831 = vmatpush1.msra.mxu0 0.0
    %1832 = vmatprep.subr.mxu0 0.0
    %1833 = vmatpush1.msra.mxu0 0.0
    %1834 = vmatprep.subr.mxu0 0.0
    %1835 = vmatpush1.msra.mxu0 0.0
    %1836 = vmatprep.subr.mxu0 0.0
    %1837 = vmatpush1.msra.mxu0 0.0
    %1838 = vmatprep.subr.mxu0 0.0
    %1839 = vmatpush1.msra.mxu0 0.0
    %1840 = vmatprep.subr.mxu0 0.0
    %1841 = vmatpush1.msra.mxu0 0.0
    %1842 = vmatprep.subr.mxu0 0.0
    %1843 = vmatpush1.msra.mxu0 0.0
    %1844 = vmatprep.subr.mxu0 0.0
    %1845 = vmatpush1.msra.mxu0 0.0
    %1846 = vmatprep.subr.mxu0 0.0
    %1847 = vmatpush1.msra.mxu0 0.0
    %1848 = vmatprep.subr.mxu0 0.0
    %1849 = vmatpush1.msra.mxu0 0.0
    %1850 = vmatprep.subr.mxu0 0.0
    %1851 = vmatpush1.msra.mxu0 0.0
    %1852 = vmatprep.subr.mxu0 0.0
    %1853 = vmatpush1.msra.mxu0 0.0
    %1854 = vmatprep.subr.mxu0 0.0
    %1855 = vmatpush1.msra.mxu0 0.0
    %1856 = vmatprep.subr.mxu0 0.0
    %1857 = vmatpush1.msra.mxu0 0.0
    %1858 = vmatprep.subr.mxu0 0.0
    %1859 = vmatpush1.msra.mxu0 0.0
    %1860 = vmatprep.subr.mxu0 0.0
    %1861 = vmatpush1.msra.mxu0 0.0
    %1862 = vmatprep.subr.mxu0 0.0
    %1863 = vmatpush1.msra.mxu0 0.0
    %1864 = vmatprep.subr.mxu0 0.0
    %1865 = vmatpush1.msra.mxu0 0.0
    %1866 = vmatprep.subr.mxu0 0.0
    %1867 = vmatpush1.msra.mxu0 0.0
    %1868 = vmatprep.subr.mxu0 0.0
    %1869 = vmatpush1.msra.mxu0 0.0
    %1870 = vmatprep.subr.mxu0 0.0
    %1871 = vmatpush1.msra.mxu0 0.0
    %1872 = vmatprep.subr.mxu0 0.0
    %1873 = vmatpush1.msra.mxu0 0.0
    %1874 = vmatprep.mubr.f32.mxu0 0.0
    %v1875 = vand.u32 %v1313, 4294901760
    %1876 = vmatmul.mubr.f32.gmra.mrb[0].mxu0 %v1875
    %v1877 = vpop.f32.mrb[0].mxu0
    %v1878 = vadd.f32 %v1788, %v1877
    %v1879 = vpop.f32.mrb[0].mxu0
    %1880 = vmatprep.mubr.f32.mxu0 0.0
    %v1881 = vand.u32 %v1316, 4294901760
    %1882 = vmatmul.mubr.f32.gmra.mrb[0].mxu0 %v1881
    %v1883 = vpop.f32.mrb[0].mxu0
    %v1884 = vadd.f32 %v1794, %v1883
    %v1885 = vpop.f32.mrb[0].mxu0
    %1886 = vmatprep.mubr.f32.mxu0 0.0
    %v1887 = vand.u32 %v1319, 4294901760
    %1888 = vmatmul.mubr.f32.gmra.mrb[0].mxu0 %v1887
    %v1889 = vpop.f32.mrb[0].mxu0
    %v1890 = vadd.f32 %v1800, %v1889
    %v1891 = vpop.f32.mrb[0].mxu0
    %1892 = vmatprep.mubr.f32.mxu0 0.0
    %v1893 = vand.u32 %v1322, 4294901760
    %1894 = vmatmul.mubr.f32.gmra.mrb[0].mxu0 %v1893
    %v1895 = vpop.f32.mrb[0].mxu0
    %v1896 = vadd.f32 %v1806, %v1895
    %v1897 = vpop.f32.mrb[0].mxu0
    %1898 = vdwg.mxu0
    %v1899 = vld [vmem:[%s1 + $0x88] sm:$0xff]
    %v1900 = vld [vmem:[%s1 + $0x90] sm:$0xff]
    %v1901 = vld [vmem:[%s1 + $0x98] sm:$0xff]
    %v1902 = vld [vmem:[%s1 + $0xa0] sm:$0xff]
    %1904 = vset.pattern.permute.xlu0 0
    %1905 = vperm.xlu0 %1904, %v1899
    %v1906 = vpop.permute.xlu0 %1905
    %1909 = vset.pattern.permute.xlu0 0
    %1910 = vperm.xlu0 %1909, %v1900
    %v1911 = vpop.permute.xlu0 %1910
    %1914 = vset.pattern.permute.xlu0 0
    %1915 = vperm.xlu0 %1914, %v1901
    %v1916 = vpop.permute.xlu0 %1915
    %1919 = vset.pattern.permute.xlu0 0
    %1920 = vperm.xlu0 %1919, %v1902
    %v1921 = vpop.permute.xlu0 %1920
    %v1923 = vmul.f32 %v1878, %v1906
    %v1924 = vmul.f32 %v1884, %v1911
    %v1925 = vmul.f32 %v1890, %v1916
    %v1926 = vmul.f32 %v1896, %v1921
    %v1927 = vld [vmem:[%s1 + $0xa8] sm:$0xff]
    %v1928 = vld [vmem:[%s1 + $0xb0] sm:$0xff]
    %v1929 = vld [vmem:[%s1 + $0xb8] sm:$0xff]
    %v1930 = vld [vmem:[%s1 + $0xc0] sm:$0xff]
    %1932 = vset.pattern.permute.xlu0 0
    %1933 = vperm.xlu0 %1932, %v1927
    %v1934 = vpop.permute.xlu0 %1933
    %1937 = vset.pattern.permute.xlu0 0
    %1938 = vperm.xlu0 %1937, %v1928
    %v1939 = vpop.permute.xlu0 %1938
    %1942 = vset.pattern.permute.xlu0 0
    %1943 = vperm.xlu0 %1942, %v1929
    %v1944 = vpop.permute.xlu0 %1943
    %1947 = vset.pattern.permute.xlu0 0
    %1948 = vperm.xlu0 %1947, %v1930
    %v1949 = vpop.permute.xlu0 %1948
    %v1951 = vadd.f32 %v1923, %v1934
    %v1952 = vadd.f32 %v1924, %v1939
    %v1953 = vadd.f32 %v1925, %v1944
    %v1954 = vadd.f32 %v1926, %v1949
    %v1955 = vtanh.pop %v1951
    %v1956 = vtanh.pop %v1952
    %v1957 = vtanh.pop %v1953
    %v1958 = vtanh.pop %v1954
    %v1959 = vld [vmem:[%s1 + $0x110] sm:$0xf]
    %vm1960 = vcmask 31744
    %v1962 = vsel %vm1960, %v1955, 0
    %v1965 = vsel %vm1960, %v1956, 0
    %v1968 = vsel %vm1960, %v1957, 0
    %v1971 = vsel %vm1960, %v1958, 0
    %v1974 = vsel %vm55, %v1959, 0
    %1976 = vmatprep.subr.mxu0 0.0
    %v1977 = vand.u32 %v1974, 4294901760
    %1978 = vmatpush1.msra.mxu0 %v1977
    %1979 = vmatprep.subr.mxu0 0.0
    %1980 = vmatpush1.msra.mxu0 0.0
    %1981 = vmatprep.subr.mxu0 0.0
    %1982 = vmatpush1.msra.mxu0 0.0
    %1983 = vmatprep.subr.mxu0 0.0
    %1984 = vmatpush1.msra.mxu0 0.0
    %1985 = vmatprep.subr.mxu0 0.0
    %1986 = vmatpush1.msra.mxu0 0.0
    %1987 = vmatprep.subr.mxu0 0.0
    %1988 = vmatpush1.msra.mxu0 0.0
    %1989 = vmatprep.subr.mxu0 0.0
    %1990 = vmatpush1.msra.mxu0 0.0
    %1991 = vmatprep.subr.mxu0 0.0
    %1992 = vmatpush1.msra.mxu0 0.0
    %1993 = vmatprep.subr.mxu0 0.0
    %1994 = vmatpush1.msra.mxu0 0.0
    %1995 = vmatprep.subr.mxu0 0.0
    %1996 = vmatpush1.msra.mxu0 0.0
    %1997 = vmatprep.subr.mxu0 0.0
    %1998 = vmatpush1.msra.mxu0 0.0
    %1999 = vmatprep.subr.mxu0 0.0
    %2000 = vmatpush1.msra.mxu0 0.0
    %2001 = vmatprep.subr.mxu0 0.0
    %2002 = vmatpush1.msra.mxu0 0.0
    %2003 = vmatprep.subr.mxu0 0.0
    %2004 = vmatpush1.msra.mxu0 0.0
    %2005 = vmatprep.subr.mxu0 0.0
    %2006 = vmatpush1.msra.mxu0 0.0
    %2007 = vmatprep.subr.mxu0 0.0
    %2008 = vmatpush1.msra.mxu0 0.0
    %2009 = vmatprep.subr.mxu0 0.0
    %2010 = vmatpush1.msra.mxu0 0.0
    %2011 = vmatprep.subr.mxu0 0.0
    %2012 = vmatpush1.msra.mxu0 0.0
    %2013 = vmatprep.subr.mxu0 0.0
    %2014 = vmatpush1.msra.mxu0 0.0
    %2015 = vmatprep.subr.mxu0 0.0
    %2016 = vmatpush1.msra.mxu0 0.0
    %2017 = vmatprep.subr.mxu0 0.0
    %2018 = vmatpush1.msra.mxu0 0.0
    %2019 = vmatprep.subr.mxu0 0.0
    %2020 = vmatpush1.msra.mxu0 0.0
    %2021 = vmatprep.subr.mxu0 0.0
    %2022 = vmatpush1.msra.mxu0 0.0
    %2023 = vmatprep.subr.mxu0 0.0
    %2024 = vmatpush1.msra.mxu0 0.0
    %2025 = vmatprep.subr.mxu0 0.0
    %2026 = vmatpush1.msra.mxu0 0.0
    %2027 = vmatprep.subr.mxu0 0.0
    %2028 = vmatpush1.msra.mxu0 0.0
    %2029 = vmatprep.subr.mxu0 0.0
    %2030 = vmatpush1.msra.mxu0 0.0
    %2031 = vmatprep.subr.mxu0 0.0
    %2032 = vmatpush1.msra.mxu0 0.0
    %2033 = vmatprep.subr.mxu0 0.0
    %2034 = vmatpush1.msra.mxu0 0.0
    %2035 = vmatprep.subr.mxu0 0.0
    %2036 = vmatpush1.msra.mxu0 0.0
    %2037 = vmatprep.subr.mxu0 0.0
    %2038 = vmatpush1.msra.mxu0 0.0
    %2039 = vmatprep.subr.mxu0 0.0
    %2040 = vmatpush1.msra.mxu0 0.0
    %2041 = vmatprep.mubr.f32.mxu0 0.0
    %v2042 = vand.u32 %v1962, 4294901760
    %v2043 = vsub.f32 %v1962, %v2042
    %v2044 = vand.u32 %v2043, 4294901760
    %v2045 = vsub.f32 %v2043, %v2044
    %v2046 = vand.u32 %v2045, 4294901760
    %2047 = vmatmul.mubr.f32.gmra.mrb[0].mxu0 %v2046
    %v2048 = vpop.f32.mrb[0].mxu0
    %v2049 = vadd.f32 0.0, %v2048
    %v2050 = vpop.f32.mrb[0].mxu0
    %2051 = vmatprep.mubr.f32.mxu0 0.0
    %v2052 = vand.u32 %v1965, 4294901760
    %v2053 = vsub.f32 %v1965, %v2052
    %v2054 = vand.u32 %v2053, 4294901760
    %v2055 = vsub.f32 %v2053, %v2054
    %v2056 = vand.u32 %v2055, 4294901760
    %2057 = vmatmul.mubr.f32.gmra.mrb[0].mxu0 %v2056
    %v2058 = vpop.f32.mrb[0].mxu0
    %v2059 = vadd.f32 0.0, %v2058
    %v2060 = vpop.f32.mrb[0].mxu0
    %2061 = vmatprep.mubr.f32.mxu0 0.0
    %v2062 = vand.u32 %v1968, 4294901760
    %v2063 = vsub.f32 %v1968, %v2062
    %v2064 = vand.u32 %v2063, 4294901760
    %v2065 = vsub.f32 %v2063, %v2064
    %v2066 = vand.u32 %v2065, 4294901760
    %2067 = vmatmul.mubr.f32.gmra.mrb[0].mxu0 %v2066
    %v2068 = vpop.f32.mrb[0].mxu0
    %v2069 = vadd.f32 0.0, %v2068
    %v2070 = vpop.f32.mrb[0].mxu0
    %2071 = vmatprep.mubr.f32.mxu0 0.0
    %v2072 = vand.u32 %v1971, 4294901760
    %v2073 = vsub.f32 %v1971, %v2072
    %v2074 = vand.u32 %v2073, 4294901760
    %v2075 = vsub.f32 %v2073, %v2074
    %v2076 = vand.u32 %v2075, 4294901760
    %2077 = vmatmul.mubr.f32.gmra.mrb[0].mxu0 %v2076
    %v2078 = vpop.f32.mrb[0].mxu0
    %v2079 = vadd.f32 0.0, %v2078
    %v2080 = vpop.f32.mrb[0].mxu0
    %2081 = vdwg.mxu0
    %2082 = vmatprep.subr.mxu0 0.0
    %v2083 = vand.u32 %v1974, 4294901760
    %v2084 = vsub.f32 %v1974, %v2083
    %v2085 = vand.u32 %v2084, 4294901760
    %v2086 = vsub.f32 %v2084, %v2085
    %v2087 = vand.u32 %v2086, 4294901760
    %2088 = vmatpush1.msra.mxu0 %v2087
    %2089 = vmatprep.subr.mxu0 0.0
    %2090 = vmatpush1.msra.mxu0 0.0
    %2091 = vmatprep.subr.mxu0 0.0
    %2092 = vmatpush1.msra.mxu0 0.0
    %2093 = vmatprep.subr.mxu0 0.0
    %2094 = vmatpush1.msra.mxu0 0.0
    %2095 = vmatprep.subr.mxu0 0.0
    %2096 = vmatpush1.msra.mxu0 0.0
    %2097 = vmatprep.subr.mxu0 0.0
    %2098 = vmatpush1.msra.mxu0 0.0
    %2099 = vmatprep.subr.mxu0 0.0
    %2100 = vmatpush1.msra.mxu0 0.0
    %2101 = vmatprep.subr.mxu0 0.0
    %2102 = vmatpush1.msra.mxu0 0.0
    %2103 = vmatprep.subr.mxu0 0.0
    %2104 = vmatpush1.msra.mxu0 0.0
    %2105 = vmatprep.subr.mxu0 0.0
    %2106 = vmatpush1.msra.mxu0 0.0
    %2107 = vmatprep.subr.mxu0 0.0
    %2108 = vmatpush1.msra.mxu0 0.0
    %2109 = vmatprep.subr.mxu0 0.0
    %2110 = vmatpush1.msra.mxu0 0.0
    %2111 = vmatprep.subr.mxu0 0.0
    %2112 = vmatpush1.msra.mxu0 0.0
    %2113 = vmatprep.subr.mxu0 0.0
    %2114 = vmatpush1.msra.mxu0 0.0
    %2115 = vmatprep.subr.mxu0 0.0
    %2116 = vmatpush1.msra.mxu0 0.0
    %2117 = vmatprep.subr.mxu0 0.0
    %2118 = vmatpush1.msra.mxu0 0.0
    %2119 = vmatprep.subr.mxu0 0.0
    %2120 = vmatpush1.msra.mxu0 0.0
    %2121 = vmatprep.subr.mxu0 0.0
    %2122 = vmatpush1.msra.mxu0 0.0
    %2123 = vmatprep.subr.mxu0 0.0
    %2124 = vmatpush1.msra.mxu0 0.0
    %2125 = vmatprep.subr.mxu0 0.0
    %2126 = vmatpush1.msra.mxu0 0.0
    %2127 = vmatprep.subr.mxu0 0.0
    %2128 = vmatpush1.msra.mxu0 0.0
    %2129 = vmatprep.subr.mxu0 0.0
    %2130 = vmatpush1.msra.mxu0 0.0
    %2131 = vmatprep.subr.mxu0 0.0
    %2132 = vmatpush1.msra.mxu0 0.0
    %2133 = vmatprep.subr.mxu0 0.0
    %2134 = vmatpush1.msra.mxu0 0.0
    %2135 = vmatprep.subr.mxu0 0.0
    %2136 = vmatpush1.msra.mxu0 0.0
    %2137 = vmatprep.subr.mxu0 0.0
    %2138 = vmatpush1.msra.mxu0 0.0
    %2139 = vmatprep.subr.mxu0 0.0
    %2140 = vmatpush1.msra.mxu0 0.0
    %2141 = vmatprep.subr.mxu0 0.0
    %2142 = vmatpush1.msra.mxu0 0.0
    %2143 = vmatprep.subr.mxu0 0.0
    %2144 = vmatpush1.msra.mxu0 0.0
    %2145 = vmatprep.subr.mxu0 0.0
    %2146 = vmatpush1.msra.mxu0 0.0
    %2147 = vmatprep.subr.mxu0 0.0
    %2148 = vmatpush1.msra.mxu0 0.0
    %2149 = vmatprep.subr.mxu0 0.0
    %2150 = vmatpush1.msra.mxu0 0.0
    %2151 = vmatprep.mubr.f32.mxu0 0.0
    %v2152 = vand.u32 %v1962, 4294901760
    %2153 = vmatmul.mubr.f32.gmra.mrb[0].mxu0 %v2152
    %v2154 = vpop.f32.mrb[0].mxu0
    %v2155 = vadd.f32 %v2049, %v2154
    %v2156 = vpop.f32.mrb[0].mxu0
    %2157 = vmatprep.mubr.f32.mxu0 0.0
    %v2158 = vand.u32 %v1965, 4294901760
    %2159 = vmatmul.mubr.f32.gmra.mrb[0].mxu0 %v2158
    %v2160 = vpop.f32.mrb[0].mxu0
    %v2161 = vadd.f32 %v2059, %v2160
    %v2162 = vpop.f32.mrb[0].mxu0
    %2163 = vmatprep.mubr.f32.mxu0 0.0
    %v2164 = vand.u32 %v1968, 4294901760
    %2165 = vmatmul.mubr.f32.gmra.mrb[0].mxu0 %v2164
    %v2166 = vpop.f32.mrb[0].mxu0
    %v2167 = vadd.f32 %v2069, %v2166
    %v2168 = vpop.f32.mrb[0].mxu0
    %2169 = vmatprep.mubr.f32.mxu0 0.0
    %v2170 = vand.u32 %v1971, 4294901760
    %2171 = vmatmul.mubr.f32.gmra.mrb[0].mxu0 %v2170
    %v2172 = vpop.f32.mrb[0].mxu0
    %v2173 = vadd.f32 %v2079, %v2172
    %v2174 = vpop.f32.mrb[0].mxu0
    %2175 = vdwg.mxu0
    %2176 = vmatprep.subr.mxu0 0.0
    %v2177 = vand.u32 %v1974, 4294901760
    %v2178 = vsub.f32 %v1974, %v2177
    %2179 = vmatpush1.msra.mxu0 %v2178
    %2180 = vmatprep.subr.mxu0 0.0
    %2181 = vmatpush1.msra.mxu0 0.0
    %2182 = vmatprep.subr.mxu0 0.0
    %2183 = vmatpush1.msra.mxu0 0.0
    %2184 = vmatprep.subr.mxu0 0.0
    %2185 = vmatpush1.msra.mxu0 0.0
    %2186 = vmatprep.subr.mxu0 0.0
    %2187 = vmatpush1.msra.mxu0 0.0
    %2188 = vmatprep.subr.mxu0 0.0
    %2189 = vmatpush1.msra.mxu0 0.0
    %2190 = vmatprep.subr.mxu0 0.0
    %2191 = vmatpush1.msra.mxu0 0.0
    %2192 = vmatprep.subr.mxu0 0.0
    %2193 = vmatpush1.msra.mxu0 0.0
    %2194 = vmatprep.subr.mxu0 0.0
    %2195 = vmatpush1.msra.mxu0 0.0
    %2196 = vmatprep.subr.mxu0 0.0
    %2197 = vmatpush1.msra.mxu0 0.0
    %2198 = vmatprep.subr.mxu0 0.0
    %2199 = vmatpush1.msra.mxu0 0.0
    %2200 = vmatprep.subr.mxu0 0.0
    %2201 = vmatpush1.msra.mxu0 0.0
    %2202 = vmatprep.subr.mxu0 0.0
    %2203 = vmatpush1.msra.mxu0 0.0
    %2204 = vmatprep.subr.mxu0 0.0
    %2205 = vmatpush1.msra.mxu0 0.0
    %2206 = vmatprep.subr.mxu0 0.0
    %2207 = vmatpush1.msra.mxu0 0.0
    %2208 = vmatprep.subr.mxu0 0.0
    %2209 = vmatpush1.msra.mxu0 0.0
    %2210 = vmatprep.subr.mxu0 0.0
    %2211 = vmatpush1.msra.mxu0 0.0
    %2212 = vmatprep.subr.mxu0 0.0
    %2213 = vmatpush1.msra.mxu0 0.0
    %2214 = vmatprep.subr.mxu0 0.0
    %2215 = vmatpush1.msra.mxu0 0.0
    %2216 = vmatprep.subr.mxu0 0.0
    %2217 = vmatpush1.msra.mxu0 0.0
    %2218 = vmatprep.subr.mxu0 0.0
    %2219 = vmatpush1.msra.mxu0 0.0
    %2220 = vmatprep.subr.mxu0 0.0
    %2221 = vmatpush1.msra.mxu0 0.0
    %2222 = vmatprep.subr.mxu0 0.0
    %2223 = vmatpush1.msra.mxu0 0.0
    %2224 = vmatprep.subr.mxu0 0.0
    %2225 = vmatpush1.msra.mxu0 0.0
    %2226 = vmatprep.subr.mxu0 0.0
    %2227 = vmatpush1.msra.mxu0 0.0
    %2228 = vmatprep.subr.mxu0 0.0
    %2229 = vmatpush1.msra.mxu0 0.0
    %2230 = vmatprep.subr.mxu0 0.0
    %2231 = vmatpush1.msra.mxu0 0.0
    %2232 = vmatprep.subr.mxu0 0.0
    %2233 = vmatpush1.msra.mxu0 0.0
    %2234 = vmatprep.subr.mxu0 0.0
    %2235 = vmatpush1.msra.mxu0 0.0
    %2236 = vmatprep.subr.mxu0 0.0
    %2237 = vmatpush1.msra.mxu0 0.0
    %2238 = vmatprep.subr.mxu0 0.0
    %2239 = vmatpush1.msra.mxu0 0.0
    %2240 = vmatprep.subr.mxu0 0.0
    %2241 = vmatpush1.msra.mxu0 0.0
    %2242 = vmatprep.mubr.f32.mxu0 0.0
    %v2243 = vand.u32 %v1962, 4294901760
    %v2244 = vsub.f32 %v1962, %v2243
    %2245 = vmatmul.mubr.f32.gmra.mrb[0].mxu0 %v2244
    %v2246 = vpop.f32.mrb[0].mxu0
    %v2247 = vadd.f32 %v2155, %v2246
    %v2248 = vpop.f32.mrb[0].mxu0
    %2249 = vmatprep.mubr.f32.mxu0 0.0
    %v2250 = vand.u32 %v1965, 4294901760
    %v2251 = vsub.f32 %v1965, %v2250
    %2252 = vmatmul.mubr.f32.gmra.mrb[0].mxu0 %v2251
    %v2253 = vpop.f32.mrb[0].mxu0
    %v2254 = vadd.f32 %v2161, %v2253
    %v2255 = vpop.f32.mrb[0].mxu0
    %2256 = vmatprep.mubr.f32.mxu0 0.0
    %v2257 = vand.u32 %v1968, 4294901760
    %v2258 = vsub.f32 %v1968, %v2257
    %2259 = vmatmul.mubr.f32.gmra.mrb[0].mxu0 %v2258
    %v2260 = vpop.f32.mrb[0].mxu0
    %v2261 = vadd.f32 %v2167, %v2260
    %v2262 = vpop.f32.mrb[0].mxu0
    %2263 = vmatprep.mubr.f32.mxu0 0.0
    %v2264 = vand.u32 %v1971, 4294901760
    %v2265 = vsub.f32 %v1971, %v2264
    %2266 = vmatmul.mubr.f32.gmra.mrb[0].mxu0 %v2265
    %v2267 = vpop.f32.mrb[0].mxu0
    %v2268 = vadd.f32 %v2173, %v2267
    %v2269 = vpop.f32.mrb[0].mxu0
    %2270 = vdwg.mxu0
    %2271 = vmatprep.subr.mxu0 0.0
    %v2272 = vand.u32 %v1974, 4294901760
    %2273 = vmatpush1.msra.mxu0 %v2272
    %2274 = vmatprep.subr.mxu0 0.0
    %2275 = vmatpush1.msra.mxu0 0.0
    %2276 = vmatprep.subr.mxu0 0.0
    %2277 = vmatpush1.msra.mxu0 0.0
    %2278 = vmatprep.subr.mxu0 0.0
    %2279 = vmatpush1.msra.mxu0 0.0
    %2280 = vmatprep.subr.mxu0 0.0
    %2281 = vmatpush1.msra.mxu0 0.0
    %2282 = vmatprep.subr.mxu0 0.0
    %2283 = vmatpush1.msra.mxu0 0.0
    %2284 = vmatprep.subr.mxu0 0.0
    %2285 = vmatpush1.msra.mxu0 0.0
    %2286 = vmatprep.subr.mxu0 0.0
    %2287 = vmatpush1.msra.mxu0 0.0
    %2288 = vmatprep.subr.mxu0 0.0
    %2289 = vmatpush1.msra.mxu0 0.0
    %2290 = vmatprep.subr.mxu0 0.0
    %2291 = vmatpush1.msra.mxu0 0.0
    %2292 = vmatprep.subr.mxu0 0.0
    %2293 = vmatpush1.msra.mxu0 0.0
    %2294 = vmatprep.subr.mxu0 0.0
    %2295 = vmatpush1.msra.mxu0 0.0
    %2296 = vmatprep.subr.mxu0 0.0
    %2297 = vmatpush1.msra.mxu0 0.0
    %2298 = vmatprep.subr.mxu0 0.0
    %2299 = vmatpush1.msra.mxu0 0.0
    %2300 = vmatprep.subr.mxu0 0.0
    %2301 = vmatpush1.msra.mxu0 0.0
    %2302 = vmatprep.subr.mxu0 0.0
    %2303 = vmatpush1.msra.mxu0 0.0
    %2304 = vmatprep.subr.mxu0 0.0
    %2305 = vmatpush1.msra.mxu0 0.0
    %2306 = vmatprep.subr.mxu0 0.0
    %2307 = vmatpush1.msra.mxu0 0.0
    %2308 = vmatprep.subr.mxu0 0.0
    %2309 = vmatpush1.msra.mxu0 0.0
    %2310 = vmatprep.subr.mxu0 0.0
    %2311 = vmatpush1.msra.mxu0 0.0
    %2312 = vmatprep.subr.mxu0 0.0
    %2313 = vmatpush1.msra.mxu0 0.0
    %2314 = vmatprep.subr.mxu0 0.0
    %2315 = vmatpush1.msra.mxu0 0.0
    %2316 = vmatprep.subr.mxu0 0.0
    %2317 = vmatpush1.msra.mxu0 0.0
    %2318 = vmatprep.subr.mxu0 0.0
    %2319 = vmatpush1.msra.mxu0 0.0
    %2320 = vmatprep.subr.mxu0 0.0
    %2321 = vmatpush1.msra.mxu0 0.0
    %2322 = vmatprep.subr.mxu0 0.0
    %2323 = vmatpush1.msra.mxu0 0.0
    %2324 = vmatprep.subr.mxu0 0.0
    %2325 = vmatpush1.msra.mxu0 0.0
    %2326 = vmatprep.subr.mxu0 0.0
    %2327 = vmatpush1.msra.mxu0 0.0
    %2328 = vmatprep.subr.mxu0 0.0
    %2329 = vmatpush1.msra.mxu0 0.0
    %2330 = vmatprep.subr.mxu0 0.0
    %2331 = vmatpush1.msra.mxu0 0.0
    %2332 = vmatprep.subr.mxu0 0.0
    %2333 = vmatpush1.msra.mxu0 0.0
    %2334 = vmatprep.subr.mxu0 0.0
    %2335 = vmatpush1.msra.mxu0 0.0
    %2336 = vmatprep.mubr.f32.mxu0 0.0
    %v2337 = vand.u32 %v1962, 4294901760
    %v2338 = vsub.f32 %v1962, %v2337
    %v2339 = vand.u32 %v2338, 4294901760
    %2340 = vmatmul.mubr.f32.gmra.mrb[0].mxu0 %v2339
    %v2341 = vpop.f32.mrb[0].mxu0
    %v2342 = vadd.f32 %v2247, %v2341
    %v2343 = vpop.f32.mrb[0].mxu0
    %2344 = vmatprep.mubr.f32.mxu0 0.0
    %v2345 = vand.u32 %v1965, 4294901760
    %v2346 = vsub.f32 %v1965, %v2345
    %v2347 = vand.u32 %v2346, 4294901760
    %2348 = vmatmul.mubr.f32.gmra.mrb[0].mxu0 %v2347
    %v2349 = vpop.f32.mrb[0].mxu0
    %v2350 = vadd.f32 %v2254, %v2349
    %v2351 = vpop.f32.mrb[0].mxu0
    %2352 = vmatprep.mubr.f32.mxu0 0.0
    %v2353 = vand.u32 %v1968, 4294901760
    %v2354 = vsub.f32 %v1968, %v2353
    %v2355 = vand.u32 %v2354, 4294901760
    %2356 = vmatmul.mubr.f32.gmra.mrb[0].mxu0 %v2355
    %v2357 = vpop.f32.mrb[0].mxu0
    %v2358 = vadd.f32 %v2261, %v2357
    %v2359 = vpop.f32.mrb[0].mxu0
    %2360 = vmatprep.mubr.f32.mxu0 0.0
    %v2361 = vand.u32 %v1971, 4294901760
    %v2362 = vsub.f32 %v1971, %v2361
    %v2363 = vand.u32 %v2362, 4294901760
    %2364 = vmatmul.mubr.f32.gmra.mrb[0].mxu0 %v2363
    %v2365 = vpop.f32.mrb[0].mxu0
    %v2366 = vadd.f32 %v2268, %v2365
    %v2367 = vpop.f32.mrb[0].mxu0
    %2368 = vdwg.mxu0
    %2369 = vmatprep.subr.mxu0 0.0
    %v2370 = vand.u32 %v1974, 4294901760
    %v2371 = vsub.f32 %v1974, %v2370
    %v2372 = vand.u32 %v2371, 4294901760
    %2373 = vmatpush1.msra.mxu0 %v2372
    %2374 = vmatprep.subr.mxu0 0.0
    %2375 = vmatpush1.msra.mxu0 0.0
    %2376 = vmatprep.subr.mxu0 0.0
    %2377 = vmatpush1.msra.mxu0 0.0
    %2378 = vmatprep.subr.mxu0 0.0
    %2379 = vmatpush1.msra.mxu0 0.0
    %2380 = vmatprep.subr.mxu0 0.0
    %2381 = vmatpush1.msra.mxu0 0.0
    %2382 = vmatprep.subr.mxu0 0.0
    %2383 = vmatpush1.msra.mxu0 0.0
    %2384 = vmatprep.subr.mxu0 0.0
    %2385 = vmatpush1.msra.mxu0 0.0
    %2386 = vmatprep.subr.mxu0 0.0
    %2387 = vmatpush1.msra.mxu0 0.0
    %2388 = vmatprep.subr.mxu0 0.0
    %2389 = vmatpush1.msra.mxu0 0.0
    %2390 = vmatprep.subr.mxu0 0.0
    %2391 = vmatpush1.msra.mxu0 0.0
    %2392 = vmatprep.subr.mxu0 0.0
    %2393 = vmatpush1.msra.mxu0 0.0
    %2394 = vmatprep.subr.mxu0 0.0
    %2395 = vmatpush1.msra.mxu0 0.0
    %2396 = vmatprep.subr.mxu0 0.0
    %2397 = vmatpush1.msra.mxu0 0.0
    %2398 = vmatprep.subr.mxu0 0.0
    %2399 = vmatpush1.msra.mxu0 0.0
    %2400 = vmatprep.subr.mxu0 0.0
    %2401 = vmatpush1.msra.mxu0 0.0
    %2402 = vmatprep.subr.mxu0 0.0
    %2403 = vmatpush1.msra.mxu0 0.0
    %2404 = vmatprep.subr.mxu0 0.0
    %2405 = vmatpush1.msra.mxu0 0.0
    %2406 = vmatprep.subr.mxu0 0.0
    %2407 = vmatpush1.msra.mxu0 0.0
    %2408 = vmatprep.subr.mxu0 0.0
    %2409 = vmatpush1.msra.mxu0 0.0
    %2410 = vmatprep.subr.mxu0 0.0
    %2411 = vmatpush1.msra.mxu0 0.0
    %2412 = vmatprep.subr.mxu0 0.0
    %2413 = vmatpush1.msra.mxu0 0.0
    %2414 = vmatprep.subr.mxu0 0.0
    %2415 = vmatpush1.msra.mxu0 0.0
    %2416 = vmatprep.subr.mxu0 0.0
    %2417 = vmatpush1.msra.mxu0 0.0
    %2418 = vmatprep.subr.mxu0 0.0
    %2419 = vmatpush1.msra.mxu0 0.0
    %2420 = vmatprep.subr.mxu0 0.0
    %2421 = vmatpush1.msra.mxu0 0.0
    %2422 = vmatprep.subr.mxu0 0.0
    %2423 = vmatpush1.msra.mxu0 0.0
    %2424 = vmatprep.subr.mxu0 0.0
    %2425 = vmatpush1.msra.mxu0 0.0
    %2426 = vmatprep.subr.mxu0 0.0
    %2427 = vmatpush1.msra.mxu0 0.0
    %2428 = vmatprep.subr.mxu0 0.0
    %2429 = vmatpush1.msra.mxu0 0.0
    %2430 = vmatprep.subr.mxu0 0.0
    %2431 = vmatpush1.msra.mxu0 0.0
    %2432 = vmatprep.subr.mxu0 0.0
    %2433 = vmatpush1.msra.mxu0 0.0
    %2434 = vmatprep.subr.mxu0 0.0
    %2435 = vmatpush1.msra.mxu0 0.0
    %2436 = vmatprep.mubr.f32.mxu0 0.0
    %v2437 = vand.u32 %v1962, 4294901760
    %2438 = vmatmul.mubr.f32.gmra.mrb[0].mxu0 %v2437
    %v2439 = vpop.f32.mrb[0].mxu0
    %v2440 = vadd.f32 %v2342, %v2439
    %v2441 = vpop.f32.mrb[0].mxu0
    %2442 = vmatprep.mubr.f32.mxu0 0.0
    %v2443 = vand.u32 %v1965, 4294901760
    %2444 = vmatmul.mubr.f32.gmra.mrb[0].mxu0 %v2443
    %v2445 = vpop.f32.mrb[0].mxu0
    %v2446 = vadd.f32 %v2350, %v2445
    %v2447 = vpop.f32.mrb[0].mxu0
    %2448 = vmatprep.mubr.f32.mxu0 0.0
    %v2449 = vand.u32 %v1968, 4294901760
    %2450 = vmatmul.mubr.f32.gmra.mrb[0].mxu0 %v2449
    %v2451 = vpop.f32.mrb[0].mxu0
    %v2452 = vadd.f32 %v2358, %v2451
    %v2453 = vpop.f32.mrb[0].mxu0
    %2454 = vmatprep.mubr.f32.mxu0 0.0
    %v2455 = vand.u32 %v1971, 4294901760
    %2456 = vmatmul.mubr.f32.gmra.mrb[0].mxu0 %v2455
    %v2457 = vpop.f32.mrb[0].mxu0
    %v2458 = vadd.f32 %v2366, %v2457
    %v2459 = vpop.f32.mrb[0].mxu0
    %2460 = vdwg.mxu0
    %2461 = vmatprep.subr.mxu0 0.0
    %v2462 = vand.u32 %v1974, 4294901760
    %2463 = vmatpush1.msra.mxu0 %v2462
    %2464 = vmatprep.subr.mxu0 0.0
    %2465 = vmatpush1.msra.mxu0 0.0
    %2466 = vmatprep.subr.mxu0 0.0
    %2467 = vmatpush1.msra.mxu0 0.0
    %2468 = vmatprep.subr.mxu0 0.0
    %2469 = vmatpush1.msra.mxu0 0.0
    %2470 = vmatprep.subr.mxu0 0.0
    %2471 = vmatpush1.msra.mxu0 0.0
    %2472 = vmatprep.subr.mxu0 0.0
    %2473 = vmatpush1.msra.mxu0 0.0
    %2474 = vmatprep.subr.mxu0 0.0
    %2475 = vmatpush1.msra.mxu0 0.0
    %2476 = vmatprep.subr.mxu0 0.0
    %2477 = vmatpush1.msra.mxu0 0.0
    %2478 = vmatprep.subr.mxu0 0.0
    %2479 = vmatpush1.msra.mxu0 0.0
    %2480 = vmatprep.subr.mxu0 0.0
    %2481 = vmatpush1.msra.mxu0 0.0
    %2482 = vmatprep.subr.mxu0 0.0
    %2483 = vmatpush1.msra.mxu0 0.0
    %2484 = vmatprep.subr.mxu0 0.0
    %2485 = vmatpush1.msra.mxu0 0.0
    %2486 = vmatprep.subr.mxu0 0.0
    %2487 = vmatpush1.msra.mxu0 0.0
    %2488 = vmatprep.subr.mxu0 0.0
    %2489 = vmatpush1.msra.mxu0 0.0
    %2490 = vmatprep.subr.mxu0 0.0
    %2491 = vmatpush1.msra.mxu0 0.0
    %2492 = vmatprep.subr.mxu0 0.0
    %2493 = vmatpush1.msra.mxu0 0.0
    %2494 = vmatprep.subr.mxu0 0.0
    %2495 = vmatpush1.msra.mxu0 0.0
    %2496 = vmatprep.subr.mxu0 0.0
    %2497 = vmatpush1.msra.mxu0 0.0
    %2498 = vmatprep.subr.mxu0 0.0
    %2499 = vmatpush1.msra.mxu0 0.0
    %2500 = vmatprep.subr.mxu0 0.0
    %2501 = vmatpush1.msra.mxu0 0.0
    %2502 = vmatprep.subr.mxu0 0.0
    %2503 = vmatpush1.msra.mxu0 0.0
    %2504 = vmatprep.subr.mxu0 0.0
    %2505 = vmatpush1.msra.mxu0 0.0
    %2506 = vmatprep.subr.mxu0 0.0
    %2507 = vmatpush1.msra.mxu0 0.0
    %2508 = vmatprep.subr.mxu0 0.0
    %2509 = vmatpush1.msra.mxu0 0.0
    %2510 = vmatprep.subr.mxu0 0.0
    %2511 = vmatpush1.msra.mxu0 0.0
    %2512 = vmatprep.subr.mxu0 0.0
    %2513 = vmatpush1.msra.mxu0 0.0
    %2514 = vmatprep.subr.mxu0 0.0
    %2515 = vmatpush1.msra.mxu0 0.0
    %2516 = vmatprep.subr.mxu0 0.0
    %2517 = vmatpush1.msra.mxu0 0.0
    %2518 = vmatprep.subr.mxu0 0.0
    %2519 = vmatpush1.msra.mxu0 0.0
    %2520 = vmatprep.subr.mxu0 0.0
    %2521 = vmatpush1.msra.mxu0 0.0
    %2522 = vmatprep.subr.mxu0 0.0
    %2523 = vmatpush1.msra.mxu0 0.0
    %2524 = vmatprep.subr.mxu0 0.0
    %2525 = vmatpush1.msra.mxu0 0.0
    %2526 = vmatprep.mubr.f32.mxu0 0.0
    %v2527 = vand.u32 %v1962, 4294901760
    %2528 = vmatmul.mubr.f32.gmra.mrb[0].mxu0 %v2527
    %v2529 = vpop.f32.mrb[0].mxu0
    %v2530 = vadd.f32 %v2440, %v2529
    %v2531 = vpop.f32.mrb[0].mxu0
    %2532 = vmatprep.mubr.f32.mxu0 0.0
    %v2533 = vand.u32 %v1965, 4294901760
    %2534 = vmatmul.mubr.f32.gmra.mrb[0].mxu0 %v2533
    %v2535 = vpop.f32.mrb[0].mxu0
    %v2536 = vadd.f32 %v2446, %v2535
    %v2537 = vpop.f32.mrb[0].mxu0
    %2538 = vmatprep.mubr.f32.mxu0 0.0
    %v2539 = vand.u32 %v1968, 4294901760
    %2540 = vmatmul.mubr.f32.gmra.mrb[0].mxu0 %v2539
    %v2541 = vpop.f32.mrb[0].mxu0
    %v2542 = vadd.f32 %v2452, %v2541
    %v2543 = vpop.f32.mrb[0].mxu0
    %2544 = vmatprep.mubr.f32.mxu0 0.0
    %v2545 = vand.u32 %v1971, 4294901760
    %2546 = vmatmul.mubr.f32.gmra.mrb[0].mxu0 %v2545
    %v2547 = vpop.f32.mrb[0].mxu0
    %v2548 = vadd.f32 %v2458, %v2547
    %v2549 = vpop.f32.mrb[0].mxu0
    %2550 = vdwg.mxu0
    %v2551 = vld [vmem:[%s1 + $0x118] sm:$0xff]
    %v2552 = vld [vmem:[%s1 + $0x120] sm:$0xff]
    %v2553 = vld [vmem:[%s1 + $0x128] sm:$0xff]
    %v2554 = vld [vmem:[%s1 + $0x130] sm:$0xff]
    %2556 = vset.pattern.permute.xlu0 0
    %2557 = vperm.xlu0 %2556, %v2551
    %v2558 = vpop.permute.xlu0 %2557
    %2561 = vset.pattern.permute.xlu0 0
    %2562 = vperm.xlu0 %2561, %v2552
    %v2563 = vpop.permute.xlu0 %2562
    %2566 = vset.pattern.permute.xlu0 0
    %2567 = vperm.xlu0 %2566, %v2553
    %v2568 = vpop.permute.xlu0 %2567
    %2571 = vset.pattern.permute.xlu0 0
    %2572 = vperm.xlu0 %2571, %v2554
    %v2573 = vpop.permute.xlu0 %2572
    %v2575 = vmul.f32 %v2530, %v2558
    %v2576 = vmul.f32 %v2536, %v2563
    %v2577 = vmul.f32 %v2542, %v2568
    %v2578 = vmul.f32 %v2548, %v2573
    %v2579 = vld [vmem:[%s1 + $0x138] sm:$0xff]
    %v2580 = vld [vmem:[%s1 + $0x140] sm:$0xff]
    %v2581 = vld [vmem:[%s1 + $0x148] sm:$0xff]
    %v2582 = vld [vmem:[%s1 + $0x150] sm:$0xff]
    %2584 = vset.pattern.permute.xlu0 0
    %2585 = vperm.xlu0 %2584, %v2579
    %v2586 = vpop.permute.xlu0 %2585
    %2589 = vset.pattern.permute.xlu0 0
    %2590 = vperm.xlu0 %2589, %v2580
    %v2591 = vpop.permute.xlu0 %2590
    %2594 = vset.pattern.permute.xlu0 0
    %2595 = vperm.xlu0 %2594, %v2581
    %v2596 = vpop.permute.xlu0 %2595
    %2599 = vset.pattern.permute.xlu0 0
    %2600 = vperm.xlu0 %2599, %v2582
    %v2601 = vpop.permute.xlu0 %2600
    %v2603 = vadd.f32 %v2575, %v2586
    %v2604 = vadd.f32 %v2576, %v2591
    %v2605 = vadd.f32 %v2577, %v2596
    %v2606 = vadd.f32 %v2578, %v2601
    %v2607 = vmax.f32 %v2603, 0.0
    %v2608 = vmax.f32 %v2604, 0.0
    %v2609 = vmax.f32 %v2605, 0.0
    %v2610 = vmax.f32 %v2606, 0.0
    %v2611 = vld [vmem:[%s1 + $0xc8] sm:$0xff]
    %v2613 = vsel %vm1311, %v1306, 0
    %v2616 = vsel %vm1311, %v1307, 0
    %v2619 = vsel %vm1311, %v1308, 0
    %v2622 = vsel %vm1311, %v1309, 0
    %2624 = vmatprep.subr.mxu0 0.0
    %v2625 = vand.u32 %v2611, 4294901760
    %2626 = vmatpush1.msra.mxu0 %v2625
    %2627 = vmatprep.subr.mxu0 0.0
    %2628 = vmatpush1.msra.mxu0 0.0
    %2629 = vmatprep.subr.mxu0 0.0
    %2630 = vmatpush1.msra.mxu0 0.0
    %2631 = vmatprep.subr.mxu0 0.0
    %2632 = vmatpush1.msra.mxu0 0.0
    %2633 = vmatprep.subr.mxu0 0.0
    %2634 = vmatpush1.msra.mxu0 0.0
    %2635 = vmatprep.subr.mxu0 0.0
    %2636 = vmatpush1.msra.mxu0 0.0
    %2637 = vmatprep.subr.mxu0 0.0
    %2638 = vmatpush1.msra.mxu0 0.0
    %2639 = vmatprep.subr.mxu0 0.0
    %2640 = vmatpush1.msra.mxu0 0.0
    %2641 = vmatprep.subr.mxu0 0.0
    %2642 = vmatpush1.msra.mxu0 0.0
    %2643 = vmatprep.subr.mxu0 0.0
    %2644 = vmatpush1.msra.mxu0 0.0
    %2645 = vmatprep.subr.mxu0 0.0
    %2646 = vmatpush1.msra.mxu0 0.0
    %2647 = vmatprep.subr.mxu0 0.0
    %2648 = vmatpush1.msra.mxu0 0.0
    %2649 = vmatprep.subr.mxu0 0.0
    %2650 = vmatpush1.msra.mxu0 0.0
    %2651 = vmatprep.subr.mxu0 0.0
    %2652 = vmatpush1.msra.mxu0 0.0
    %2653 = vmatprep.subr.mxu0 0.0
    %2654 = vmatpush1.msra.mxu0 0.0
    %2655 = vmatprep.subr.mxu0 0.0
    %2656 = vmatpush1.msra.mxu0 0.0
    %2657 = vmatprep.subr.mxu0 0.0
    %2658 = vmatpush1.msra.mxu0 0.0
    %2659 = vmatprep.subr.mxu0 0.0
    %2660 = vmatpush1.msra.mxu0 0.0
    %2661 = vmatprep.subr.mxu0 0.0
    %2662 = vmatpush1.msra.mxu0 0.0
    %2663 = vmatprep.subr.mxu0 0.0
    %2664 = vmatpush1.msra.mxu0 0.0
    %2665 = vmatprep.subr.mxu0 0.0
    %2666 = vmatpush1.msra.mxu0 0.0
    %2667 = vmatprep.subr.mxu0 0.0
    %2668 = vmatpush1.msra.mxu0 0.0
    %2669 = vmatprep.subr.mxu0 0.0
    %2670 = vmatpush1.msra.mxu0 0.0
    %2671 = vmatprep.subr.mxu0 0.0
    %2672 = vmatpush1.msra.mxu0 0.0
    %2673 = vmatprep.subr.mxu0 0.0
    %2674 = vmatpush1.msra.mxu0 0.0
    %2675 = vmatprep.subr.mxu0 0.0
    %2676 = vmatpush1.msra.mxu0 0.0
    %2677 = vmatprep.subr.mxu0 0.0
    %2678 = vmatpush1.msra.mxu0 0.0
    %2679 = vmatprep.subr.mxu0 0.0
    %2680 = vmatpush1.msra.mxu0 0.0
    %2681 = vmatprep.subr.mxu0 0.0
    %2682 = vmatpush1.msra.mxu0 0.0
    %2683 = vmatprep.subr.mxu0 0.0
    %2684 = vmatpush1.msra.mxu0 0.0
    %2685 = vmatprep.subr.mxu0 0.0
    %2686 = vmatpush1.msra.mxu0 0.0
    %2687 = vmatprep.subr.mxu0 0.0
    %2688 = vmatpush1.msra.mxu0 0.0
    %2689 = vmatprep.mubr.f32.mxu0 0.0
    %v2690 = vand.u32 %v2613, 4294901760
    %v2691 = vsub.f32 %v2613, %v2690
    %v2692 = vand.u32 %v2691, 4294901760
    %v2693 = vsub.f32 %v2691, %v2692
    %v2694 = vand.u32 %v2693, 4294901760
    %2695 = vmatmul.mubr.f32.gmra.mrb[0].mxu0 %v2694
    %v2696 = vpop.f32.mrb[0].mxu0
    %v2697 = vadd.f32 0.0, %v2696
    %v2698 = vpop.f32.mrb[0].mxu0
    %2699 = vmatprep.mubr.f32.mxu0 0.0
    %v2700 = vand.u32 %v2616, 4294901760
    %v2701 = vsub.f32 %v2616, %v2700
    %v2702 = vand.u32 %v2701, 4294901760
    %v2703 = vsub.f32 %v2701, %v2702
    %v2704 = vand.u32 %v2703, 4294901760
    %2705 = vmatmul.mubr.f32.gmra.mrb[0].mxu0 %v2704
    %v2706 = vpop.f32.mrb[0].mxu0
    %v2707 = vadd.f32 0.0, %v2706
    %v2708 = vpop.f32.mrb[0].mxu0
    %2709 = vmatprep.mubr.f32.mxu0 0.0
    %v2710 = vand.u32 %v2619, 4294901760
    %v2711 = vsub.f32 %v2619, %v2710
    %v2712 = vand.u32 %v2711, 4294901760
    %v2713 = vsub.f32 %v2711, %v2712
    %v2714 = vand.u32 %v2713, 4294901760
    %2715 = vmatmul.mubr.f32.gmra.mrb[0].mxu0 %v2714
    %v2716 = vpop.f32.mrb[0].mxu0
    %v2717 = vadd.f32 0.0, %v2716
    %v2718 = vpop.f32.mrb[0].mxu0
    %2719 = vmatprep.mubr.f32.mxu0 0.0
    %v2720 = vand.u32 %v2622, 4294901760
    %v2721 = vsub.f32 %v2622, %v2720
    %v2722 = vand.u32 %v2721, 4294901760
    %v2723 = vsub.f32 %v2721, %v2722
    %v2724 = vand.u32 %v2723, 4294901760
    %2725 = vmatmul.mubr.f32.gmra.mrb[0].mxu0 %v2724
    %v2726 = vpop.f32.mrb[0].mxu0
    %v2727 = vadd.f32 0.0, %v2726
    %v2728 = vpop.f32.mrb[0].mxu0
    %2729 = vdwg.mxu0
    %2730 = vmatprep.subr.mxu0 0.0
    %v2731 = vand.u32 %v2611, 4294901760
    %v2732 = vsub.f32 %v2611, %v2731
    %v2733 = vand.u32 %v2732, 4294901760
    %v2734 = vsub.f32 %v2732, %v2733
    %v2735 = vand.u32 %v2734, 4294901760
    %2736 = vmatpush1.msra.mxu0 %v2735
    %2737 = vmatprep.subr.mxu0 0.0
    %2738 = vmatpush1.msra.mxu0 0.0
    %2739 = vmatprep.subr.mxu0 0.0
    %2740 = vmatpush1.msra.mxu0 0.0
    %2741 = vmatprep.subr.mxu0 0.0
    %2742 = vmatpush1.msra.mxu0 0.0
    %2743 = vmatprep.subr.mxu0 0.0
    %2744 = vmatpush1.msra.mxu0 0.0
    %2745 = vmatprep.subr.mxu0 0.0
    %2746 = vmatpush1.msra.mxu0 0.0
    %2747 = vmatprep.subr.mxu0 0.0
    %2748 = vmatpush1.msra.mxu0 0.0
    %2749 = vmatprep.subr.mxu0 0.0
    %2750 = vmatpush1.msra.mxu0 0.0
    %2751 = vmatprep.subr.mxu0 0.0
    %2752 = vmatpush1.msra.mxu0 0.0
    %2753 = vmatprep.subr.mxu0 0.0
    %2754 = vmatpush1.msra.mxu0 0.0
    %2755 = vmatprep.subr.mxu0 0.0
    %2756 = vmatpush1.msra.mxu0 0.0
    %2757 = vmatprep.subr.mxu0 0.0
    %2758 = vmatpush1.msra.mxu0 0.0
    %2759 = vmatprep.subr.mxu0 0.0
    %2760 = vmatpush1.msra.mxu0 0.0
    %2761 = vmatprep.subr.mxu0 0.0
    %2762 = vmatpush1.msra.mxu0 0.0
    %2763 = vmatprep.subr.mxu0 0.0
    %2764 = vmatpush1.msra.mxu0 0.0
    %2765 = vmatprep.subr.mxu0 0.0
    %2766 = vmatpush1.msra.mxu0 0.0
    %2767 = vmatprep.subr.mxu0 0.0
    %2768 = vmatpush1.msra.mxu0 0.0
    %2769 = vmatprep.subr.mxu0 0.0
    %2770 = vmatpush1.msra.mxu0 0.0
    %2771 = vmatprep.subr.mxu0 0.0
    %2772 = vmatpush1.msra.mxu0 0.0
    %2773 = vmatprep.subr.mxu0 0.0
    %2774 = vmatpush1.msra.mxu0 0.0
    %2775 = vmatprep.subr.mxu0 0.0
    %2776 = vmatpush1.msra.mxu0 0.0
    %2777 = vmatprep.subr.mxu0 0.0
    %2778 = vmatpush1.msra.mxu0 0.0
    %2779 = vmatprep.subr.mxu0 0.0
    %2780 = vmatpush1.msra.mxu0 0.0
    %2781 = vmatprep.subr.mxu0 0.0
    %2782 = vmatpush1.msra.mxu0 0.0
    %2783 = vmatprep.subr.mxu0 0.0
    %2784 = vmatpush1.msra.mxu0 0.0
    %2785 = vmatprep.subr.mxu0 0.0
    %2786 = vmatpush1.msra.mxu0 0.0
    %2787 = vmatprep.subr.mxu0 0.0
    %2788 = vmatpush1.msra.mxu0 0.0
    %2789 = vmatprep.subr.mxu0 0.0
    %2790 = vmatpush1.msra.mxu0 0.0
    %2791 = vmatprep.subr.mxu0 0.0
    %2792 = vmatpush1.msra.mxu0 0.0
    %2793 = vmatprep.subr.mxu0 0.0
    %2794 = vmatpush1.msra.mxu0 0.0
    %2795 = vmatprep.subr.mxu0 0.0
    %2796 = vmatpush1.msra.mxu0 0.0
    %2797 = vmatprep.subr.mxu0 0.0
    %2798 = vmatpush1.msra.mxu0 0.0
    %2799 = vmatprep.mubr.f32.mxu0 0.0
    %v2800 = vand.u32 %v2613, 4294901760
    %2801 = vmatmul.mubr.f32.gmra.mrb[0].mxu0 %v2800
    %v2802 = vpop.f32.mrb[0].mxu0
    %v2803 = vadd.f32 %v2697, %v2802
    %v2804 = vpop.f32.mrb[0].mxu0
    %2805 = vmatprep.mubr.f32.mxu0 0.0
    %v2806 = vand.u32 %v2616, 4294901760
    %2807 = vmatmul.mubr.f32.gmra.mrb[0].mxu0 %v2806
    %v2808 = vpop.f32.mrb[0].mxu0
    %v2809 = vadd.f32 %v2707, %v2808
    %v2810 = vpop.f32.mrb[0].mxu0
    %2811 = vmatprep.mubr.f32.mxu0 0.0
    %v2812 = vand.u32 %v2619, 4294901760
    %2813 = vmatmul.mubr.f32.gmra.mrb[0].mxu0 %v2812
    %v2814 = vpop.f32.mrb[0].mxu0
    %v2815 = vadd.f32 %v2717, %v2814
    %v2816 = vpop.f32.mrb[0].mxu0
    %2817 = vmatprep.mubr.f32.mxu0 0.0
    %v2818 = vand.u32 %v2622, 4294901760
    %2819 = vmatmul.mubr.f32.gmra.mrb[0].mxu0 %v2818
    %v2820 = vpop.f32.mrb[0].mxu0
    %v2821 = vadd.f32 %v2727, %v2820
    %v2822 = vpop.f32.mrb[0].mxu0
    %2823 = vdwg.mxu0
    %2824 = vmatprep.subr.mxu0 0.0
    %v2825 = vand.u32 %v2611, 4294901760
    %v2826 = vsub.f32 %v2611, %v2825
    %2827 = vmatpush1.msra.mxu0 %v2826
    %2828 = vmatprep.subr.mxu0 0.0
    %2829 = vmatpush1.msra.mxu0 0.0
    %2830 = vmatprep.subr.mxu0 0.0
    %2831 = vmatpush1.msra.mxu0 0.0
    %2832 = vmatprep.subr.mxu0 0.0
    %2833 = vmatpush1.msra.mxu0 0.0
    %2834 = vmatprep.subr.mxu0 0.0
    %2835 = vmatpush1.msra.mxu0 0.0
    %2836 = vmatprep.subr.mxu0 0.0
    %2837 = vmatpush1.msra.mxu0 0.0
    %2838 = vmatprep.subr.mxu0 0.0
    %2839 = vmatpush1.msra.mxu0 0.0
    %2840 = vmatprep.subr.mxu0 0.0
    %2841 = vmatpush1.msra.mxu0 0.0
    %2842 = vmatprep.subr.mxu0 0.0
    %2843 = vmatpush1.msra.mxu0 0.0
    %2844 = vmatprep.subr.mxu0 0.0
    %2845 = vmatpush1.msra.mxu0 0.0
    %2846 = vmatprep.subr.mxu0 0.0
    %2847 = vmatpush1.msra.mxu0 0.0
    %2848 = vmatprep.subr.mxu0 0.0
    %2849 = vmatpush1.msra.mxu0 0.0
    %2850 = vmatprep.subr.mxu0 0.0
    %2851 = vmatpush1.msra.mxu0 0.0
    %2852 = vmatprep.subr.mxu0 0.0
    %2853 = vmatpush1.msra.mxu0 0.0
    %2854 = vmatprep.subr.mxu0 0.0
    %2855 = vmatpush1.msra.mxu0 0.0
    %2856 = vmatprep.subr.mxu0 0.0
    %2857 = vmatpush1.msra.mxu0 0.0
    %2858 = vmatprep.subr.mxu0 0.0
    %2859 = vmatpush1.msra.mxu0 0.0
    %2860 = vmatprep.subr.mxu0 0.0
    %2861 = vmatpush1.msra.mxu0 0.0
    %2862 = vmatprep.subr.mxu0 0.0
    %2863 = vmatpush1.msra.mxu0 0.0
    %2864 = vmatprep.subr.mxu0 0.0
    %2865 = vmatpush1.msra.mxu0 0.0
    %2866 = vmatprep.subr.mxu0 0.0
    %2867 = vmatpush1.msra.mxu0 0.0
    %2868 = vmatprep.subr.mxu0 0.0
    %2869 = vmatpush1.msra.mxu0 0.0
    %2870 = vmatprep.subr.mxu0 0.0
    %2871 = vmatpush1.msra.mxu0 0.0
    %2872 = vmatprep.subr.mxu0 0.0
    %2873 = vmatpush1.msra.mxu0 0.0
    %2874 = vmatprep.subr.mxu0 0.0
    %2875 = vmatpush1.msra.mxu0 0.0
    %2876 = vmatprep.subr.mxu0 0.0
    %2877 = vmatpush1.msra.mxu0 0.0
    %2878 = vmatprep.subr.mxu0 0.0
    %2879 = vmatpush1.msra.mxu0 0.0
    %2880 = vmatprep.subr.mxu0 0.0
    %2881 = vmatpush1.msra.mxu0 0.0
    %2882 = vmatprep.subr.mxu0 0.0
    %2883 = vmatpush1.msra.mxu0 0.0
    %2884 = vmatprep.subr.mxu0 0.0
    %2885 = vmatpush1.msra.mxu0 0.0
    %2886 = vmatprep.subr.mxu0 0.0
    %2887 = vmatpush1.msra.mxu0 0.0
    %2888 = vmatprep.subr.mxu0 0.0
    %2889 = vmatpush1.msra.mxu0 0.0
    %2890 = vmatprep.mubr.f32.mxu0 0.0
    %v2891 = vand.u32 %v2613, 4294901760
    %v2892 = vsub.f32 %v2613, %v2891
    %2893 = vmatmul.mubr.f32.gmra.mrb[0].mxu0 %v2892
    %v2894 = vpop.f32.mrb[0].mxu0
    %v2895 = vadd.f32 %v2803, %v2894
    %v2896 = vpop.f32.mrb[0].mxu0
    %2897 = vmatprep.mubr.f32.mxu0 0.0
    %v2898 = vand.u32 %v2616, 4294901760
    %v2899 = vsub.f32 %v2616, %v2898
    %2900 = vmatmul.mubr.f32.gmra.mrb[0].mxu0 %v2899
    %v2901 = vpop.f32.mrb[0].mxu0
    %v2902 = vadd.f32 %v2809, %v2901
    %v2903 = vpop.f32.mrb[0].mxu0
    %2904 = vmatprep.mubr.f32.mxu0 0.0
    %v2905 = vand.u32 %v2619, 4294901760
    %v2906 = vsub.f32 %v2619, %v2905
    %2907 = vmatmul.mubr.f32.gmra.mrb[0].mxu0 %v2906
    %v2908 = vpop.f32.mrb[0].mxu0
    %v2909 = vadd.f32 %v2815, %v2908
    %v2910 = vpop.f32.mrb[0].mxu0
    %2911 = vmatprep.mubr.f32.mxu0 0.0
    %v2912 = vand.u32 %v2622, 4294901760
    %v2913 = vsub.f32 %v2622, %v2912
    %2914 = vmatmul.mubr.f32.gmra.mrb[0].mxu0 %v2913
    %v2915 = vpop.f32.mrb[0].mxu0
    %v2916 = vadd.f32 %v2821, %v2915
    %v2917 = vpop.f32.mrb[0].mxu0
    %2918 = vdwg.mxu0
    %2919 = vmatprep.subr.mxu0 0.0
    %v2920 = vand.u32 %v2611, 4294901760
    %2921 = vmatpush1.msra.mxu0 %v2920
    %2922 = vmatprep.subr.mxu0 0.0
    %2923 = vmatpush1.msra.mxu0 0.0
    %2924 = vmatprep.subr.mxu0 0.0
    %2925 = vmatpush1.msra.mxu0 0.0
    %2926 = vmatprep.subr.mxu0 0.0
    %2927 = vmatpush1.msra.mxu0 0.0
    %2928 = vmatprep.subr.mxu0 0.0
    %2929 = vmatpush1.msra.mxu0 0.0
    %2930 = vmatprep.subr.mxu0 0.0
    %2931 = vmatpush1.msra.mxu0 0.0
    %2932 = vmatprep.subr.mxu0 0.0
    %2933 = vmatpush1.msra.mxu0 0.0
    %2934 = vmatprep.subr.mxu0 0.0
    %2935 = vmatpush1.msra.mxu0 0.0
    %2936 = vmatprep.subr.mxu0 0.0
    %2937 = vmatpush1.msra.mxu0 0.0
    %2938 = vmatprep.subr.mxu0 0.0
    %2939 = vmatpush1.msra.mxu0 0.0
    %2940 = vmatprep.subr.mxu0 0.0
    %2941 = vmatpush1.msra.mxu0 0.0
    %2942 = vmatprep.subr.mxu0 0.0
    %2943 = vmatpush1.msra.mxu0 0.0
    %2944 = vmatprep.subr.mxu0 0.0
    %2945 = vmatpush1.msra.mxu0 0.0
    %2946 = vmatprep.subr.mxu0 0.0
    %2947 = vmatpush1.msra.mxu0 0.0
    %2948 = vmatprep.subr.mxu0 0.0
    %2949 = vmatpush1.msra.mxu0 0.0
    %2950 = vmatprep.subr.mxu0 0.0
    %2951 = vmatpush1.msra.mxu0 0.0
    %2952 = vmatprep.subr.mxu0 0.0
    %2953 = vmatpush1.msra.mxu0 0.0
    %2954 = vmatprep.subr.mxu0 0.0
    %2955 = vmatpush1.msra.mxu0 0.0
    %2956 = vmatprep.subr.mxu0 0.0
    %2957 = vmatpush1.msra.mxu0 0.0
    %2958 = vmatprep.subr.mxu0 0.0
    %2959 = vmatpush1.msra.mxu0 0.0
    %2960 = vmatprep.subr.mxu0 0.0
    %2961 = vmatpush1.msra.mxu0 0.0
    %2962 = vmatprep.subr.mxu0 0.0
    %2963 = vmatpush1.msra.mxu0 0.0
    %2964 = vmatprep.subr.mxu0 0.0
    %2965 = vmatpush1.msra.mxu0 0.0
    %2966 = vmatprep.subr.mxu0 0.0
    %2967 = vmatpush1.msra.mxu0 0.0
    %2968 = vmatprep.subr.mxu0 0.0
    %2969 = vmatpush1.msra.mxu0 0.0
    %2970 = vmatprep.subr.mxu0 0.0
    %2971 = vmatpush1.msra.mxu0 0.0
    %2972 = vmatprep.subr.mxu0 0.0
    %2973 = vmatpush1.msra.mxu0 0.0
    %2974 = vmatprep.subr.mxu0 0.0
    %2975 = vmatpush1.msra.mxu0 0.0
    %2976 = vmatprep.subr.mxu0 0.0
    %2977 = vmatpush1.msra.mxu0 0.0
    %2978 = vmatprep.subr.mxu0 0.0
    %2979 = vmatpush1.msra.mxu0 0.0
    %2980 = vmatprep.subr.mxu0 0.0
    %2981 = vmatpush1.msra.mxu0 0.0
    %2982 = vmatprep.subr.mxu0 0.0
    %2983 = vmatpush1.msra.mxu0 0.0
    %2984 = vmatprep.mubr.f32.mxu0 0.0
    %v2985 = vand.u32 %v2613, 4294901760
    %v2986 = vsub.f32 %v2613, %v2985
    %v2987 = vand.u32 %v2986, 4294901760
    %2988 = vmatmul.mubr.f32.gmra.mrb[0].mxu0 %v2987
    %v2989 = vpop.f32.mrb[0].mxu0
    %v2990 = vadd.f32 %v2895, %v2989
    %v2991 = vpop.f32.mrb[0].mxu0
    %2992 = vmatprep.mubr.f32.mxu0 0.0
    %v2993 = vand.u32 %v2616, 4294901760
    %v2994 = vsub.f32 %v2616, %v2993
    %v2995 = vand.u32 %v2994, 4294901760
    %2996 = vmatmul.mubr.f32.gmra.mrb[0].mxu0 %v2995
    %v2997 = vpop.f32.mrb[0].mxu0
    %v2998 = vadd.f32 %v2902, %v2997
    %v2999 = vpop.f32.mrb[0].mxu0
    %3000 = vmatprep.mubr.f32.mxu0 0.0
    %v3001 = vand.u32 %v2619, 4294901760
    %v3002 = vsub.f32 %v2619, %v3001
    %v3003 = vand.u32 %v3002, 4294901760
    %3004 = vmatmul.mubr.f32.gmra.mrb[0].mxu0 %v3003
    %v3005 = vpop.f32.mrb[0].mxu0
    %v3006 = vadd.f32 %v2909, %v3005
    %v3007 = vpop.f32.mrb[0].mxu0
    %3008 = vmatprep.mubr.f32.mxu0 0.0
    %v3009 = vand.u32 %v2622, 4294901760
    %v3010 = vsub.f32 %v2622, %v3009
    %v3011 = vand.u32 %v3010, 4294901760
    %3012 = vmatmul.mubr.f32.gmra.mrb[0].mxu0 %v3011
    %v3013 = vpop.f32.mrb[0].mxu0
    %v3014 = vadd.f32 %v2916, %v3013
    %v3015 = vpop.f32.mrb[0].mxu0
    %3016 = vdwg.mxu0
    %3017 = vmatprep.subr.mxu0 0.0
    %v3018 = vand.u32 %v2611, 4294901760
    %v3019 = vsub.f32 %v2611, %v3018
    %v3020 = vand.u32 %v3019, 4294901760
    %3021 = vmatpush1.msra.mxu0 %v3020
    %3022 = vmatprep.subr.mxu0 0.0
    %3023 = vmatpush1.msra.mxu0 0.0
    %3024 = vmatprep.subr.mxu0 0.0
    %3025 = vmatpush1.msra.mxu0 0.0
    %3026 = vmatprep.subr.mxu0 0.0
    %3027 = vmatpush1.msra.mxu0 0.0
    %3028 = vmatprep.subr.mxu0 0.0
    %3029 = vmatpush1.msra.mxu0 0.0
    %3030 = vmatprep.subr.mxu0 0.0
    %3031 = vmatpush1.msra.mxu0 0.0
    %3032 = vmatprep.subr.mxu0 0.0
    %3033 = vmatpush1.msra.mxu0 0.0
    %3034 = vmatprep.subr.mxu0 0.0
    %3035 = vmatpush1.msra.mxu0 0.0
    %3036 = vmatprep.subr.mxu0 0.0
    %3037 = vmatpush1.msra.mxu0 0.0
    %3038 = vmatprep.subr.mxu0 0.0
    %3039 = vmatpush1.msra.mxu0 0.0
    %3040 = vmatprep.subr.mxu0 0.0
    %3041 = vmatpush1.msra.mxu0 0.0
    %3042 = vmatprep.subr.mxu0 0.0
    %3043 = vmatpush1.msra.mxu0 0.0
    %3044 = vmatprep.subr.mxu0 0.0
    %3045 = vmatpush1.msra.mxu0 0.0
    %3046 = vmatprep.subr.mxu0 0.0
    %3047 = vmatpush1.msra.mxu0 0.0
    %3048 = vmatprep.subr.mxu0 0.0
    %3049 = vmatpush1.msra.mxu0 0.0
    %3050 = vmatprep.subr.mxu0 0.0
    %3051 = vmatpush1.msra.mxu0 0.0
    %3052 = vmatprep.subr.mxu0 0.0
    %3053 = vmatpush1.msra.mxu0 0.0
    %3054 = vmatprep.subr.mxu0 0.0
    %3055 = vmatpush1.msra.mxu0 0.0
    %3056 = vmatprep.subr.mxu0 0.0
    %3057 = vmatpush1.msra.mxu0 0.0
    %3058 = vmatprep.subr.mxu0 0.0
    %3059 = vmatpush1.msra.mxu0 0.0
    %3060 = vmatprep.subr.mxu0 0.0
    %3061 = vmatpush1.msra.mxu0 0.0
    %3062 = vmatprep.subr.mxu0 0.0
    %3063 = vmatpush1.msra.mxu0 0.0
    %3064 = vmatprep.subr.mxu0 0.0
    %3065 = vmatpush1.msra.mxu0 0.0
    %3066 = vmatprep.subr.mxu0 0.0
    %3067 = vmatpush1.msra.mxu0 0.0
    %3068 = vmatprep.subr.mxu0 0.0
    %3069 = vmatpush1.msra.mxu0 0.0
    %3070 = vmatprep.subr.mxu0 0.0
    %3071 = vmatpush1.msra.mxu0 0.0
    %3072 = vmatprep.subr.mxu0 0.0
    %3073 = vmatpush1.msra.mxu0 0.0
    %3074 = vmatprep.subr.mxu0 0.0
    %3075 = vmatpush1.msra.mxu0 0.0
    %3076 = vmatprep.subr.mxu0 0.0
    %3077 = vmatpush1.msra.mxu0 0.0
    %3078 = vmatprep.subr.mxu0 0.0
    %3079 = vmatpush1.msra.mxu0 0.0
    %3080 = vmatprep.subr.mxu0 0.0
    %3081 = vmatpush1.msra.mxu0 0.0
    %3082 = vmatprep.subr.mxu0 0.0
    %3083 = vmatpush1.msra.mxu0 0.0
    %3084 = vmatprep.mubr.f32.mxu0 0.0
    %v3085 = vand.u32 %v2613, 4294901760
    %3086 = vmatmul.mubr.f32.gmra.mrb[0].mxu0 %v3085
    %v3087 = vpop.f32.mrb[0].mxu0
    %v3088 = vadd.f32 %v2990, %v3087
    %v3089 = vpop.f32.mrb[0].mxu0
    %3090 = vmatprep.mubr.f32.mxu0 0.0
    %v3091 = vand.u32 %v2616, 4294901760
    %3092 = vmatmul.mubr.f32.gmra.mrb[0].mxu0 %v3091
    %v3093 = vpop.f32.mrb[0].mxu0
    %v3094 = vadd.f32 %v2998, %v3093
    %v3095 = vpop.f32.mrb[0].mxu0
    %3096 = vmatprep.mubr.f32.mxu0 0.0
    %v3097 = vand.u32 %v2619, 4294901760
    %3098 = vmatmul.mubr.f32.gmra.mrb[0].mxu0 %v3097
    %v3099 = vpop.f32.mrb[0].mxu0
    %v3100 = vadd.f32 %v3006, %v3099
    %v3101 = vpop.f32.mrb[0].mxu0
    %3102 = vmatprep.mubr.f32.mxu0 0.0
    %v3103 = vand.u32 %v2622, 4294901760
    %3104 = vmatmul.mubr.f32.gmra.mrb[0].mxu0 %v3103
    %v3105 = vpop.f32.mrb[0].mxu0
    %v3106 = vadd.f32 %v3014, %v3105
    %v3107 = vpop.f32.mrb[0].mxu0
    %3108 = vdwg.mxu0
    %3109 = vmatprep.subr.mxu0 0.0
    %v3110 = vand.u32 %v2611, 4294901760
    %3111 = vmatpush1.msra.mxu0 %v3110
    %3112 = vmatprep.subr.mxu0 0.0
    %3113 = vmatpush1.msra.mxu0 0.0
    %3114 = vmatprep.subr.mxu0 0.0
    %3115 = vmatpush1.msra.mxu0 0.0
    %3116 = vmatprep.subr.mxu0 0.0
    %3117 = vmatpush1.msra.mxu0 0.0
    %3118 = vmatprep.subr.mxu0 0.0
    %3119 = vmatpush1.msra.mxu0 0.0
    %3120 = vmatprep.subr.mxu0 0.0
    %3121 = vmatpush1.msra.mxu0 0.0
    %3122 = vmatprep.subr.mxu0 0.0
    %3123 = vmatpush1.msra.mxu0 0.0
    %3124 = vmatprep.subr.mxu0 0.0
    %3125 = vmatpush1.msra.mxu0 0.0
    %3126 = vmatprep.subr.mxu0 0.0
    %3127 = vmatpush1.msra.mxu0 0.0
    %3128 = vmatprep.subr.mxu0 0.0
    %3129 = vmatpush1.msra.mxu0 0.0
    %3130 = vmatprep.subr.mxu0 0.0
    %3131 = vmatpush1.msra.mxu0 0.0
    %3132 = vmatprep.subr.mxu0 0.0
    %3133 = vmatpush1.msra.mxu0 0.0
    %3134 = vmatprep.subr.mxu0 0.0
    %3135 = vmatpush1.msra.mxu0 0.0
    %3136 = vmatprep.subr.mxu0 0.0
    %3137 = vmatpush1.msra.mxu0 0.0
    %3138 = vmatprep.subr.mxu0 0.0
    %3139 = vmatpush1.msra.mxu0 0.0
    %3140 = vmatprep.subr.mxu0 0.0
    %3141 = vmatpush1.msra.mxu0 0.0
    %3142 = vmatprep.subr.mxu0 0.0
    %3143 = vmatpush1.msra.mxu0 0.0
    %3144 = vmatprep.subr.mxu0 0.0
    %3145 = vmatpush1.msra.mxu0 0.0
    %3146 = vmatprep.subr.mxu0 0.0
    %3147 = vmatpush1.msra.mxu0 0.0
    %3148 = vmatprep.subr.mxu0 0.0
    %3149 = vmatpush1.msra.mxu0 0.0
    %3150 = vmatprep.subr.mxu0 0.0
    %3151 = vmatpush1.msra.mxu0 0.0
    %3152 = vmatprep.subr.mxu0 0.0
    %3153 = vmatpush1.msra.mxu0 0.0
    %3154 = vmatprep.subr.mxu0 0.0
    %3155 = vmatpush1.msra.mxu0 0.0
    %3156 = vmatprep.subr.mxu0 0.0
    %3157 = vmatpush1.msra.mxu0 0.0
    %3158 = vmatprep.subr.mxu0 0.0
    %3159 = vmatpush1.msra.mxu0 0.0
    %3160 = vmatprep.subr.mxu0 0.0
    %3161 = vmatpush1.msra.mxu0 0.0
    %3162 = vmatprep.subr.mxu0 0.0
    %3163 = vmatpush1.msra.mxu0 0.0
    %3164 = vmatprep.subr.mxu0 0.0
    %3165 = vmatpush1.msra.mxu0 0.0
    %3166 = vmatprep.subr.mxu0 0.0
    %3167 = vmatpush1.msra.mxu0 0.0
    %3168 = vmatprep.subr.mxu0 0.0
    %3169 = vmatpush1.msra.mxu0 0.0
    %3170 = vmatprep.subr.mxu0 0.0
    %3171 = vmatpush1.msra.mxu0 0.0
    %3172 = vmatprep.subr.mxu0 0.0
    %3173 = vmatpush1.msra.mxu0 0.0
    %3174 = vmatprep.mubr.f32.mxu0 0.0
    %v3175 = vand.u32 %v2613, 4294901760
    %3176 = vmatmul.mubr.f32.gmra.mrb[0].mxu0 %v3175
    %v3177 = vpop.f32.mrb[0].mxu0
    %v3178 = vadd.f32 %v3088, %v3177
    %v3179 = vpop.f32.mrb[0].mxu0
    %3180 = vmatprep.mubr.f32.mxu0 0.0
    %v3181 = vand.u32 %v2616, 4294901760
    %3182 = vmatmul.mubr.f32.gmra.mrb[0].mxu0 %v3181
    %v3183 = vpop.f32.mrb[0].mxu0
    %v3184 = vadd.f32 %v3094, %v3183
    %v3185 = vpop.f32.mrb[0].mxu0
    %3186 = vmatprep.mubr.f32.mxu0 0.0
    %v3187 = vand.u32 %v2619, 4294901760
    %3188 = vmatmul.mubr.f32.gmra.mrb[0].mxu0 %v3187
    %v3189 = vpop.f32.mrb[0].mxu0
    %v3190 = vadd.f32 %v3100, %v3189
    %v3191 = vpop.f32.mrb[0].mxu0
    %3192 = vmatprep.mubr.f32.mxu0 0.0
    %v3193 = vand.u32 %v2622, 4294901760
    %3194 = vmatmul.mubr.f32.gmra.mrb[0].mxu0 %v3193
    %v3195 = vpop.f32.mrb[0].mxu0
    %v3196 = vadd.f32 %v3106, %v3195
    %v3197 = vpop.f32.mrb[0].mxu0
    %3198 = vdwg.mxu0
    %v3199 = vld [vmem:[%s1 + $0xd0] sm:$0xff]
    %v3200 = vld [vmem:[%s1 + $0xd8] sm:$0xff]
    %v3201 = vld [vmem:[%s1 + $0xe0] sm:$0xff]
    %v3202 = vld [vmem:[%s1 + $0xe8] sm:$0xff]
    %3204 = vset.pattern.permute.xlu0 0
    %3205 = vperm.xlu0 %3204, %v3199
    %v3206 = vpop.permute.xlu0 %3205
    %3209 = vset.pattern.permute.xlu0 0
    %3210 = vperm.xlu0 %3209, %v3200
    %v3211 = vpop.permute.xlu0 %3210
    %3214 = vset.pattern.permute.xlu0 0
    %3215 = vperm.xlu0 %3214, %v3201
    %v3216 = vpop.permute.xlu0 %3215
    %3219 = vset.pattern.permute.xlu0 0
    %3220 = vperm.xlu0 %3219, %v3202
    %v3221 = vpop.permute.xlu0 %3220
    %v3223 = vmul.f32 %v3178, %v3206
    %v3224 = vmul.f32 %v3184, %v3211
    %v3225 = vmul.f32 %v3190, %v3216
    %v3226 = vmul.f32 %v3196, %v3221
    %v3227 = vld [vmem:[%s1 + $0xf0] sm:$0xff]
    %v3228 = vld [vmem:[%s1 + $0xf8] sm:$0xff]
    %v3229 = vld [vmem:[%s1 + $0x100] sm:$0xff]
    %v3230 = vld [vmem:[%s1 + $0x108] sm:$0xff]
    %3232 = vset.pattern.permute.xlu0 0
    %3233 = vperm.xlu0 %3232, %v3227
    %v3234 = vpop.permute.xlu0 %3233
    %3237 = vset.pattern.permute.xlu0 0
    %3238 = vperm.xlu0 %3237, %v3228
    %v3239 = vpop.permute.xlu0 %3238
    %3242 = vset.pattern.permute.xlu0 0
    %3243 = vperm.xlu0 %3242, %v3229
    %v3244 = vpop.permute.xlu0 %3243
    %3247 = vset.pattern.permute.xlu0 0
    %3248 = vperm.xlu0 %3247, %v3230
    %v3249 = vpop.permute.xlu0 %3248
    %v3251 = vadd.f32 %v3223, %v3234
    %v3252 = vadd.f32 %v3224, %v3239
    %v3253 = vadd.f32 %v3225, %v3244
    %v3254 = vadd.f32 %v3226, %v3249
    %v3255 = vtanh.pop %v3251
    %v3256 = vtanh.pop %v3252
    %v3257 = vtanh.pop %v3253
    %v3258 = vtanh.pop %v3254
    %v3259 = vld [vmem:[%s1 + $0x158] sm:$0xf]
    %v3261 = vsel %vm1960, %v3255, 0
    %v3264 = vsel %vm1960, %v3256, 0
    %v3267 = vsel %vm1960, %v3257, 0
    %v3270 = vsel %vm1960, %v3258, 0
    %v3273 = vsel %vm55, %v3259, 0
    %3275 = vmatprep.subr.mxu0 0.0
    %v3276 = vand.u32 %v3273, 4294901760
    %3277 = vmatpush1.msra.mxu0 %v3276
    %3278 = vmatprep.subr.mxu0 0.0
    %3279 = vmatpush1.msra.mxu0 0.0
    %3280 = vmatprep.subr.mxu0 0.0
    %3281 = vmatpush1.msra.mxu0 0.0
    %3282 = vmatprep.subr.mxu0 0.0
    %3283 = vmatpush1.msra.mxu0 0.0
    %3284 = vmatprep.subr.mxu0 0.0
    %3285 = vmatpush1.msra.mxu0 0.0
    %3286 = vmatprep.subr.mxu0 0.0
    %3287 = vmatpush1.msra.mxu0 0.0
    %3288 = vmatprep.subr.mxu0 0.0
    %3289 = vmatpush1.msra.mxu0 0.0
    %3290 = vmatprep.subr.mxu0 0.0
    %3291 = vmatpush1.msra.mxu0 0.0
    %3292 = vmatprep.subr.mxu0 0.0
    %3293 = vmatpush1.msra.mxu0 0.0
    %3294 = vmatprep.subr.mxu0 0.0
    %3295 = vmatpush1.msra.mxu0 0.0
    %3296 = vmatprep.subr.mxu0 0.0
    %3297 = vmatpush1.msra.mxu0 0.0
    %3298 = vmatprep.subr.mxu0 0.0
    %3299 = vmatpush1.msra.mxu0 0.0
    %3300 = vmatprep.subr.mxu0 0.0
    %3301 = vmatpush1.msra.mxu0 0.0
    %3302 = vmatprep.subr.mxu0 0.0
    %3303 = vmatpush1.msra.mxu0 0.0
    %3304 = vmatprep.subr.mxu0 0.0
    %3305 = vmatpush1.msra.mxu0 0.0
    %3306 = vmatprep.subr.mxu0 0.0
    %3307 = vmatpush1.msra.mxu0 0.0
    %3308 = vmatprep.subr.mxu0 0.0
    %3309 = vmatpush1.msra.mxu0 0.0
    %3310 = vmatprep.subr.mxu0 0.0
    %3311 = vmatpush1.msra.mxu0 0.0
    %3312 = vmatprep.subr.mxu0 0.0
    %3313 = vmatpush1.msra.mxu0 0.0
    %3314 = vmatprep.subr.mxu0 0.0
    %3315 = vmatpush1.msra.mxu0 0.0
    %3316 = vmatprep.subr.mxu0 0.0
    %3317 = vmatpush1.msra.mxu0 0.0
    %3318 = vmatprep.subr.mxu0 0.0
    %3319 = vmatpush1.msra.mxu0 0.0
    %3320 = vmatprep.subr.mxu0 0.0
    %3321 = vmatpush1.msra.mxu0 0.0
    %3322 = vmatprep.subr.mxu0 0.0
    %3323 = vmatpush1.msra.mxu0 0.0
    %3324 = vmatprep.subr.mxu0 0.0
    %3325 = vmatpush1.msra.mxu0 0.0
    %3326 = vmatprep.subr.mxu0 0.0
    %3327 = vmatpush1.msra.mxu0 0.0
    %3328 = vmatprep.subr.mxu0 0.0
    %3329 = vmatpush1.msra.mxu0 0.0
    %3330 = vmatprep.subr.mxu0 0.0
    %3331 = vmatpush1.msra.mxu0 0.0
    %3332 = vmatprep.subr.mxu0 0.0
    %3333 = vmatpush1.msra.mxu0 0.0
    %3334 = vmatprep.subr.mxu0 0.0
    %3335 = vmatpush1.msra.mxu0 0.0
    %3336 = vmatprep.subr.mxu0 0.0
    %3337 = vmatpush1.msra.mxu0 0.0
    %3338 = vmatprep.subr.mxu0 0.0
    %3339 = vmatpush1.msra.mxu0 0.0
    %3340 = vmatprep.mubr.f32.mxu0 0.0
    %v3341 = vand.u32 %v3261, 4294901760
    %v3342 = vsub.f32 %v3261, %v3341
    %v3343 = vand.u32 %v3342, 4294901760
    %v3344 = vsub.f32 %v3342, %v3343
    %v3345 = vand.u32 %v3344, 4294901760
    %3346 = vmatmul.mubr.f32.gmra.mrb[0].mxu0 %v3345
    %v3347 = vpop.f32.mrb[0].mxu0
    %v3348 = vadd.f32 0.0, %v3347
    %v3349 = vpop.f32.mrb[0].mxu0
    %3350 = vmatprep.mubr.f32.mxu0 0.0
    %v3351 = vand.u32 %v3264, 4294901760
    %v3352 = vsub.f32 %v3264, %v3351
    %v3353 = vand.u32 %v3352, 4294901760
    %v3354 = vsub.f32 %v3352, %v3353
    %v3355 = vand.u32 %v3354, 4294901760
    %3356 = vmatmul.mubr.f32.gmra.mrb[0].mxu0 %v3355
    %v3357 = vpop.f32.mrb[0].mxu0
    %v3358 = vadd.f32 0.0, %v3357
    %v3359 = vpop.f32.mrb[0].mxu0
    %3360 = vmatprep.mubr.f32.mxu0 0.0
    %v3361 = vand.u32 %v3267, 4294901760
    %v3362 = vsub.f32 %v3267, %v3361
    %v3363 = vand.u32 %v3362, 4294901760
    %v3364 = vsub.f32 %v3362, %v3363
    %v3365 = vand.u32 %v3364, 4294901760
    %3366 = vmatmul.mubr.f32.gmra.mrb[0].mxu0 %v3365
    %v3367 = vpop.f32.mrb[0].mxu0
    %v3368 = vadd.f32 0.0, %v3367
    %v3369 = vpop.f32.mrb[0].mxu0
    %3370 = vmatprep.mubr.f32.mxu0 0.0
    %v3371 = vand.u32 %v3270, 4294901760
    %v3372 = vsub.f32 %v3270, %v3371
    %v3373 = vand.u32 %v3372, 4294901760
    %v3374 = vsub.f32 %v3372, %v3373
    %v3375 = vand.u32 %v3374, 4294901760
    %3376 = vmatmul.mubr.f32.gmra.mrb[0].mxu0 %v3375
    %v3377 = vpop.f32.mrb[0].mxu0
    %v3378 = vadd.f32 0.0, %v3377
    %v3379 = vpop.f32.mrb[0].mxu0
    %3380 = vdwg.mxu0
    %3381 = vmatprep.subr.mxu0 0.0
    %v3382 = vand.u32 %v3273, 4294901760
    %v3383 = vsub.f32 %v3273, %v3382
    %v3384 = vand.u32 %v3383, 4294901760
    %v3385 = vsub.f32 %v3383, %v3384
    %v3386 = vand.u32 %v3385, 4294901760
    %3387 = vmatpush1.msra.mxu0 %v3386
    %3388 = vmatprep.subr.mxu0 0.0
    %3389 = vmatpush1.msra.mxu0 0.0
    %3390 = vmatprep.subr.mxu0 0.0
    %3391 = vmatpush1.msra.mxu0 0.0
    %3392 = vmatprep.subr.mxu0 0.0
    %3393 = vmatpush1.msra.mxu0 0.0
    %3394 = vmatprep.subr.mxu0 0.0
    %3395 = vmatpush1.msra.mxu0 0.0
    %3396 = vmatprep.subr.mxu0 0.0
    %3397 = vmatpush1.msra.mxu0 0.0
    %3398 = vmatprep.subr.mxu0 0.0
    %3399 = vmatpush1.msra.mxu0 0.0
    %3400 = vmatprep.subr.mxu0 0.0
    %3401 = vmatpush1.msra.mxu0 0.0
    %3402 = vmatprep.subr.mxu0 0.0
    %3403 = vmatpush1.msra.mxu0 0.0
    %3404 = vmatprep.subr.mxu0 0.0
    %3405 = vmatpush1.msra.mxu0 0.0
    %3406 = vmatprep.subr.mxu0 0.0
    %3407 = vmatpush1.msra.mxu0 0.0
    %3408 = vmatprep.subr.mxu0 0.0
    %3409 = vmatpush1.msra.mxu0 0.0
    %3410 = vmatprep.subr.mxu0 0.0
    %3411 = vmatpush1.msra.mxu0 0.0
    %3412 = vmatprep.subr.mxu0 0.0
    %3413 = vmatpush1.msra.mxu0 0.0
    %3414 = vmatprep.subr.mxu0 0.0
    %3415 = vmatpush1.msra.mxu0 0.0
    %3416 = vmatprep.subr.mxu0 0.0
    %3417 = vmatpush1.msra.mxu0 0.0
    %3418 = vmatprep.subr.mxu0 0.0
    %3419 = vmatpush1.msra.mxu0 0.0
    %3420 = vmatprep.subr.mxu0 0.0
    %3421 = vmatpush1.msra.mxu0 0.0
    %3422 = vmatprep.subr.mxu0 0.0
    %3423 = vmatpush1.msra.mxu0 0.0
    %3424 = vmatprep.subr.mxu0 0.0
    %3425 = vmatpush1.msra.mxu0 0.0
    %3426 = vmatprep.subr.mxu0 0.0
    %3427 = vmatpush1.msra.mxu0 0.0
    %3428 = vmatprep.subr.mxu0 0.0
    %3429 = vmatpush1.msra.mxu0 0.0
    %3430 = vmatprep.subr.mxu0 0.0
    %3431 = vmatpush1.msra.mxu0 0.0
    %3432 = vmatprep.subr.mxu0 0.0
    %3433 = vmatpush1.msra.mxu0 0.0
    %3434 = vmatprep.subr.mxu0 0.0
    %3435 = vmatpush1.msra.mxu0 0.0
    %3436 = vmatprep.subr.mxu0 0.0
    %3437 = vmatpush1.msra.mxu0 0.0
    %3438 = vmatprep.subr.mxu0 0.0
    %3439 = vmatpush1.msra.mxu0 0.0
    %3440 = vmatprep.subr.mxu0 0.0
    %3441 = vmatpush1.msra.mxu0 0.0
    %3442 = vmatprep.subr.mxu0 0.0
    %3443 = vmatpush1.msra.mxu0 0.0
    %3444 = vmatprep.subr.mxu0 0.0
    %3445 = vmatpush1.msra.mxu0 0.0
    %3446 = vmatprep.subr.mxu0 0.0
    %3447 = vmatpush1.msra.mxu0 0.0
    %3448 = vmatprep.subr.mxu0 0.0
    %3449 = vmatpush1.msra.mxu0 0.0
    %3450 = vmatprep.mubr.f32.mxu0 0.0
    %v3451 = vand.u32 %v3261, 4294901760
    %3452 = vmatmul.mubr.f32.gmra.mrb[0].mxu0 %v3451
    %v3453 = vpop.f32.mrb[0].mxu0
    %v3454 = vadd.f32 %v3348, %v3453
    %v3455 = vpop.f32.mrb[0].mxu0
    %3456 = vmatprep.mubr.f32.mxu0 0.0
    %v3457 = vand.u32 %v3264, 4294901760
    %3458 = vmatmul.mubr.f32.gmra.mrb[0].mxu0 %v3457
    %v3459 = vpop.f32.mrb[0].mxu0
    %v3460 = vadd.f32 %v3358, %v3459
    %v3461 = vpop.f32.mrb[0].mxu0
    %3462 = vmatprep.mubr.f32.mxu0 0.0
    %v3463 = vand.u32 %v3267, 4294901760
    %3464 = vmatmul.mubr.f32.gmra.mrb[0].mxu0 %v3463
    %v3465 = vpop.f32.mrb[0].mxu0
    %v3466 = vadd.f32 %v3368, %v3465
    %v3467 = vpop.f32.mrb[0].mxu0
    %3468 = vmatprep.mubr.f32.mxu0 0.0
    %v3469 = vand.u32 %v3270, 4294901760
    %3470 = vmatmul.mubr.f32.gmra.mrb[0].mxu0 %v3469
    %v3471 = vpop.f32.mrb[0].mxu0
    %v3472 = vadd.f32 %v3378, %v3471
    %v3473 = vpop.f32.mrb[0].mxu0
    %3474 = vdwg.mxu0
    %3475 = vmatprep.subr.mxu0 0.0
    %v3476 = vand.u32 %v3273, 4294901760
    %v3477 = vsub.f32 %v3273, %v3476
    %3478 = vmatpush1.msra.mxu0 %v3477
    %3479 = vmatprep.subr.mxu0 0.0
    %3480 = vmatpush1.msra.mxu0 0.0
    %3481 = vmatprep.subr.mxu0 0.0
    %3482 = vmatpush1.msra.mxu0 0.0
    %3483 = vmatprep.subr.mxu0 0.0
    %3484 = vmatpush1.msra.mxu0 0.0
    %3485 = vmatprep.subr.mxu0 0.0
    %3486 = vmatpush1.msra.mxu0 0.0
    %3487 = vmatprep.subr.mxu0 0.0
    %3488 = vmatpush1.msra.mxu0 0.0
    %3489 = vmatprep.subr.mxu0 0.0
    %3490 = vmatpush1.msra.mxu0 0.0
    %3491 = vmatprep.subr.mxu0 0.0
    %3492 = vmatpush1.msra.mxu0 0.0
    %3493 = vmatprep.subr.mxu0 0.0
    %3494 = vmatpush1.msra.mxu0 0.0
    %3495 = vmatprep.subr.mxu0 0.0
    %3496 = vmatpush1.msra.mxu0 0.0
    %3497 = vmatprep.subr.mxu0 0.0
    %3498 = vmatpush1.msra.mxu0 0.0
    %3499 = vmatprep.subr.mxu0 0.0
    %3500 = vmatpush1.msra.mxu0 0.0
    %3501 = vmatprep.subr.mxu0 0.0
    %3502 = vmatpush1.msra.mxu0 0.0
    %3503 = vmatprep.subr.mxu0 0.0
    %3504 = vmatpush1.msra.mxu0 0.0
    %3505 = vmatprep.subr.mxu0 0.0
    %3506 = vmatpush1.msra.mxu0 0.0
    %3507 = vmatprep.subr.mxu0 0.0
    %3508 = vmatpush1.msra.mxu0 0.0
    %3509 = vmatprep.subr.mxu0 0.0
    %3510 = vmatpush1.msra.mxu0 0.0
    %3511 = vmatprep.subr.mxu0 0.0
    %3512 = vmatpush1.msra.mxu0 0.0
    %3513 = vmatprep.subr.mxu0 0.0
    %3514 = vmatpush1.msra.mxu0 0.0
    %3515 = vmatprep.subr.mxu0 0.0
    %3516 = vmatpush1.msra.mxu0 0.0
    %3517 = vmatprep.subr.mxu0 0.0
    %3518 = vmatpush1.msra.mxu0 0.0
    %3519 = vmatprep.subr.mxu0 0.0
    %3520 = vmatpush1.msra.mxu0 0.0
    %3521 = vmatprep.subr.mxu0 0.0
    %3522 = vmatpush1.msra.mxu0 0.0
    %3523 = vmatprep.subr.mxu0 0.0
    %3524 = vmatpush1.msra.mxu0 0.0
    %3525 = vmatprep.subr.mxu0 0.0
    %3526 = vmatpush1.msra.mxu0 0.0
    %3527 = vmatprep.subr.mxu0 0.0
    %3528 = vmatpush1.msra.mxu0 0.0
    %3529 = vmatprep.subr.mxu0 0.0
    %3530 = vmatpush1.msra.mxu0 0.0
    %3531 = vmatprep.subr.mxu0 0.0
    %3532 = vmatpush1.msra.mxu0 0.0
    %3533 = vmatprep.subr.mxu0 0.0
    %3534 = vmatpush1.msra.mxu0 0.0
    %3535 = vmatprep.subr.mxu0 0.0
    %3536 = vmatpush1.msra.mxu0 0.0
    %3537 = vmatprep.subr.mxu0 0.0
    %3538 = vmatpush1.msra.mxu0 0.0
    %3539 = vmatprep.subr.mxu0 0.0
    %3540 = vmatpush1.msra.mxu0 0.0
    %3541 = vmatprep.mubr.f32.mxu0 0.0
    %v3542 = vand.u32 %v3261, 4294901760
    %v3543 = vsub.f32 %v3261, %v3542
    %3544 = vmatmul.mubr.f32.gmra.mrb[0].mxu0 %v3543
    %v3545 = vpop.f32.mrb[0].mxu0
    %v3546 = vadd.f32 %v3454, %v3545
    %v3547 = vpop.f32.mrb[0].mxu0
    %3548 = vmatprep.mubr.f32.mxu0 0.0
    %v3549 = vand.u32 %v3264, 4294901760
    %v3550 = vsub.f32 %v3264, %v3549
    %3551 = vmatmul.mubr.f32.gmra.mrb[0].mxu0 %v3550
    %v3552 = vpop.f32.mrb[0].mxu0
    %v3553 = vadd.f32 %v3460, %v3552
    %v3554 = vpop.f32.mrb[0].mxu0
    %3555 = vmatprep.mubr.f32.mxu0 0.0
    %v3556 = vand.u32 %v3267, 4294901760
    %v3557 = vsub.f32 %v3267, %v3556
    %3558 = vmatmul.mubr.f32.gmra.mrb[0].mxu0 %v3557
    %v3559 = vpop.f32.mrb[0].mxu0
    %v3560 = vadd.f32 %v3466, %v3559
    %v3561 = vpop.f32.mrb[0].mxu0
    %3562 = vmatprep.mubr.f32.mxu0 0.0
    %v3563 = vand.u32 %v3270, 4294901760
    %v3564 = vsub.f32 %v3270, %v3563
    %3565 = vmatmul.mubr.f32.gmra.mrb[0].mxu0 %v3564
    %v3566 = vpop.f32.mrb[0].mxu0
    %v3567 = vadd.f32 %v3472, %v3566
    %v3568 = vpop.f32.mrb[0].mxu0
    %3569 = vdwg.mxu0
    %3570 = vmatprep.subr.mxu0 0.0
    %v3571 = vand.u32 %v3273, 4294901760
    %3572 = vmatpush1.msra.mxu0 %v3571
    %3573 = vmatprep.subr.mxu0 0.0
    %3574 = vmatpush1.msra.mxu0 0.0
    %3575 = vmatprep.subr.mxu0 0.0
    %3576 = vmatpush1.msra.mxu0 0.0
    %3577 = vmatprep.subr.mxu0 0.0
    %3578 = vmatpush1.msra.mxu0 0.0
    %3579 = vmatprep.subr.mxu0 0.0
    %3580 = vmatpush1.msra.mxu0 0.0
    %3581 = vmatprep.subr.mxu0 0.0
    %3582 = vmatpush1.msra.mxu0 0.0
    %3583 = vmatprep.subr.mxu0 0.0
    %3584 = vmatpush1.msra.mxu0 0.0
    %3585 = vmatprep.subr.mxu0 0.0
    %3586 = vmatpush1.msra.mxu0 0.0
    %3587 = vmatprep.subr.mxu0 0.0
    %3588 = vmatpush1.msra.mxu0 0.0
    %3589 = vmatprep.subr.mxu0 0.0
    %3590 = vmatpush1.msra.mxu0 0.0
    %3591 = vmatprep.subr.mxu0 0.0
    %3592 = vmatpush1.msra.mxu0 0.0
    %3593 = vmatprep.subr.mxu0 0.0
    %3594 = vmatpush1.msra.mxu0 0.0
    %3595 = vmatprep.subr.mxu0 0.0
    %3596 = vmatpush1.msra.mxu0 0.0
    %3597 = vmatprep.subr.mxu0 0.0
    %3598 = vmatpush1.msra.mxu0 0.0
    %3599 = vmatprep.subr.mxu0 0.0
    %3600 = vmatpush1.msra.mxu0 0.0
    %3601 = vmatprep.subr.mxu0 0.0
    %3602 = vmatpush1.msra.mxu0 0.0
    %3603 = vmatprep.subr.mxu0 0.0
    %3604 = vmatpush1.msra.mxu0 0.0
    %3605 = vmatprep.subr.mxu0 0.0
    %3606 = vmatpush1.msra.mxu0 0.0
    %3607 = vmatprep.subr.mxu0 0.0
    %3608 = vmatpush1.msra.mxu0 0.0
    %3609 = vmatprep.subr.mxu0 0.0
    %3610 = vmatpush1.msra.mxu0 0.0
    %3611 = vmatprep.subr.mxu0 0.0
    %3612 = vmatpush1.msra.mxu0 0.0
    %3613 = vmatprep.subr.mxu0 0.0
    %3614 = vmatpush1.msra.mxu0 0.0
    %3615 = vmatprep.subr.mxu0 0.0
    %3616 = vmatpush1.msra.mxu0 0.0
    %3617 = vmatprep.subr.mxu0 0.0
    %3618 = vmatpush1.msra.mxu0 0.0
    %3619 = vmatprep.subr.mxu0 0.0
    %3620 = vmatpush1.msra.mxu0 0.0
    %3621 = vmatprep.subr.mxu0 0.0
    %3622 = vmatpush1.msra.mxu0 0.0
    %3623 = vmatprep.subr.mxu0 0.0
    %3624 = vmatpush1.msra.mxu0 0.0
    %3625 = vmatprep.subr.mxu0 0.0
    %3626 = vmatpush1.msra.mxu0 0.0
    %3627 = vmatprep.subr.mxu0 0.0
    %3628 = vmatpush1.msra.mxu0 0.0
    %3629 = vmatprep.subr.mxu0 0.0
    %3630 = vmatpush1.msra.mxu0 0.0
    %3631 = vmatprep.subr.mxu0 0.0
    %3632 = vmatpush1.msra.mxu0 0.0
    %3633 = vmatprep.subr.mxu0 0.0
    %3634 = vmatpush1.msra.mxu0 0.0
    %3635 = vmatprep.mubr.f32.mxu0 0.0
    %v3636 = vand.u32 %v3261, 4294901760
    %v3637 = vsub.f32 %v3261, %v3636
    %v3638 = vand.u32 %v3637, 4294901760
    %3639 = vmatmul.mubr.f32.gmra.mrb[0].mxu0 %v3638
    %v3640 = vpop.f32.mrb[0].mxu0
    %v3641 = vadd.f32 %v3546, %v3640
    %v3642 = vpop.f32.mrb[0].mxu0
    %3643 = vmatprep.mubr.f32.mxu0 0.0
    %v3644 = vand.u32 %v3264, 4294901760
    %v3645 = vsub.f32 %v3264, %v3644
    %v3646 = vand.u32 %v3645, 4294901760
    %3647 = vmatmul.mubr.f32.gmra.mrb[0].mxu0 %v3646
    %v3648 = vpop.f32.mrb[0].mxu0
    %v3649 = vadd.f32 %v3553, %v3648
    %v3650 = vpop.f32.mrb[0].mxu0
    %3651 = vmatprep.mubr.f32.mxu0 0.0
    %v3652 = vand.u32 %v3267, 4294901760
    %v3653 = vsub.f32 %v3267, %v3652
    %v3654 = vand.u32 %v3653, 4294901760
    %3655 = vmatmul.mubr.f32.gmra.mrb[0].mxu0 %v3654
    %v3656 = vpop.f32.mrb[0].mxu0
    %v3657 = vadd.f32 %v3560, %v3656
    %v3658 = vpop.f32.mrb[0].mxu0
    %3659 = vmatprep.mubr.f32.mxu0 0.0
    %v3660 = vand.u32 %v3270, 4294901760
    %v3661 = vsub.f32 %v3270, %v3660
    %v3662 = vand.u32 %v3661, 4294901760
    %3663 = vmatmul.mubr.f32.gmra.mrb[0].mxu0 %v3662
    %v3664 = vpop.f32.mrb[0].mxu0
    %v3665 = vadd.f32 %v3567, %v3664
    %v3666 = vpop.f32.mrb[0].mxu0
    %3667 = vdwg.mxu0
    %3668 = vmatprep.subr.mxu0 0.0
    %v3669 = vand.u32 %v3273, 4294901760
    %v3670 = vsub.f32 %v3273, %v3669
    %v3671 = vand.u32 %v3670, 4294901760
    %3672 = vmatpush1.msra.mxu0 %v3671
    %3673 = vmatprep.subr.mxu0 0.0
    %3674 = vmatpush1.msra.mxu0 0.0
    %3675 = vmatprep.subr.mxu0 0.0
    %3676 = vmatpush1.msra.mxu0 0.0
    %3677 = vmatprep.subr.mxu0 0.0
    %3678 = vmatpush1.msra.mxu0 0.0
    %3679 = vmatprep.subr.mxu0 0.0
    %3680 = vmatpush1.msra.mxu0 0.0
    %3681 = vmatprep.subr.mxu0 0.0
    %3682 = vmatpush1.msra.mxu0 0.0
    %3683 = vmatprep.subr.mxu0 0.0
    %3684 = vmatpush1.msra.mxu0 0.0
    %3685 = vmatprep.subr.mxu0 0.0
    %3686 = vmatpush1.msra.mxu0 0.0
    %3687 = vmatprep.subr.mxu0 0.0
    %3688 = vmatpush1.msra.mxu0 0.0
    %3689 = vmatprep.subr.mxu0 0.0
    %3690 = vmatpush1.msra.mxu0 0.0
    %3691 = vmatprep.subr.mxu0 0.0
    %3692 = vmatpush1.msra.mxu0 0.0
    %3693 = vmatprep.subr.mxu0 0.0
    %3694 = vmatpush1.msra.mxu0 0.0
    %3695 = vmatprep.subr.mxu0 0.0
    %3696 = vmatpush1.msra.mxu0 0.0
    %3697 = vmatprep.subr.mxu0 0.0
    %3698 = vmatpush1.msra.mxu0 0.0
    %3699 = vmatprep.subr.mxu0 0.0
    %3700 = vmatpush1.msra.mxu0 0.0
    %3701 = vmatprep.subr.mxu0 0.0
    %3702 = vmatpush1.msra.mxu0 0.0
    %3703 = vmatprep.subr.mxu0 0.0
    %3704 = vmatpush1.msra.mxu0 0.0
    %3705 = vmatprep.subr.mxu0 0.0
    %3706 = vmatpush1.msra.mxu0 0.0
    %3707 = vmatprep.subr.mxu0 0.0
    %3708 = vmatpush1.msra.mxu0 0.0
    %3709 = vmatprep.subr.mxu0 0.0
    %3710 = vmatpush1.msra.mxu0 0.0
    %3711 = vmatprep.subr.mxu0 0.0
    %3712 = vmatpush1.msra.mxu0 0.0
    %3713 = vmatprep.subr.mxu0 0.0
    %3714 = vmatpush1.msra.mxu0 0.0
    %3715 = vmatprep.subr.mxu0 0.0
    %3716 = vmatpush1.msra.mxu0 0.0
    %3717 = vmatprep.subr.mxu0 0.0
    %3718 = vmatpush1.msra.mxu0 0.0
    %3719 = vmatprep.subr.mxu0 0.0
    %3720 = vmatpush1.msra.mxu0 0.0
    %3721 = vmatprep.subr.mxu0 0.0
    %3722 = vmatpush1.msra.mxu0 0.0
    %3723 = vmatprep.subr.mxu0 0.0
    %3724 = vmatpush1.msra.mxu0 0.0
    %3725 = vmatprep.subr.mxu0 0.0
    %3726 = vmatpush1.msra.mxu0 0.0
    %3727 = vmatprep.subr.mxu0 0.0
    %3728 = vmatpush1.msra.mxu0 0.0
    %3729 = vmatprep.subr.mxu0 0.0
    %3730 = vmatpush1.msra.mxu0 0.0
    %3731 = vmatprep.subr.mxu0 0.0
    %3732 = vmatpush1.msra.mxu0 0.0
    %3733 = vmatprep.subr.mxu0 0.0
    %3734 = vmatpush1.msra.mxu0 0.0
    %3735 = vmatprep.mubr.f32.mxu0 0.0
    %v3736 = vand.u32 %v3261, 4294901760
    %3737 = vmatmul.mubr.f32.gmra.mrb[0].mxu0 %v3736
    %v3738 = vpop.f32.mrb[0].mxu0
    %v3739 = vadd.f32 %v3641, %v3738
    %v3740 = vpop.f32.mrb[0].mxu0
    %3741 = vmatprep.mubr.f32.mxu0 0.0
    %v3742 = vand.u32 %v3264, 4294901760
    %3743 = vmatmul.mubr.f32.gmra.mrb[0].mxu0 %v3742
    %v3744 = vpop.f32.mrb[0].mxu0
    %v3745 = vadd.f32 %v3649, %v3744
    %v3746 = vpop.f32.mrb[0].mxu0
    %3747 = vmatprep.mubr.f32.mxu0 0.0
    %v3748 = vand.u32 %v3267, 4294901760
    %3749 = vmatmul.mubr.f32.gmra.mrb[0].mxu0 %v3748
    %v3750 = vpop.f32.mrb[0].mxu0
    %v3751 = vadd.f32 %v3657, %v3750
    %v3752 = vpop.f32.mrb[0].mxu0
    %3753 = vmatprep.mubr.f32.mxu0 0.0
    %v3754 = vand.u32 %v3270, 4294901760
    %3755 = vmatmul.mubr.f32.gmra.mrb[0].mxu0 %v3754
    %v3756 = vpop.f32.mrb[0].mxu0
    %v3757 = vadd.f32 %v3665, %v3756
    %v3758 = vpop.f32.mrb[0].mxu0
    %3759 = vdwg.mxu0
    %3760 = vmatprep.subr.mxu0 0.0
    %v3761 = vand.u32 %v3273, 4294901760
    %3762 = vmatpush1.msra.mxu0 %v3761
    %3763 = vmatprep.subr.mxu0 0.0
    %3764 = vmatpush1.msra.mxu0 0.0
    %3765 = vmatprep.subr.mxu0 0.0
    %3766 = vmatpush1.msra.mxu0 0.0
    %3767 = vmatprep.subr.mxu0 0.0
    %3768 = vmatpush1.msra.mxu0 0.0
    %3769 = vmatprep.subr.mxu0 0.0
    %3770 = vmatpush1.msra.mxu0 0.0
    %3771 = vmatprep.subr.mxu0 0.0
    %3772 = vmatpush1.msra.mxu0 0.0
    %3773 = vmatprep.subr.mxu0 0.0
    %3774 = vmatpush1.msra.mxu0 0.0
    %3775 = vmatprep.subr.mxu0 0.0
    %3776 = vmatpush1.msra.mxu0 0.0
    %3777 = vmatprep.subr.mxu0 0.0
    %3778 = vmatpush1.msra.mxu0 0.0
    %3779 = vmatprep.subr.mxu0 0.0
    %3780 = vmatpush1.msra.mxu0 0.0
    %3781 = vmatprep.subr.mxu0 0.0
    %3782 = vmatpush1.msra.mxu0 0.0
    %3783 = vmatprep.subr.mxu0 0.0
    %3784 = vmatpush1.msra.mxu0 0.0
    %3785 = vmatprep.subr.mxu0 0.0
    %3786 = vmatpush1.msra.mxu0 0.0
    %3787 = vmatprep.subr.mxu0 0.0
    %3788 = vmatpush1.msra.mxu0 0.0
    %3789 = vmatprep.subr.mxu0 0.0
    %3790 = vmatpush1.msra.mxu0 0.0
    %3791 = vmatprep.subr.mxu0 0.0
    %3792 = vmatpush1.msra.mxu0 0.0
    %3793 = vmatprep.subr.mxu0 0.0
    %3794 = vmatpush1.msra.mxu0 0.0
    %3795 = vmatprep.subr.mxu0 0.0
    %3796 = vmatpush1.msra.mxu0 0.0
    %3797 = vmatprep.subr.mxu0 0.0
    %3798 = vmatpush1.msra.mxu0 0.0
    %3799 = vmatprep.subr.mxu0 0.0
    %3800 = vmatpush1.msra.mxu0 0.0
    %3801 = vmatprep.subr.mxu0 0.0
    %3802 = vmatpush1.msra.mxu0 0.0
    %3803 = vmatprep.subr.mxu0 0.0
    %3804 = vmatpush1.msra.mxu0 0.0
    %3805 = vmatprep.subr.mxu0 0.0
    %3806 = vmatpush1.msra.mxu0 0.0
    %3807 = vmatprep.subr.mxu0 0.0
    %3808 = vmatpush1.msra.mxu0 0.0
    %3809 = vmatprep.subr.mxu0 0.0
    %3810 = vmatpush1.msra.mxu0 0.0
    %3811 = vmatprep.subr.mxu0 0.0
    %3812 = vmatpush1.msra.mxu0 0.0
    %3813 = vmatprep.subr.mxu0 0.0
    %3814 = vmatpush1.msra.mxu0 0.0
    %3815 = vmatprep.subr.mxu0 0.0
    %3816 = vmatpush1.msra.mxu0 0.0
    %3817 = vmatprep.subr.mxu0 0.0
    %3818 = vmatpush1.msra.mxu0 0.0
    %3819 = vmatprep.subr.mxu0 0.0
    %3820 = vmatpush1.msra.mxu0 0.0
    %3821 = vmatprep.subr.mxu0 0.0
    %3822 = vmatpush1.msra.mxu0 0.0
    %3823 = vmatprep.subr.mxu0 0.0
    %3824 = vmatpush1.msra.mxu0 0.0
    %3825 = vmatprep.mubr.f32.mxu0 0.0
    %v3826 = vand.u32 %v3261, 4294901760
    %3827 = vmatmul.mubr.f32.gmra.mrb[0].mxu0 %v3826
    %v3828 = vpop.f32.mrb[0].mxu0
    %v3829 = vadd.f32 %v3739, %v3828
    %v3830 = vpop.f32.mrb[0].mxu0
    %3831 = vmatprep.mubr.f32.mxu0 0.0
    %v3832 = vand.u32 %v3264, 4294901760
    %3833 = vmatmul.mubr.f32.gmra.mrb[0].mxu0 %v3832
    %v3834 = vpop.f32.mrb[0].mxu0
    %v3835 = vadd.f32 %v3745, %v3834
    %v3836 = vpop.f32.mrb[0].mxu0
    %3837 = vmatprep.mubr.f32.mxu0 0.0
    %v3838 = vand.u32 %v3267, 4294901760
    %3839 = vmatmul.mubr.f32.gmra.mrb[0].mxu0 %v3838
    %v3840 = vpop.f32.mrb[0].mxu0
    %v3841 = vadd.f32 %v3751, %v3840
    %v3842 = vpop.f32.mrb[0].mxu0
    %3843 = vmatprep.mubr.f32.mxu0 0.0
    %v3844 = vand.u32 %v3270, 4294901760
    %3845 = vmatmul.mubr.f32.gmra.mrb[0].mxu0 %v3844
    %v3846 = vpop.f32.mrb[0].mxu0
    %v3847 = vadd.f32 %v3757, %v3846
    %v3848 = vpop.f32.mrb[0].mxu0
    %3849 = vdwg.mxu0
    %v3850 = vld [vmem:[%s1 + $0x160] sm:$0xff]
    %v3851 = vld [vmem:[%s1 + $0x168] sm:$0xff]
    %v3852 = vld [vmem:[%s1 + $0x170] sm:$0xff]
    %v3853 = vld [vmem:[%s1 + $0x178] sm:$0xff]
    %3855 = vset.pattern.permute.xlu0 0
    %3856 = vperm.xlu0 %3855, %v3850
    %v3857 = vpop.permute.xlu0 %3856
    %3860 = vset.pattern.permute.xlu0 0
    %3861 = vperm.xlu0 %3860, %v3851
    %v3862 = vpop.permute.xlu0 %3861
    %3865 = vset.pattern.permute.xlu0 0
    %3866 = vperm.xlu0 %3865, %v3852
    %v3867 = vpop.permute.xlu0 %3866
    %3870 = vset.pattern.permute.xlu0 0
    %3871 = vperm.xlu0 %3870, %v3853
    %v3872 = vpop.permute.xlu0 %3871
    %v3874 = vmul.f32 %v3829, %v3857
    %v3875 = vmul.f32 %v3835, %v3862
    %v3876 = vmul.f32 %v3841, %v3867
    %v3877 = vmul.f32 %v3847, %v3872
    %v3878 = vld [vmem:[%s1 + $0x180] sm:$0xff]
    %v3879 = vld [vmem:[%s1 + $0x188] sm:$0xff]
    %v3880 = vld [vmem:[%s1 + $0x190] sm:$0xff]
    %v3881 = vld [vmem:[%s1 + $0x198] sm:$0xff]
    %3883 = vset.pattern.permute.xlu0 0
    %3884 = vperm.xlu0 %3883, %v3878
    %v3885 = vpop.permute.xlu0 %3884
    %3888 = vset.pattern.permute.xlu0 0
    %3889 = vperm.xlu0 %3888, %v3879
    %v3890 = vpop.permute.xlu0 %3889
    %3893 = vset.pattern.permute.xlu0 0
    %3894 = vperm.xlu0 %3893, %v3880
    %v3895 = vpop.permute.xlu0 %3894
    %3898 = vset.pattern.permute.xlu0 0
    %3899 = vperm.xlu0 %3898, %v3881
    %v3900 = vpop.permute.xlu0 %3899
    %v3902 = vadd.f32 %v3874, %v3885
    %v3903 = vadd.f32 %v3875, %v3890
    %v3904 = vadd.f32 %v3876, %v3895
    %v3905 = vadd.f32 %v3877, %v3900
    %v3906 = vmax.f32 %v3902, 0.0
    %v3907 = vmax.f32 %v3903, 0.0
    %v3908 = vmax.f32 %v3904, 0.0
    %v3909 = vmax.f32 %v3905, 0.0
    %v3910 = vld [vmem:[%s1 + $0x1a0] sm:$0xff]
    %v3911 = vld [vmem:[%s1 + $0x1a8] sm:$0xff]
    %v3912 = vld [vmem:[%s1 + $0x1b0] sm:$0xff]
    %v3913 = vld [vmem:[%s1 + $0x1b8] sm:$0xff]
    %v3915 = vsel %vm679, %v3912, 0
    %v3918 = vsel %vm679, %v3913, 0
    %3920 = vmatprep.subr.mxu0 0.0
    %v3921 = vand.u32 %v3906, 4294901760
    %3922 = vmatpush1.msra.mxu0 %v3921
    %3923 = vmatprep.subr.mxu0 0.0
    %v3924 = vand.u32 %v3907, 4294901760
    %3925 = vmatpush1.msra.mxu0 %v3924
    %3926 = vmatprep.subr.mxu0 0.0
    %v3927 = vand.u32 %v3908, 4294901760
    %3928 = vmatpush1.msra.mxu0 %v3927
    %3929 = vmatprep.subr.mxu0 0.0
    %v3930 = vand.u32 %v3909, 4294901760
    %3931 = vmatpush1.msra.mxu0 %v3930
    %3932 = vmatprep.subr.mxu0 0.0
    %3933 = vmatpush1.msra.mxu0 0.0
    %3934 = vmatprep.subr.mxu0 0.0
    %3935 = vmatpush1.msra.mxu0 0.0
    %3936 = vmatprep.subr.mxu0 0.0
    %3937 = vmatpush1.msra.mxu0 0.0
    %3938 = vmatprep.subr.mxu0 0.0
    %3939 = vmatpush1.msra.mxu0 0.0
    %3940 = vmatprep.subr.mxu0 0.0
    %3941 = vmatpush1.msra.mxu0 0.0
    %3942 = vmatprep.subr.mxu0 0.0
    %3943 = vmatpush1.msra.mxu0 0.0
    %3944 = vmatprep.subr.mxu0 0.0
    %3945 = vmatpush1.msra.mxu0 0.0
    %3946 = vmatprep.subr.mxu0 0.0
    %3947 = vmatpush1.msra.mxu0 0.0
    %3948 = vmatprep.subr.mxu0 0.0
    %3949 = vmatpush1.msra.mxu0 0.0
    %3950 = vmatprep.subr.mxu0 0.0
    %3951 = vmatpush1.msra.mxu0 0.0
    %3952 = vmatprep.subr.mxu0 0.0
    %3953 = vmatpush1.msra.mxu0 0.0
    %3954 = vmatprep.subr.mxu0 0.0
    %3955 = vmatpush1.msra.mxu0 0.0
    %3956 = vmatprep.subr.mxu0 0.0
    %3957 = vmatpush1.msra.mxu0 0.0
    %3958 = vmatprep.subr.mxu0 0.0
    %3959 = vmatpush1.msra.mxu0 0.0
    %3960 = vmatprep.subr.mxu0 0.0
    %3961 = vmatpush1.msra.mxu0 0.0
    %3962 = vmatprep.subr.mxu0 0.0
    %3963 = vmatpush1.msra.mxu0 0.0
    %3964 = vmatprep.subr.mxu0 0.0
    %3965 = vmatpush1.msra.mxu0 0.0
    %3966 = vmatprep.subr.mxu0 0.0
    %3967 = vmatpush1.msra.mxu0 0.0
    %3968 = vmatprep.subr.mxu0 0.0
    %3969 = vmatpush1.msra.mxu0 0.0
    %3970 = vmatprep.subr.mxu0 0.0
    %3971 = vmatpush1.msra.mxu0 0.0
    %3972 = vmatprep.subr.mxu0 0.0
    %3973 = vmatpush1.msra.mxu0 0.0
    %3974 = vmatprep.subr.mxu0 0.0
    %3975 = vmatpush1.msra.mxu0 0.0
    %3976 = vmatprep.subr.mxu0 0.0
    %3977 = vmatpush1.msra.mxu0 0.0
    %3978 = vmatprep.subr.mxu0 0.0
    %3979 = vmatpush1.msra.mxu0 0.0
    %3980 = vmatprep.subr.mxu0 0.0
    %3981 = vmatpush1.msra.mxu0 0.0
    %3982 = vmatprep.subr.mxu0 0.0
    %3983 = vmatpush1.msra.mxu0 0.0
    %3984 = vmatprep.subr.mxu0 0.0
    %3985 = vmatpush1.msra.mxu0 0.0
    %3986 = vmatprep.subr.mxu0 0.0
    %3987 = vmatpush1.msra.mxu0 0.0
    %3988 = vmatprep.mubr.f32.mxu0 0.0
    %v3989 = vand.u32 %v3915, 4294901760
    %v3990 = vsub.f32 %v3915, %v3989
    %v3991 = vand.u32 %v3990, 4294901760
    %v3992 = vsub.f32 %v3990, %v3991
    %v3993 = vand.u32 %v3992, 4294901760
    %3994 = vmatmul.mubr.f32.gmra.mrb[0].mxu0 %v3993
    %v3995 = vpop.f32.mrb[0].mxu0
    %v3996 = vadd.f32 0.0, %v3995
    %v3997 = vpop.f32.mrb[0].mxu0
    %3998 = vmatprep.mubr.f32.mxu0 0.0
    %v3999 = vand.u32 %v3918, 4294901760
    %v4000 = vsub.f32 %v3918, %v3999
    %v4001 = vand.u32 %v4000, 4294901760
    %v4002 = vsub.f32 %v4000, %v4001
    %v4003 = vand.u32 %v4002, 4294901760
    %4004 = vmatmul.mubr.f32.gmra.mrb[0].mxu0 %v4003
    %v4005 = vpop.f32.mrb[0].mxu0
    %v4006 = vadd.f32 0.0, %v4005
    %v4007 = vpop.f32.mrb[0].mxu0
    %4008 = vdwg.mxu0
    %4009 = vmatprep.subr.mxu0 0.0
    %v4010 = vand.u32 %v3906, 4294901760
    %v4011 = vsub.f32 %v3906, %v4010
    %v4012 = vand.u32 %v4011, 4294901760
    %v4013 = vsub.f32 %v4011, %v4012
    %v4014 = vand.u32 %v4013, 4294901760
    %4015 = vmatpush1.msra.mxu0 %v4014
    %4016 = vmatprep.subr.mxu0 0.0
    %v4017 = vand.u32 %v3907, 4294901760
    %v4018 = vsub.f32 %v3907, %v4017
    %v4019 = vand.u32 %v4018, 4294901760
    %v4020 = vsub.f32 %v4018, %v4019
    %v4021 = vand.u32 %v4020, 4294901760
    %4022 = vmatpush1.msra.mxu0 %v4021
    %4023 = vmatprep.subr.mxu0 0.0
    %v4024 = vand.u32 %v3908, 4294901760
    %v4025 = vsub.f32 %v3908, %v4024
    %v4026 = vand.u32 %v4025, 4294901760
    %v4027 = vsub.f32 %v4025, %v4026
    %v4028 = vand.u32 %v4027, 4294901760
    %4029 = vmatpush1.msra.mxu0 %v4028
    %4030 = vmatprep.subr.mxu0 0.0
    %v4031 = vand.u32 %v3909, 4294901760
    %v4032 = vsub.f32 %v3909, %v4031
    %v4033 = vand.u32 %v4032, 4294901760
    %v4034 = vsub.f32 %v4032, %v4033
    %v4035 = vand.u32 %v4034, 4294901760
    %4036 = vmatpush1.msra.mxu0 %v4035
    %4037 = vmatprep.subr.mxu0 0.0
    %4038 = vmatpush1.msra.mxu0 0.0
    %4039 = vmatprep.subr.mxu0 0.0
    %4040 = vmatpush1.msra.mxu0 0.0
    %4041 = vmatprep.subr.mxu0 0.0
    %4042 = vmatpush1.msra.mxu0 0.0
    %4043 = vmatprep.subr.mxu0 0.0
    %4044 = vmatpush1.msra.mxu0 0.0
    %4045 = vmatprep.subr.mxu0 0.0
    %4046 = vmatpush1.msra.mxu0 0.0
    %4047 = vmatprep.subr.mxu0 0.0
    %4048 = vmatpush1.msra.mxu0 0.0
    %4049 = vmatprep.subr.mxu0 0.0
    %4050 = vmatpush1.msra.mxu0 0.0
    %4051 = vmatprep.subr.mxu0 0.0
    %4052 = vmatpush1.msra.mxu0 0.0
    %4053 = vmatprep.subr.mxu0 0.0
    %4054 = vmatpush1.msra.mxu0 0.0
    %4055 = vmatprep.subr.mxu0 0.0
    %4056 = vmatpush1.msra.mxu0 0.0
    %4057 = vmatprep.subr.mxu0 0.0
    %4058 = vmatpush1.msra.mxu0 0.0
    %4059 = vmatprep.subr.mxu0 0.0
    %4060 = vmatpush1.msra.mxu0 0.0
    %4061 = vmatprep.subr.mxu0 0.0
    %4062 = vmatpush1.msra.mxu0 0.0
    %4063 = vmatprep.subr.mxu0 0.0
    %4064 = vmatpush1.msra.mxu0 0.0
    %4065 = vmatprep.subr.mxu0 0.0
    %4066 = vmatpush1.msra.mxu0 0.0
    %4067 = vmatprep.subr.mxu0 0.0
    %4068 = vmatpush1.msra.mxu0 0.0
    %4069 = vmatprep.subr.mxu0 0.0
    %4070 = vmatpush1.msra.mxu0 0.0
    %4071 = vmatprep.subr.mxu0 0.0
    %4072 = vmatpush1.msra.mxu0 0.0
    %4073 = vmatprep.subr.mxu0 0.0
    %4074 = vmatpush1.msra.mxu0 0.0
    %4075 = vmatprep.subr.mxu0 0.0
    %4076 = vmatpush1.msra.mxu0 0.0
    %4077 = vmatprep.subr.mxu0 0.0
    %4078 = vmatpush1.msra.mxu0 0.0
    %4079 = vmatprep.subr.mxu0 0.0
    %4080 = vmatpush1.msra.mxu0 0.0
    %4081 = vmatprep.subr.mxu0 0.0
    %4082 = vmatpush1.msra.mxu0 0.0
    %4083 = vmatprep.subr.mxu0 0.0
    %4084 = vmatpush1.msra.mxu0 0.0
    %4085 = vmatprep.subr.mxu0 0.0
    %4086 = vmatpush1.msra.mxu0 0.0
    %4087 = vmatprep.subr.mxu0 0.0
    %4088 = vmatpush1.msra.mxu0 0.0
    %4089 = vmatprep.subr.mxu0 0.0
    %4090 = vmatpush1.msra.mxu0 0.0
    %4091 = vmatprep.subr.mxu0 0.0
    %4092 = vmatpush1.msra.mxu0 0.0
    %4093 = vmatprep.mubr.f32.mxu0 0.0
    %v4094 = vand.u32 %v3915, 4294901760
    %4095 = vmatmul.mubr.f32.gmra.mrb[0].mxu0 %v4094
    %v4096 = vpop.f32.mrb[0].mxu0
    %v4097 = vadd.f32 %v3996, %v4096
    %v4098 = vpop.f32.mrb[0].mxu0
    %4099 = vmatprep.mubr.f32.mxu0 0.0
    %v4100 = vand.u32 %v3918, 4294901760
    %4101 = vmatmul.mubr.f32.gmra.mrb[0].mxu0 %v4100
    %v4102 = vpop.f32.mrb[0].mxu0
    %v4103 = vadd.f32 %v4006, %v4102
    %v4104 = vpop.f32.mrb[0].mxu0
    %4105 = vdwg.mxu0
    %4106 = vmatprep.subr.mxu0 0.0
    %v4107 = vand.u32 %v3906, 4294901760
    %v4108 = vsub.f32 %v3906, %v4107
    %4109 = vmatpush1.msra.mxu0 %v4108
    %4110 = vmatprep.subr.mxu0 0.0
    %v4111 = vand.u32 %v3907, 4294901760
    %v4112 = vsub.f32 %v3907, %v4111
    %4113 = vmatpush1.msra.mxu0 %v4112
    %4114 = vmatprep.subr.mxu0 0.0
    %v4115 = vand.u32 %v3908, 4294901760
    %v4116 = vsub.f32 %v3908, %v4115
    %4117 = vmatpush1.msra.mxu0 %v4116
    %4118 = vmatprep.subr.mxu0 0.0
    %v4119 = vand.u32 %v3909, 4294901760
    %v4120 = vsub.f32 %v3909, %v4119
    %4121 = vmatpush1.msra.mxu0 %v4120
    %4122 = vmatprep.subr.mxu0 0.0
    %4123 = vmatpush1.msra.mxu0 0.0
    %4124 = vmatprep.subr.mxu0 0.0
    %4125 = vmatpush1.msra.mxu0 0.0
    %4126 = vmatprep.subr.mxu0 0.0
    %4127 = vmatpush1.msra.mxu0 0.0
    %4128 = vmatprep.subr.mxu0 0.0
    %4129 = vmatpush1.msra.mxu0 0.0
    %4130 = vmatprep.subr.mxu0 0.0
    %4131 = vmatpush1.msra.mxu0 0.0
    %4132 = vmatprep.subr.mxu0 0.0
    %4133 = vmatpush1.msra.mxu0 0.0
    %4134 = vmatprep.subr.mxu0 0.0
    %4135 = vmatpush1.msra.mxu0 0.0
    %4136 = vmatprep.subr.mxu0 0.0
    %4137 = vmatpush1.msra.mxu0 0.0
    %4138 = vmatprep.subr.mxu0 0.0
    %4139 = vmatpush1.msra.mxu0 0.0
    %4140 = vmatprep.subr.mxu0 0.0
    %4141 = vmatpush1.msra.mxu0 0.0
    %4142 = vmatprep.subr.mxu0 0.0
    %4143 = vmatpush1.msra.mxu0 0.0
    %4144 = vmatprep.subr.mxu0 0.0
    %4145 = vmatpush1.msra.mxu0 0.0
    %4146 = vmatprep.subr.mxu0 0.0
    %4147 = vmatpush1.msra.mxu0 0.0
    %4148 = vmatprep.subr.mxu0 0.0
    %4149 = vmatpush1.msra.mxu0 0.0
    %4150 = vmatprep.subr.mxu0 0.0
    %4151 = vmatpush1.msra.mxu0 0.0
    %4152 = vmatprep.subr.mxu0 0.0
    %4153 = vmatpush1.msra.mxu0 0.0
    %4154 = vmatprep.subr.mxu0 0.0
    %4155 = vmatpush1.msra.mxu0 0.0
    %4156 = vmatprep.subr.mxu0 0.0
    %4157 = vmatpush1.msra.mxu0 0.0
    %4158 = vmatprep.subr.mxu0 0.0
    %4159 = vmatpush1.msra.mxu0 0.0
    %4160 = vmatprep.subr.mxu0 0.0
    %4161 = vmatpush1.msra.mxu0 0.0
    %4162 = vmatprep.subr.mxu0 0.0
    %4163 = vmatpush1.msra.mxu0 0.0
    %4164 = vmatprep.subr.mxu0 0.0
    %4165 = vmatpush1.msra.mxu0 0.0
    %4166 = vmatprep.subr.mxu0 0.0
    %4167 = vmatpush1.msra.mxu0 0.0
    %4168 = vmatprep.subr.mxu0 0.0
    %4169 = vmatpush1.msra.mxu0 0.0
    %4170 = vmatprep.subr.mxu0 0.0
    %4171 = vmatpush1.msra.mxu0 0.0
    %4172 = vmatprep.subr.mxu0 0.0
    %4173 = vmatpush1.msra.mxu0 0.0
    %4174 = vmatprep.subr.mxu0 0.0
    %4175 = vmatpush1.msra.mxu0 0.0
    %4176 = vmatprep.subr.mxu0 0.0
    %4177 = vmatpush1.msra.mxu0 0.0
    %4178 = vmatprep.mubr.f32.mxu0 0.0
    %v4179 = vand.u32 %v3915, 4294901760
    %v4180 = vsub.f32 %v3915, %v4179
    %4181 = vmatmul.mubr.f32.gmra.mrb[0].mxu0 %v4180
    %v4182 = vpop.f32.mrb[0].mxu0
    %v4183 = vadd.f32 %v4097, %v4182
    %v4184 = vpop.f32.mrb[0].mxu0
    %4185 = vmatprep.mubr.f32.mxu0 0.0
    %v4186 = vand.u32 %v3918, 4294901760
    %v4187 = vsub.f32 %v3918, %v4186
    %4188 = vmatmul.mubr.f32.gmra.mrb[0].mxu0 %v4187
    %v4189 = vpop.f32.mrb[0].mxu0
    %v4190 = vadd.f32 %v4103, %v4189
    %v4191 = vpop.f32.mrb[0].mxu0
    %4192 = vdwg.mxu0
    %4193 = vmatprep.subr.mxu0 0.0
    %v4194 = vand.u32 %v3906, 4294901760
    %4195 = vmatpush1.msra.mxu0 %v4194
    %4196 = vmatprep.subr.mxu0 0.0
    %v4197 = vand.u32 %v3907, 4294901760
    %4198 = vmatpush1.msra.mxu0 %v4197
    %4199 = vmatprep.subr.mxu0 0.0
    %v4200 = vand.u32 %v3908, 4294901760
    %4201 = vmatpush1.msra.mxu0 %v4200
    %4202 = vmatprep.subr.mxu0 0.0
    %v4203 = vand.u32 %v3909, 4294901760
    %4204 = vmatpush1.msra.mxu0 %v4203
    %4205 = vmatprep.subr.mxu0 0.0
    %4206 = vmatpush1.msra.mxu0 0.0
    %4207 = vmatprep.subr.mxu0 0.0
    %4208 = vmatpush1.msra.mxu0 0.0
    %4209 = vmatprep.subr.mxu0 0.0
    %4210 = vmatpush1.msra.mxu0 0.0
    %4211 = vmatprep.subr.mxu0 0.0
    %4212 = vmatpush1.msra.mxu0 0.0
    %4213 = vmatprep.subr.mxu0 0.0
    %4214 = vmatpush1.msra.mxu0 0.0
    %4215 = vmatprep.subr.mxu0 0.0
    %4216 = vmatpush1.msra.mxu0 0.0
    %4217 = vmatprep.subr.mxu0 0.0
    %4218 = vmatpush1.msra.mxu0 0.0
    %4219 = vmatprep.subr.mxu0 0.0
    %4220 = vmatpush1.msra.mxu0 0.0
    %4221 = vmatprep.subr.mxu0 0.0
    %4222 = vmatpush1.msra.mxu0 0.0
    %4223 = vmatprep.subr.mxu0 0.0
    %4224 = vmatpush1.msra.mxu0 0.0
    %4225 = vmatprep.subr.mxu0 0.0
    %4226 = vmatpush1.msra.mxu0 0.0
    %4227 = vmatprep.subr.mxu0 0.0
    %4228 = vmatpush1.msra.mxu0 0.0
    %4229 = vmatprep.subr.mxu0 0.0
    %4230 = vmatpush1.msra.mxu0 0.0
    %4231 = vmatprep.subr.mxu0 0.0
    %4232 = vmatpush1.msra.mxu0 0.0
    %4233 = vmatprep.subr.mxu0 0.0
    %4234 = vmatpush1.msra.mxu0 0.0
    %4235 = vmatprep.subr.mxu0 0.0
    %4236 = vmatpush1.msra.mxu0 0.0
    %4237 = vmatprep.subr.mxu0 0.0
    %4238 = vmatpush1.msra.mxu0 0.0
    %4239 = vmatprep.subr.mxu0 0.0
    %4240 = vmatpush1.msra.mxu0 0.0
    %4241 = vmatprep.subr.mxu0 0.0
    %4242 = vmatpush1.msra.mxu0 0.0
    %4243 = vmatprep.subr.mxu0 0.0
    %4244 = vmatpush1.msra.mxu0 0.0
    %4245 = vmatprep.subr.mxu0 0.0
    %4246 = vmatpush1.msra.mxu0 0.0
    %4247 = vmatprep.subr.mxu0 0.0
    %4248 = vmatpush1.msra.mxu0 0.0
    %4249 = vmatprep.subr.mxu0 0.0
    %4250 = vmatpush1.msra.mxu0 0.0
    %4251 = vmatprep.subr.mxu0 0.0
    %4252 = vmatpush1.msra.mxu0 0.0
    %4253 = vmatprep.subr.mxu0 0.0
    %4254 = vmatpush1.msra.mxu0 0.0
    %4255 = vmatprep.subr.mxu0 0.0
    %4256 = vmatpush1.msra.mxu0 0.0
    %4257 = vmatprep.subr.mxu0 0.0
    %4258 = vmatpush1.msra.mxu0 0.0
    %4259 = vmatprep.subr.mxu0 0.0
    %4260 = vmatpush1.msra.mxu0 0.0
    %4261 = vmatprep.mubr.f32.mxu0 0.0
    %v4262 = vand.u32 %v3915, 4294901760
    %v4263 = vsub.f32 %v3915, %v4262
    %v4264 = vand.u32 %v4263, 4294901760
    %4265 = vmatmul.mubr.f32.gmra.mrb[0].mxu0 %v4264
    %v4266 = vpop.f32.mrb[0].mxu0
    %v4267 = vadd.f32 %v4183, %v4266
    %v4268 = vpop.f32.mrb[0].mxu0
    %4269 = vmatprep.mubr.f32.mxu0 0.0
    %v4270 = vand.u32 %v3918, 4294901760
    %v4271 = vsub.f32 %v3918, %v4270
    %v4272 = vand.u32 %v4271, 4294901760
    %4273 = vmatmul.mubr.f32.gmra.mrb[0].mxu0 %v4272
    %v4274 = vpop.f32.mrb[0].mxu0
    %v4275 = vadd.f32 %v4190, %v4274
    %v4276 = vpop.f32.mrb[0].mxu0
    %4277 = vdwg.mxu0
    %4278 = vmatprep.subr.mxu0 0.0
    %v4279 = vand.u32 %v3906, 4294901760
    %v4280 = vsub.f32 %v3906, %v4279
    %v4281 = vand.u32 %v4280, 4294901760
    %4282 = vmatpush1.msra.mxu0 %v4281
    %4283 = vmatprep.subr.mxu0 0.0
    %v4284 = vand.u32 %v3907, 4294901760
    %v4285 = vsub.f32 %v3907, %v4284
    %v4286 = vand.u32 %v4285, 4294901760
    %4287 = vmatpush1.msra.mxu0 %v4286
    %4288 = vmatprep.subr.mxu0 0.0
    %v4289 = vand.u32 %v3908, 4294901760
    %v4290 = vsub.f32 %v3908, %v4289
    %v4291 = vand.u32 %v4290, 4294901760
    %4292 = vmatpush1.msra.mxu0 %v4291
    %4293 = vmatprep.subr.mxu0 0.0
    %v4294 = vand.u32 %v3909, 4294901760
    %v4295 = vsub.f32 %v3909, %v4294
    %v4296 = vand.u32 %v4295, 4294901760
    %4297 = vmatpush1.msra.mxu0 %v4296
    %4298 = vmatprep.subr.mxu0 0.0
    %4299 = vmatpush1.msra.mxu0 0.0
    %4300 = vmatprep.subr.mxu0 0.0
    %4301 = vmatpush1.msra.mxu0 0.0
    %4302 = vmatprep.subr.mxu0 0.0
    %4303 = vmatpush1.msra.mxu0 0.0
    %4304 = vmatprep.subr.mxu0 0.0
    %4305 = vmatpush1.msra.mxu0 0.0
    %4306 = vmatprep.subr.mxu0 0.0
    %4307 = vmatpush1.msra.mxu0 0.0
    %4308 = vmatprep.subr.mxu0 0.0
    %4309 = vmatpush1.msra.mxu0 0.0
    %4310 = vmatprep.subr.mxu0 0.0
    %4311 = vmatpush1.msra.mxu0 0.0
    %4312 = vmatprep.subr.mxu0 0.0
    %4313 = vmatpush1.msra.mxu0 0.0
    %4314 = vmatprep.subr.mxu0 0.0
    %4315 = vmatpush1.msra.mxu0 0.0
    %4316 = vmatprep.subr.mxu0 0.0
    %4317 = vmatpush1.msra.mxu0 0.0
    %4318 = vmatprep.subr.mxu0 0.0
    %4319 = vmatpush1.msra.mxu0 0.0
    %4320 = vmatprep.subr.mxu0 0.0
    %4321 = vmatpush1.msra.mxu0 0.0
    %4322 = vmatprep.subr.mxu0 0.0
    %4323 = vmatpush1.msra.mxu0 0.0
    %4324 = vmatprep.subr.mxu0 0.0
    %4325 = vmatpush1.msra.mxu0 0.0
    %4326 = vmatprep.subr.mxu0 0.0
    %4327 = vmatpush1.msra.mxu0 0.0
    %4328 = vmatprep.subr.mxu0 0.0
    %4329 = vmatpush1.msra.mxu0 0.0
    %4330 = vmatprep.subr.mxu0 0.0
    %4331 = vmatpush1.msra.mxu0 0.0
    %4332 = vmatprep.subr.mxu0 0.0
    %4333 = vmatpush1.msra.mxu0 0.0
    %4334 = vmatprep.subr.mxu0 0.0
    %4335 = vmatpush1.msra.mxu0 0.0
    %4336 = vmatprep.subr.mxu0 0.0
    %4337 = vmatpush1.msra.mxu0 0.0
    %4338 = vmatprep.subr.mxu0 0.0
    %4339 = vmatpush1.msra.mxu0 0.0
    %4340 = vmatprep.subr.mxu0 0.0
    %4341 = vmatpush1.msra.mxu0 0.0
    %4342 = vmatprep.subr.mxu0 0.0
    %4343 = vmatpush1.msra.mxu0 0.0
    %4344 = vmatprep.subr.mxu0 0.0
    %4345 = vmatpush1.msra.mxu0 0.0
    %4346 = vmatprep.subr.mxu0 0.0
    %4347 = vmatpush1.msra.mxu0 0.0
    %4348 = vmatprep.subr.mxu0 0.0
    %4349 = vmatpush1.msra.mxu0 0.0
    %4350 = vmatprep.subr.mxu0 0.0
    %4351 = vmatpush1.msra.mxu0 0.0
    %4352 = vmatprep.subr.mxu0 0.0
    %4353 = vmatpush1.msra.mxu0 0.0
    %4354 = vmatprep.mubr.f32.mxu0 0.0
    %v4355 = vand.u32 %v3915, 4294901760
    %4356 = vmatmul.mubr.f32.gmra.mrb[0].mxu0 %v4355
    %v4357 = vpop.f32.mrb[0].mxu0
    %v4358 = vadd.f32 %v4267, %v4357
    %v4359 = vpop.f32.mrb[0].mxu0
    %4360 = vmatprep.mubr.f32.mxu0 0.0
    %v4361 = vand.u32 %v3918, 4294901760
    %4362 = vmatmul.mubr.f32.gmra.mrb[0].mxu0 %v4361
    %v4363 = vpop.f32.mrb[0].mxu0
    %v4364 = vadd.f32 %v4275, %v4363
    %v4365 = vpop.f32.mrb[0].mxu0
    %4366 = vdwg.mxu0
    %4367 = vmatprep.subr.mxu0 0.0
    %v4368 = vand.u32 %v3906, 4294901760
    %4369 = vmatpush1.msra.mxu0 %v4368
    %4370 = vmatprep.subr.mxu0 0.0
    %v4371 = vand.u32 %v3907, 4294901760
    %4372 = vmatpush1.msra.mxu0 %v4371
    %4373 = vmatprep.subr.mxu0 0.0
    %v4374 = vand.u32 %v3908, 4294901760
    %4375 = vmatpush1.msra.mxu0 %v4374
    %4376 = vmatprep.subr.mxu0 0.0
    %v4377 = vand.u32 %v3909, 4294901760
    %4378 = vmatpush1.msra.mxu0 %v4377
    %4379 = vmatprep.subr.mxu0 0.0
    %4380 = vmatpush1.msra.mxu0 0.0
    %4381 = vmatprep.subr.mxu0 0.0
    %4382 = vmatpush1.msra.mxu0 0.0
    %4383 = vmatprep.subr.mxu0 0.0
    %4384 = vmatpush1.msra.mxu0 0.0
    %4385 = vmatprep.subr.mxu0 0.0
    %4386 = vmatpush1.msra.mxu0 0.0
    %4387 = vmatprep.subr.mxu0 0.0
    %4388 = vmatpush1.msra.mxu0 0.0
    %4389 = vmatprep.subr.mxu0 0.0
    %4390 = vmatpush1.msra.mxu0 0.0
    %4391 = vmatprep.subr.mxu0 0.0
    %4392 = vmatpush1.msra.mxu0 0.0
    %4393 = vmatprep.subr.mxu0 0.0
    %4394 = vmatpush1.msra.mxu0 0.0
    %4395 = vmatprep.subr.mxu0 0.0
    %4396 = vmatpush1.msra.mxu0 0.0
    %4397 = vmatprep.subr.mxu0 0.0
    %4398 = vmatpush1.msra.mxu0 0.0
    %4399 = vmatprep.subr.mxu0 0.0
    %4400 = vmatpush1.msra.mxu0 0.0
    %4401 = vmatprep.subr.mxu0 0.0
    %4402 = vmatpush1.msra.mxu0 0.0
    %4403 = vmatprep.subr.mxu0 0.0
    %4404 = vmatpush1.msra.mxu0 0.0
    %4405 = vmatprep.subr.mxu0 0.0
    %4406 = vmatpush1.msra.mxu0 0.0
    %4407 = vmatprep.subr.mxu0 0.0
    %4408 = vmatpush1.msra.mxu0 0.0
    %4409 = vmatprep.subr.mxu0 0.0
    %4410 = vmatpush1.msra.mxu0 0.0
    %4411 = vmatprep.subr.mxu0 0.0
    %4412 = vmatpush1.msra.mxu0 0.0
    %4413 = vmatprep.subr.mxu0 0.0
    %4414 = vmatpush1.msra.mxu0 0.0
    %4415 = vmatprep.subr.mxu0 0.0
    %4416 = vmatpush1.msra.mxu0 0.0
    %4417 = vmatprep.subr.mxu0 0.0
    %4418 = vmatpush1.msra.mxu0 0.0
    %4419 = vmatprep.subr.mxu0 0.0
    %4420 = vmatpush1.msra.mxu0 0.0
    %4421 = vmatprep.subr.mxu0 0.0
    %4422 = vmatpush1.msra.mxu0 0.0
    %4423 = vmatprep.subr.mxu0 0.0
    %4424 = vmatpush1.msra.mxu0 0.0
    %4425 = vmatprep.subr.mxu0 0.0
    %4426 = vmatpush1.msra.mxu0 0.0
    %4427 = vmatprep.subr.mxu0 0.0
    %4428 = vmatpush1.msra.mxu0 0.0
    %4429 = vmatprep.subr.mxu0 0.0
    %4430 = vmatpush1.msra.mxu0 0.0
    %4431 = vmatprep.subr.mxu0 0.0
    %4432 = vmatpush1.msra.mxu0 0.0
    %4433 = vmatprep.subr.mxu0 0.0
    %4434 = vmatpush1.msra.mxu0 0.0
    %4435 = vmatprep.mubr.f32.mxu0 0.0
    %v4436 = vand.u32 %v3915, 4294901760
    %4437 = vmatmul.mubr.f32.gmra.mrb[0].mxu0 %v4436
    %v4438 = vpop.f32.mrb[0].mxu0
    %v4439 = vadd.f32 %v4358, %v4438
    %v4440 = vpop.f32.mrb[0].mxu0
    %4441 = vmatprep.mubr.f32.mxu0 0.0
    %v4442 = vand.u32 %v3918, 4294901760
    %4443 = vmatmul.mubr.f32.gmra.mrb[0].mxu0 %v4442
    %v4444 = vpop.f32.mrb[0].mxu0
    %v4445 = vadd.f32 %v4364, %v4444
    %v4446 = vpop.f32.mrb[0].mxu0
    %4447 = vdwg.mxu0
    %v4449 = vsel %vm679, %v3910, 0
    %v4452 = vsel %vm679, %v3911, 0
    %4454 = vmatprep.subr.mxu0 0.0
    %v4455 = vand.u32 %v2607, 4294901760
    %4456 = vmatpush1.msra.mxu0 %v4455
    %4457 = vmatprep.subr.mxu0 0.0
    %v4458 = vand.u32 %v2608, 4294901760
    %4459 = vmatpush1.msra.mxu0 %v4458
    %4460 = vmatprep.subr.mxu0 0.0
    %v4461 = vand.u32 %v2609, 4294901760
    %4462 = vmatpush1.msra.mxu0 %v4461
    %4463 = vmatprep.subr.mxu0 0.0
    %v4464 = vand.u32 %v2610, 4294901760
    %4465 = vmatpush1.msra.mxu0 %v4464
    %4466 = vmatprep.subr.mxu0 0.0
    %4467 = vmatpush1.msra.mxu0 0.0
    %4468 = vmatprep.subr.mxu0 0.0
    %4469 = vmatpush1.msra.mxu0 0.0
    %4470 = vmatprep.subr.mxu0 0.0
    %4471 = vmatpush1.msra.mxu0 0.0
    %4472 = vmatprep.subr.mxu0 0.0
    %4473 = vmatpush1.msra.mxu0 0.0
    %4474 = vmatprep.subr.mxu0 0.0
    %4475 = vmatpush1.msra.mxu0 0.0
    %4476 = vmatprep.subr.mxu0 0.0
    %4477 = vmatpush1.msra.mxu0 0.0
    %4478 = vmatprep.subr.mxu0 0.0
    %4479 = vmatpush1.msra.mxu0 0.0
    %4480 = vmatprep.subr.mxu0 0.0
    %4481 = vmatpush1.msra.mxu0 0.0
    %4482 = vmatprep.subr.mxu0 0.0
    %4483 = vmatpush1.msra.mxu0 0.0
    %4484 = vmatprep.subr.mxu0 0.0
    %4485 = vmatpush1.msra.mxu0 0.0
    %4486 = vmatprep.subr.mxu0 0.0
    %4487 = vmatpush1.msra.mxu0 0.0
    %4488 = vmatprep.subr.mxu0 0.0
    %4489 = vmatpush1.msra.mxu0 0.0
    %4490 = vmatprep.subr.mxu0 0.0
    %4491 = vmatpush1.msra.mxu0 0.0
    %4492 = vmatprep.subr.mxu0 0.0
    %4493 = vmatpush1.msra.mxu0 0.0
    %4494 = vmatprep.subr.mxu0 0.0
    %4495 = vmatpush1.msra.mxu0 0.0
    %4496 = vmatprep.subr.mxu0 0.0
    %4497 = vmatpush1.msra.mxu0 0.0
    %4498 = vmatprep.subr.mxu0 0.0
    %4499 = vmatpush1.msra.mxu0 0.0
    %4500 = vmatprep.subr.mxu0 0.0
    %4501 = vmatpush1.msra.mxu0 0.0
    %4502 = vmatprep.subr.mxu0 0.0
    %4503 = vmatpush1.msra.mxu0 0.0
    %4504 = vmatprep.subr.mxu0 0.0
    %4505 = vmatpush1.msra.mxu0 0.0
    %4506 = vmatprep.subr.mxu0 0.0
    %4507 = vmatpush1.msra.mxu0 0.0
    %4508 = vmatprep.subr.mxu0 0.0
    %4509 = vmatpush1.msra.mxu0 0.0
    %4510 = vmatprep.subr.mxu0 0.0
    %4511 = vmatpush1.msra.mxu0 0.0
    %4512 = vmatprep.subr.mxu0 0.0
    %4513 = vmatpush1.msra.mxu0 0.0
    %4514 = vmatprep.subr.mxu0 0.0
    %4515 = vmatpush1.msra.mxu0 0.0
    %4516 = vmatprep.subr.mxu0 0.0
    %4517 = vmatpush1.msra.mxu0 0.0
    %4518 = vmatprep.subr.mxu0 0.0
    %4519 = vmatpush1.msra.mxu0 0.0
    %4520 = vmatprep.subr.mxu0 0.0
    %4521 = vmatpush1.msra.mxu0 0.0
    %4522 = vmatprep.mubr.f32.mxu0 0.0
    %v4523 = vand.u32 %v4449, 4294901760
    %v4524 = vsub.f32 %v4449, %v4523
    %v4525 = vand.u32 %v4524, 4294901760
    %v4526 = vsub.f32 %v4524, %v4525
    %v4527 = vand.u32 %v4526, 4294901760
    %4528 = vmatmul.mubr.f32.gmra.mrb[0].mxu0 %v4527
    %v4529 = vpop.f32.mrb[0].mxu0
    %v4530 = vadd.f32 %v4439, %v4529
    %v4531 = vpop.f32.mrb[0].mxu0
    %4532 = vmatprep.mubr.f32.mxu0 0.0
    %v4533 = vand.u32 %v4452, 4294901760
    %v4534 = vsub.f32 %v4452, %v4533
    %v4535 = vand.u32 %v4534, 4294901760
    %v4536 = vsub.f32 %v4534, %v4535
    %v4537 = vand.u32 %v4536, 4294901760
    %4538 = vmatmul.mubr.f32.gmra.mrb[0].mxu0 %v4537
    %v4539 = vpop.f32.mrb[0].mxu0
    %v4540 = vadd.f32 %v4445, %v4539
    %v4541 = vpop.f32.mrb[0].mxu0
    %4542 = vdwg.mxu0
    %4543 = vmatprep.subr.mxu0 0.0
    %v4544 = vand.u32 %v2607, 4294901760
    %v4545 = vsub.f32 %v2607, %v4544
    %v4546 = vand.u32 %v4545, 4294901760
    %v4547 = vsub.f32 %v4545, %v4546
    %v4548 = vand.u32 %v4547, 4294901760
    %4549 = vmatpush1.msra.mxu0 %v4548
    %4550 = vmatprep.subr.mxu0 0.0
    %v4551 = vand.u32 %v2608, 4294901760
    %v4552 = vsub.f32 %v2608, %v4551
    %v4553 = vand.u32 %v4552, 4294901760
    %v4554 = vsub.f32 %v4552, %v4553
    %v4555 = vand.u32 %v4554, 4294901760
    %4556 = vmatpush1.msra.mxu0 %v4555
    %4557 = vmatprep.subr.mxu0 0.0
    %v4558 = vand.u32 %v2609, 4294901760
    %v4559 = vsub.f32 %v2609, %v4558
    %v4560 = vand.u32 %v4559, 4294901760
    %v4561 = vsub.f32 %v4559, %v4560
    %v4562 = vand.u32 %v4561, 4294901760
    %4563 = vmatpush1.msra.mxu0 %v4562
    %4564 = vmatprep.subr.mxu0 0.0
    %v4565 = vand.u32 %v2610, 4294901760
    %v4566 = vsub.f32 %v2610, %v4565
    %v4567 = vand.u32 %v4566, 4294901760
    %v4568 = vsub.f32 %v4566, %v4567
    %v4569 = vand.u32 %v4568, 4294901760
    %4570 = vmatpush1.msra.mxu0 %v4569
    %4571 = vmatprep.subr.mxu0 0.0
    %4572 = vmatpush1.msra.mxu0 0.0
    %4573 = vmatprep.subr.mxu0 0.0
    %4574 = vmatpush1.msra.mxu0 0.0
    %4575 = vmatprep.subr.mxu0 0.0
    %4576 = vmatpush1.msra.mxu0 0.0
    %4577 = vmatprep.subr.mxu0 0.0
    %4578 = vmatpush1.msra.mxu0 0.0
    %4579 = vmatprep.subr.mxu0 0.0
    %4580 = vmatpush1.msra.mxu0 0.0
    %4581 = vmatprep.subr.mxu0 0.0
    %4582 = vmatpush1.msra.mxu0 0.0
    %4583 = vmatprep.subr.mxu0 0.0
    %4584 = vmatpush1.msra.mxu0 0.0
    %4585 = vmatprep.subr.mxu0 0.0
    %4586 = vmatpush1.msra.mxu0 0.0
    %4587 = vmatprep.subr.mxu0 0.0
    %4588 = vmatpush1.msra.mxu0 0.0
    %4589 = vmatprep.subr.mxu0 0.0
    %4590 = vmatpush1.msra.mxu0 0.0
    %4591 = vmatprep.subr.mxu0 0.0
    %4592 = vmatpush1.msra.mxu0 0.0
    %4593 = vmatprep.subr.mxu0 0.0
    %4594 = vmatpush1.msra.mxu0 0.0
    %4595 = vmatprep.subr.mxu0 0.0
    %4596 = vmatpush1.msra.mxu0 0.0
    %4597 = vmatprep.subr.mxu0 0.0
    %4598 = vmatpush1.msra.mxu0 0.0
    %4599 = vmatprep.subr.mxu0 0.0
    %4600 = vmatpush1.msra.mxu0 0.0
    %4601 = vmatprep.subr.mxu0 0.0
    %4602 = vmatpush1.msra.mxu0 0.0
    %4603 = vmatprep.subr.mxu0 0.0
    %4604 = vmatpush1.msra.mxu0 0.0
    %4605 = vmatprep.subr.mxu0 0.0
    %4606 = vmatpush1.msra.mxu0 0.0
    %4607 = vmatprep.subr.mxu0 0.0
    %4608 = vmatpush1.msra.mxu0 0.0
    %4609 = vmatprep.subr.mxu0 0.0
    %4610 = vmatpush1.msra.mxu0 0.0
    %4611 = vmatprep.subr.mxu0 0.0
    %4612 = vmatpush1.msra.mxu0 0.0
    %4613 = vmatprep.subr.mxu0 0.0
    %4614 = vmatpush1.msra.mxu0 0.0
    %4615 = vmatprep.subr.mxu0 0.0
    %4616 = vmatpush1.msra.mxu0 0.0
    %4617 = vmatprep.subr.mxu0 0.0
    %4618 = vmatpush1.msra.mxu0 0.0
    %4619 = vmatprep.subr.mxu0 0.0
    %4620 = vmatpush1.msra.mxu0 0.0
    %4621 = vmatprep.subr.mxu0 0.0
    %4622 = vmatpush1.msra.mxu0 0.0
    %4623 = vmatprep.subr.mxu0 0.0
    %4624 = vmatpush1.msra.mxu0 0.0
    %4625 = vmatprep.subr.mxu0 0.0
    %4626 = vmatpush1.msra.mxu0 0.0
    %4627 = vmatprep.mubr.f32.mxu0 0.0
    %v4628 = vand.u32 %v4449, 4294901760
    %4629 = vmatmul.mubr.f32.gmra.mrb[0].mxu0 %v4628
    %v4630 = vpop.f32.mrb[0].mxu0
    %v4631 = vadd.f32 %v4530, %v4630
    %v4632 = vpop.f32.mrb[0].mxu0
    %4633 = vmatprep.mubr.f32.mxu0 0.0
    %v4634 = vand.u32 %v4452, 4294901760
    %4635 = vmatmul.mubr.f32.gmra.mrb[0].mxu0 %v4634
    %v4636 = vpop.f32.mrb[0].mxu0
    %v4637 = vadd.f32 %v4540, %v4636
    %v4638 = vpop.f32.mrb[0].mxu0
    %4639 = vdwg.mxu0
    %4640 = vmatprep.subr.mxu0 0.0
    %v4641 = vand.u32 %v2607, 4294901760
    %v4642 = vsub.f32 %v2607, %v4641
    %4643 = vmatpush1.msra.mxu0 %v4642
    %4644 = vmatprep.subr.mxu0 0.0
    %v4645 = vand.u32 %v2608, 4294901760
    %v4646 = vsub.f32 %v2608, %v4645
    %4647 = vmatpush1.msra.mxu0 %v4646
    %4648 = vmatprep.subr.mxu0 0.0
    %v4649 = vand.u32 %v2609, 4294901760
    %v4650 = vsub.f32 %v2609, %v4649
    %4651 = vmatpush1.msra.mxu0 %v4650
    %4652 = vmatprep.subr.mxu0 0.0
    %v4653 = vand.u32 %v2610, 4294901760
    %v4654 = vsub.f32 %v2610, %v4653
    %4655 = vmatpush1.msra.mxu0 %v4654
    %4656 = vmatprep.subr.mxu0 0.0
    %4657 = vmatpush1.msra.mxu0 0.0
    %4658 = vmatprep.subr.mxu0 0.0
    %4659 = vmatpush1.msra.mxu0 0.0
    %4660 = vmatprep.subr.mxu0 0.0
    %4661 = vmatpush1.msra.mxu0 0.0
    %4662 = vmatprep.subr.mxu0 0.0
    %4663 = vmatpush1.msra.mxu0 0.0
    %4664 = vmatprep.subr.mxu0 0.0
    %4665 = vmatpush1.msra.mxu0 0.0
    %4666 = vmatprep.subr.mxu0 0.0
    %4667 = vmatpush1.msra.mxu0 0.0
    %4668 = vmatprep.subr.mxu0 0.0
    %4669 = vmatpush1.msra.mxu0 0.0
    %4670 = vmatprep.subr.mxu0 0.0
    %4671 = vmatpush1.msra.mxu0 0.0
    %4672 = vmatprep.subr.mxu0 0.0
    %4673 = vmatpush1.msra.mxu0 0.0
    %4674 = vmatprep.subr.mxu0 0.0
    %4675 = vmatpush1.msra.mxu0 0.0
    %4676 = vmatprep.subr.mxu0 0.0
    %4677 = vmatpush1.msra.mxu0 0.0
    %4678 = vmatprep.subr.mxu0 0.0
    %4679 = vmatpush1.msra.mxu0 0.0
    %4680 = vmatprep.subr.mxu0 0.0
    %4681 = vmatpush1.msra.mxu0 0.0
    %4682 = vmatprep.subr.mxu0 0.0
    %4683 = vmatpush1.msra.mxu0 0.0
    %4684 = vmatprep.subr.mxu0 0.0
    %4685 = vmatpush1.msra.mxu0 0.0
    %4686 = vmatprep.subr.mxu0 0.0
    %4687 = vmatpush1.msra.mxu0 0.0
    %4688 = vmatprep.subr.mxu0 0.0
    %4689 = vmatpush1.msra.mxu0 0.0
    %4690 = vmatprep.subr.mxu0 0.0
    %4691 = vmatpush1.msra.mxu0 0.0
    %4692 = vmatprep.subr.mxu0 0.0
    %4693 = vmatpush1.msra.mxu0 0.0
    %4694 = vmatprep.subr.mxu0 0.0
    %4695 = vmatpush1.msra.mxu0 0.0
    %4696 = vmatprep.subr.mxu0 0.0
    %4697 = vmatpush1.msra.mxu0 0.0
    %4698 = vmatprep.subr.mxu0 0.0
    %4699 = vmatpush1.msra.mxu0 0.0
    %4700 = vmatprep.subr.mxu0 0.0
    %4701 = vmatpush1.msra.mxu0 0.0
    %4702 = vmatprep.subr.mxu0 0.0
    %4703 = vmatpush1.msra.mxu0 0.0
    %4704 = vmatprep.subr.mxu0 0.0
    %4705 = vmatpush1.msra.mxu0 0.0
    %4706 = vmatprep.subr.mxu0 0.0
    %4707 = vmatpush1.msra.mxu0 0.0
    %4708 = vmatprep.subr.mxu0 0.0
    %4709 = vmatpush1.msra.mxu0 0.0
    %4710 = vmatprep.subr.mxu0 0.0
    %4711 = vmatpush1.msra.mxu0 0.0
    %4712 = vmatprep.mubr.f32.mxu0 0.0
    %v4713 = vand.u32 %v4449, 4294901760
    %v4714 = vsub.f32 %v4449, %v4713
    %4715 = vmatmul.mubr.f32.gmra.mrb[0].mxu0 %v4714
    %v4716 = vpop.f32.mrb[0].mxu0
    %v4717 = vadd.f32 %v4631, %v4716
    %v4718 = vpop.f32.mrb[0].mxu0
    %4719 = vmatprep.mubr.f32.mxu0 0.0
    %v4720 = vand.u32 %v4452, 4294901760
    %v4721 = vsub.f32 %v4452, %v4720
    %4722 = vmatmul.mubr.f32.gmra.mrb[0].mxu0 %v4721
    %v4723 = vpop.f32.mrb[0].mxu0
    %v4724 = vadd.f32 %v4637, %v4723
    %v4725 = vpop.f32.mrb[0].mxu0
    %4726 = vdwg.mxu0
    %4727 = vmatprep.subr.mxu0 0.0
    %v4728 = vand.u32 %v2607, 4294901760
    %4729 = vmatpush1.msra.mxu0 %v4728
    %4730 = vmatprep.subr.mxu0 0.0
    %v4731 = vand.u32 %v2608, 4294901760
    %4732 = vmatpush1.msra.mxu0 %v4731
    %4733 = vmatprep.subr.mxu0 0.0
    %v4734 = vand.u32 %v2609, 4294901760
    %4735 = vmatpush1.msra.mxu0 %v4734
    %4736 = vmatprep.subr.mxu0 0.0
    %v4737 = vand.u32 %v2610, 4294901760
    %4738 = vmatpush1.msra.mxu0 %v4737
    %4739 = vmatprep.subr.mxu0 0.0
    %4740 = vmatpush1.msra.mxu0 0.0
    %4741 = vmatprep.subr.mxu0 0.0
    %4742 = vmatpush1.msra.mxu0 0.0
    %4743 = vmatprep.subr.mxu0 0.0
    %4744 = vmatpush1.msra.mxu0 0.0
    %4745 = vmatprep.subr.mxu0 0.0
    %4746 = vmatpush1.msra.mxu0 0.0
    %4747 = vmatprep.subr.mxu0 0.0
    %4748 = vmatpush1.msra.mxu0 0.0
    %4749 = vmatprep.subr.mxu0 0.0
    %4750 = vmatpush1.msra.mxu0 0.0
    %4751 = vmatprep.subr.mxu0 0.0
    %4752 = vmatpush1.msra.mxu0 0.0
    %4753 = vmatprep.subr.mxu0 0.0
    %4754 = vmatpush1.msra.mxu0 0.0
    %4755 = vmatprep.subr.mxu0 0.0
    %4756 = vmatpush1.msra.mxu0 0.0
    %4757 = vmatprep.subr.mxu0 0.0
    %4758 = vmatpush1.msra.mxu0 0.0
    %4759 = vmatprep.subr.mxu0 0.0
    %4760 = vmatpush1.msra.mxu0 0.0
    %4761 = vmatprep.subr.mxu0 0.0
    %4762 = vmatpush1.msra.mxu0 0.0
    %4763 = vmatprep.subr.mxu0 0.0
    %4764 = vmatpush1.msra.mxu0 0.0
    %4765 = vmatprep.subr.mxu0 0.0
    %4766 = vmatpush1.msra.mxu0 0.0
    %4767 = vmatprep.subr.mxu0 0.0
    %4768 = vmatpush1.msra.mxu0 0.0
    %4769 = vmatprep.subr.mxu0 0.0
    %4770 = vmatpush1.msra.mxu0 0.0
    %4771 = vmatprep.subr.mxu0 0.0
    %4772 = vmatpush1.msra.mxu0 0.0
    %4773 = vmatprep.subr.mxu0 0.0
    %4774 = vmatpush1.msra.mxu0 0.0
    %4775 = vmatprep.subr.mxu0 0.0
    %4776 = vmatpush1.msra.mxu0 0.0
    %4777 = vmatprep.subr.mxu0 0.0
    %4778 = vmatpush1.msra.mxu0 0.0
    %4779 = vmatprep.subr.mxu0 0.0
    %4780 = vmatpush1.msra.mxu0 0.0
    %4781 = vmatprep.subr.mxu0 0.0
    %4782 = vmatpush1.msra.mxu0 0.0
    %4783 = vmatprep.subr.mxu0 0.0
    %4784 = vmatpush1.msra.mxu0 0.0
    %4785 = vmatprep.subr.mxu0 0.0
    %4786 = vmatpush1.msra.mxu0 0.0
    %4787 = vmatprep.subr.mxu0 0.0
    %4788 = vmatpush1.msra.mxu0 0.0
    %4789 = vmatprep.subr.mxu0 0.0
    %4790 = vmatpush1.msra.mxu0 0.0
    %4791 = vmatprep.subr.mxu0 0.0
    %4792 = vmatpush1.msra.mxu0 0.0
    %4793 = vmatprep.subr.mxu0 0.0
    %4794 = vmatpush1.msra.mxu0 0.0
    %4795 = vmatprep.mubr.f32.mxu0 0.0
    %v4796 = vand.u32 %v4449, 4294901760
    %v4797 = vsub.f32 %v4449, %v4796
    %v4798 = vand.u32 %v4797, 4294901760
    %4799 = vmatmul.mubr.f32.gmra.mrb[0].mxu0 %v4798
    %v4800 = vpop.f32.mrb[0].mxu0
    %v4801 = vadd.f32 %v4717, %v4800
    %v4802 = vpop.f32.mrb[0].mxu0
    %4803 = vmatprep.mubr.f32.mxu0 0.0
    %v4804 = vand.u32 %v4452, 4294901760
    %v4805 = vsub.f32 %v4452, %v4804
    %v4806 = vand.u32 %v4805, 4294901760
    %4807 = vmatmul.mubr.f32.gmra.mrb[0].mxu0 %v4806
    %v4808 = vpop.f32.mrb[0].mxu0
    %v4809 = vadd.f32 %v4724, %v4808
    %v4810 = vpop.f32.mrb[0].mxu0
    %4811 = vdwg.mxu0
    %4812 = vmatprep.subr.mxu0 0.0
    %v4813 = vand.u32 %v2607, 4294901760
    %v4814 = vsub.f32 %v2607, %v4813
    %v4815 = vand.u32 %v4814, 4294901760
    %4816 = vmatpush1.msra.mxu0 %v4815
    %4817 = vmatprep.subr.mxu0 0.0
    %v4818 = vand.u32 %v2608, 4294901760
    %v4819 = vsub.f32 %v2608, %v4818
    %v4820 = vand.u32 %v4819, 4294901760
    %4821 = vmatpush1.msra.mxu0 %v4820
    %4822 = vmatprep.subr.mxu0 0.0
    %v4823 = vand.u32 %v2609, 4294901760
    %v4824 = vsub.f32 %v2609, %v4823
    %v4825 = vand.u32 %v4824, 4294901760
    %4826 = vmatpush1.msra.mxu0 %v4825
    %4827 = vmatprep.subr.mxu0 0.0
    %v4828 = vand.u32 %v2610, 4294901760
    %v4829 = vsub.f32 %v2610, %v4828
    %v4830 = vand.u32 %v4829, 4294901760
    %4831 = vmatpush1.msra.mxu0 %v4830
    %4832 = vmatprep.subr.mxu0 0.0
    %4833 = vmatpush1.msra.mxu0 0.0
    %4834 = vmatprep.subr.mxu0 0.0
    %4835 = vmatpush1.msra.mxu0 0.0
    %4836 = vmatprep.subr.mxu0 0.0
    %4837 = vmatpush1.msra.mxu0 0.0
    %4838 = vmatprep.subr.mxu0 0.0
    %4839 = vmatpush1.msra.mxu0 0.0
    %4840 = vmatprep.subr.mxu0 0.0
    %4841 = vmatpush1.msra.mxu0 0.0
    %4842 = vmatprep.subr.mxu0 0.0
    %4843 = vmatpush1.msra.mxu0 0.0
    %4844 = vmatprep.subr.mxu0 0.0
    %4845 = vmatpush1.msra.mxu0 0.0
    %4846 = vmatprep.subr.mxu0 0.0
    %4847 = vmatpush1.msra.mxu0 0.0
    %4848 = vmatprep.subr.mxu0 0.0
    %4849 = vmatpush1.msra.mxu0 0.0
    %4850 = vmatprep.subr.mxu0 0.0
    %4851 = vmatpush1.msra.mxu0 0.0
    %4852 = vmatprep.subr.mxu0 0.0
    %4853 = vmatpush1.msra.mxu0 0.0
    %4854 = vmatprep.subr.mxu0 0.0
    %4855 = vmatpush1.msra.mxu0 0.0
    %4856 = vmatprep.subr.mxu0 0.0
    %4857 = vmatpush1.msra.mxu0 0.0
    %4858 = vmatprep.subr.mxu0 0.0
    %4859 = vmatpush1.msra.mxu0 0.0
    %4860 = vmatprep.subr.mxu0 0.0
    %4861 = vmatpush1.msra.mxu0 0.0
    %4862 = vmatprep.subr.mxu0 0.0
    %4863 = vmatpush1.msra.mxu0 0.0
    %4864 = vmatprep.subr.mxu0 0.0
    %4865 = vmatpush1.msra.mxu0 0.0
    %4866 = vmatprep.subr.mxu0 0.0
    %4867 = vmatpush1.msra.mxu0 0.0
    %4868 = vmatprep.subr.mxu0 0.0
    %4869 = vmatpush1.msra.mxu0 0.0
    %4870 = vmatprep.subr.mxu0 0.0
    %4871 = vmatpush1.msra.mxu0 0.0
    %4872 = vmatprep.subr.mxu0 0.0
    %4873 = vmatpush1.msra.mxu0 0.0
    %4874 = vmatprep.subr.mxu0 0.0
    %4875 = vmatpush1.msra.mxu0 0.0
    %4876 = vmatprep.subr.mxu0 0.0
    %4877 = vmatpush1.msra.mxu0 0.0
    %4878 = vmatprep.subr.mxu0 0.0
    %4879 = vmatpush1.msra.mxu0 0.0
    %4880 = vmatprep.subr.mxu0 0.0
    %4881 = vmatpush1.msra.mxu0 0.0
    %4882 = vmatprep.subr.mxu0 0.0
    %4883 = vmatpush1.msra.mxu0 0.0
    %4884 = vmatprep.subr.mxu0 0.0
    %4885 = vmatpush1.msra.mxu0 0.0
    %4886 = vmatprep.subr.mxu0 0.0
    %4887 = vmatpush1.msra.mxu0 0.0
    %4888 = vmatprep.mubr.f32.mxu0 0.0
    %v4889 = vand.u32 %v4449, 4294901760
    %4890 = vmatmul.mubr.f32.gmra.mrb[0].mxu0 %v4889
    %v4891 = vpop.f32.mrb[0].mxu0
    %v4892 = vadd.f32 %v4801, %v4891
    %v4893 = vpop.f32.mrb[0].mxu0
    %4894 = vmatprep.mubr.f32.mxu0 0.0
    %v4895 = vand.u32 %v4452, 4294901760
    %4896 = vmatmul.mubr.f32.gmra.mrb[0].mxu0 %v4895
    %v4897 = vpop.f32.mrb[0].mxu0
    %v4898 = vadd.f32 %v4809, %v4897
    %v4899 = vpop.f32.mrb[0].mxu0
    %4900 = vdwg.mxu0
    %4901 = vmatprep.subr.mxu0 0.0
    %v4902 = vand.u32 %v2607, 4294901760
    %4903 = vmatpush1.msra.mxu0 %v4902
    %4904 = vmatprep.subr.mxu0 0.0
    %v4905 = vand.u32 %v2608, 4294901760
    %4906 = vmatpush1.msra.mxu0 %v4905
    %4907 = vmatprep.subr.mxu0 0.0
    %v4908 = vand.u32 %v2609, 4294901760
    %4909 = vmatpush1.msra.mxu0 %v4908
    %4910 = vmatprep.subr.mxu0 0.0
    %v4911 = vand.u32 %v2610, 4294901760
    %4912 = vmatpush1.msra.mxu0 %v4911
    %4913 = vmatprep.subr.mxu0 0.0
    %4914 = vmatpush1.msra.mxu0 0.0
    %4915 = vmatprep.subr.mxu0 0.0
    %4916 = vmatpush1.msra.mxu0 0.0
    %4917 = vmatprep.subr.mxu0 0.0
    %4918 = vmatpush1.msra.mxu0 0.0
    %4919 = vmatprep.subr.mxu0 0.0
    %4920 = vmatpush1.msra.mxu0 0.0
    %4921 = vmatprep.subr.mxu0 0.0
    %4922 = vmatpush1.msra.mxu0 0.0
    %4923 = vmatprep.subr.mxu0 0.0
    %4924 = vmatpush1.msra.mxu0 0.0
    %4925 = vmatprep.subr.mxu0 0.0
    %4926 = vmatpush1.msra.mxu0 0.0
    %4927 = vmatprep.subr.mxu0 0.0
    %4928 = vmatpush1.msra.mxu0 0.0
    %4929 = vmatprep.subr.mxu0 0.0
    %4930 = vmatpush1.msra.mxu0 0.0
    %4931 = vmatprep.subr.mxu0 0.0
    %4932 = vmatpush1.msra.mxu0 0.0
    %4933 = vmatprep.subr.mxu0 0.0
    %4934 = vmatpush1.msra.mxu0 0.0
    %4935 = vmatprep.subr.mxu0 0.0
    %4936 = vmatpush1.msra.mxu0 0.0
    %4937 = vmatprep.subr.mxu0 0.0
    %4938 = vmatpush1.msra.mxu0 0.0
    %4939 = vmatprep.subr.mxu0 0.0
    %4940 = vmatpush1.msra.mxu0 0.0
    %4941 = vmatprep.subr.mxu0 0.0
    %4942 = vmatpush1.msra.mxu0 0.0
    %4943 = vmatprep.subr.mxu0 0.0
    %4944 = vmatpush1.msra.mxu0 0.0
    %4945 = vmatprep.subr.mxu0 0.0
    %4946 = vmatpush1.msra.mxu0 0.0
    %4947 = vmatprep.subr.mxu0 0.0
    %4948 = vmatpush1.msra.mxu0 0.0
    %4949 = vmatprep.subr.mxu0 0.0
    %4950 = vmatpush1.msra.mxu0 0.0
    %4951 = vmatprep.subr.mxu0 0.0
    %4952 = vmatpush1.msra.mxu0 0.0
    %4953 = vmatprep.subr.mxu0 0.0
    %4954 = vmatpush1.msra.mxu0 0.0
    %4955 = vmatprep.subr.mxu0 0.0
    %4956 = vmatpush1.msra.mxu0 0.0
    %4957 = vmatprep.subr.mxu0 0.0
    %4958 = vmatpush1.msra.mxu0 0.0
    %4959 = vmatprep.subr.mxu0 0.0
    %4960 = vmatpush1.msra.mxu0 0.0
    %4961 = vmatprep.subr.mxu0 0.0
    %4962 = vmatpush1.msra.mxu0 0.0
    %4963 = vmatprep.subr.mxu0 0.0
    %4964 = vmatpush1.msra.mxu0 0.0
    %4965 = vmatprep.subr.mxu0 0.0
    %4966 = vmatpush1.msra.mxu0 0.0
    %4967 = vmatprep.subr.mxu0 0.0
    %4968 = vmatpush1.msra.mxu0 0.0
    %4969 = vmatprep.mubr.f32.mxu0 0.0
    %v4970 = vand.u32 %v4449, 4294901760
    %4971 = vmatmul.mubr.f32.gmra.mrb[0].mxu0 %v4970
    %v4972 = vpop.f32.mrb[0].mxu0
    %v4973 = vadd.f32 %v4892, %v4972
    %v4974 = vpop.f32.mrb[0].mxu0
    %4975 = vmatprep.mubr.f32.mxu0 0.0
    %v4976 = vand.u32 %v4452, 4294901760
    %4977 = vmatmul.mubr.f32.gmra.mrb[0].mxu0 %v4976
    %v4978 = vpop.f32.mrb[0].mxu0
    %v4979 = vadd.f32 %v4898, %v4978
    %v4980 = vpop.f32.mrb[0].mxu0
    %4981 = vdwg.mxu0
    %v4982 = vld [vmem:[%s1 + $0x1c0] sm:$0xff]
    %v4983 = vld [vmem:[%s1 + $0x1c8] sm:$0xff]
    %4985 = vset.pattern.permute.xlu0 0
    %4986 = vperm.xlu0 %4985, %v4982
    %v4987 = vpop.permute.xlu0 %4986
    %4990 = vset.pattern.permute.xlu0 0
    %4991 = vperm.xlu0 %4990, %v4983
    %v4992 = vpop.permute.xlu0 %4991
    %v4994 = vadd.f32 %v4973, %v4987
    %v4995 = vadd.f32 %v4979, %v4992
    %v4996 = vtanh.pop %v4994
    %v4997 = vtanh.pop %v4995
    %v4998 = vld [vmem:[%s1 + $0x1d0] sm:$0xff]
    %v4999 = vld [vmem:[%s1 + $0x1d8] sm:$0xff]
    %v5000 = vld [vmem:[%s1 + $0x1e0] sm:$0x3]
    %v5001 = vmul.f32 %v4996, %v4998
    %v5002 = vsel %vm1311, %v5001, 0.0
    %v5003 = vrot.slane %v5002, 4
    %v5004 = vadd.f32 %v5002, %v5003
    %v5005 = vrot.slane %v5004, 2
    %v5006 = vadd.f32 %v5004, %v5005
    %v5007 = vrot.slane %v5006, 1
    %v5008 = vadd.f32 %v5006, %v5007
    %v5009 = vadd.f32 %v5008, %v5000
    %vm5010 = vcmask 57344
    %5011 = vst.msk [vmem:[#allocation2] sm:$0x1] %vm5010, %v5009
    %v5012 = vmul.f32 %v4996, %v4999
    %v5013 = vsel %vm1311, %v5012, 0.0
    %v5014 = vrot.slane %v5013, 4
    %v5015 = vadd.f32 %v5013, %v5014
    %v5016 = vrot.slane %v5015, 2
    %v5017 = vadd.f32 %v5015, %v5016
    %v5018 = vrot.slane %v5017, 1
    %v5019 = vadd.f32 %v5017, %v5018
    %v5020 = vadd.f32 %v5019, %v5000
    %vm5021 = vcmask 58369
    %5022 = vst.msk [vmem:[#allocation2] sm:$0x2] %vm5021, %v5020
    %v5023 = vmul.f32 %v4997, %v4998
    %v5024 = vsel %vm1311, %v5023, 0.0
    %v5025 = vrot.slane %v5024, 4
    %v5026 = vadd.f32 %v5024, %v5025
    %v5027 = vrot.slane %v5026, 2
    %v5028 = vadd.f32 %v5026, %v5027
    %v5029 = vrot.slane %v5028, 1
    %v5030 = vadd.f32 %v5028, %v5029
    %v5031 = vadd.f32 %v5030, %v5000
    %5032 = vst.msk [vmem:[#allocation2 + $0x2] sm:$0x1] %vm5010, %v5031
    %v5033 = vmul.f32 %v4997, %v4999
    %v5034 = vsel %vm1311, %v5033, 0.0
    %v5035 = vrot.slane %v5034, 4
    %v5036 = vadd.f32 %v5034, %v5035
    %v5037 = vrot.slane %v5036, 2
    %v5038 = vadd.f32 %v5036, %v5037
    %v5039 = vrot.slane %v5038, 1
    %v5040 = vadd.f32 %v5038, %v5039
    %v5041 = vadd.f32 %v5040, %v5000
    %5042 = vst.msk [vmem:[#allocation2 + $0x2] sm:$0x2] %vm5021, %v5041
    // Predicated region
    $region10: #{dcm_forward.1} parent=1 // pred_check
      _
    $region11: #{dcm_forward.1} parent=1 // pred_check_branch
      %5044 = sbr.rel (0) target = $region13
    $region12: #{dcm_forward.1} parent=1 // pred_region
      %s5046 = ssub.s32 64, 64
      %5047 = vsyncadd [#allocation3], %s5046
      %s5049 = sshll.u32 [#allocation2], 4
      %s5050 = int_to_ptr.vmem [resolvable:$true] %s5049
      %5052 = dma.vmem_to_hbm [thread:$0]  %s5050, 64, %s2, [#allocation3]
    $region13: #{dcm_forward.1} parent=1 // pred_fallthru
      _
    // Predicated region
    $region14: #{dcm_forward.1} parent=1 // pred_check
      _
    $region15: #{dcm_forward.1} parent=1 // pred_check_branch
      %5054 = sbr.rel (0) target = $region17
    $region16: #{dcm_forward.1} parent=1 // pred_region
      %5055 = dma.done [#allocation3], 64
    $region17: #{dcm_forward.1} parent=1 // pred_fallthru
      _
    %5056 = vsyncpa [#allocation3], 1

</llo_original>
